<compile_context>
chip_gen: v5e
topology: v5e:2x2
jax: 0.10.0
libtpu: 0.0.40
codegen_flags: <defaults>
</compile_context>

<pallas_src>
import functools

import jax
import jax.numpy as jnp
from jax import lax
from jax.experimental import pallas as pl
from jax.experimental.pallas import tpu as pltpu

_BN_EPS = 1e-5


# ----------------------------------------------------------------------------
# Lane-dense helpers
# ----------------------------------------------------------------------------
def _index_mats(F):
    """Constant one-hot matrices that keep the per-node (F, F) adjacency lane-dense.

    For a row-vector v of length F (flat adjacency lane j = o*F + f, o = adjacency row,
    f = contracted column):
      v @ rep   -> lane j holds v[j // F]   (repeat each entry F times: place along o)
      v @ til   -> lane j holds v[j %  F]   (tile the vector F times:   place along f)
      p @ rep_t -> per-o group sums         (reduce over f for every adjacency row o)
    """
    j = jnp.arange(F * F)
    i = jnp.arange(F)[:, None]
    rep = (j[None, :] // F == i).astype(jnp.float32)   # (F, F*F)
    til = (j[None, :] % F == i).astype(jnp.float32)    # (F, F*F)
    return rep, til, rep.T                              # rep_t: (F*F, F)


def _attn_members(xb, nbrs, w_att, w_feat, b_feat, rep, til, rep_t, *, C, F,
                  include_neighbors):
    """Shared AttnFeatTrans1dSoft math on 2-D lane-dense (tn, lanes) slabs.

    xb: (tn, C*F) node features; nbrs: list of K (tn, C*F) neighbor features.
    Returns raw (pre-BatchNorm) outputs [node] or [node, nbr_0, ..., nbr_{K-1}],
    each (tn, O) with O = w_feat.shape[-1].
    """
    # --- soft attention over neighbors: VPU multiply + lane reduce, softmax unrolled ---
    e_x = jnp.sum(xb * w_att, axis=-1, keepdims=True)                   # (tn, 1)
    scores = [e_x + jnp.sum(nb * w_att, axis=-1, keepdims=True) for nb in nbrs]
    m = scores[0]
    for s in scores[1:]:
        m = jnp.maximum(m, s)
    ps = [jnp.exp(s - m) for s in scores]
    denom = ps[0]
    for p in ps[1:]:
        denom = denom + p
    inv_denom = pl.reciprocal(denom, approx=True)                       # EUP
    alphas = [p * inv_denom for p in ps]

    # --- attention-weighted neighbor aggregate (K static & tiny -> unrolled) ---
    nbar = alphas[0] * nbrs[0]
    for a_k, nb in zip(alphas[1:], nbrs[1:]):
        nbar = nbar + a_k * nb                                          # (tn, C*F)

    # --- symmetric adjacency A[o,f] = sum_c x[c,o]*nbar[c,f] + nbar[c,o]*x[c,f],
    #     kept flat / lane-dense as (tn, F*F) ---
    a = None
    for c in range(C):
        xc = xb[:, c * F:(c + 1) * F]
        nc = nbar[:, c * F:(c + 1) * F]
        xr = jnp.dot(xc, rep, preferred_element_type=jnp.float32)
        xt = jnp.dot(xc, til, preferred_element_type=jnp.float32)
        nr = jnp.dot(nc, rep, preferred_element_type=jnp.float32)
        nt = jnp.dot(nc, til, preferred_element_type=jnp.float32)
        term = xr * nt + nr * xt
        a = term if a is None else a + term

    a = a * lax.rsqrt(jnp.abs(a) + 1e-12)                               # signed sqrt (EUP)
    rowsum = jnp.dot(jnp.abs(a), rep_t, preferred_element_type=jnp.float32)  # (tn, F)
    inv_rs = pl.reciprocal(rowsum + 1e-7, approx=True)                  # EUP
    a = a * jnp.dot(inv_rs, rep, preferred_element_type=jnp.float32)    # L1 row-normalize

    # --- per-member feature transform: z[c,o] = sum_f member[c,f] * A[o,f];
    #     y = z_flat @ W^T + b (bf16 operands, f32 accumulate) ---
    members = [xb] + (list(nbrs) if include_neighbors else [])
    outs = []
    for g_m in members:
        z_cs = []
        for c in range(C):
            mc = g_m[:, c * F:(c + 1) * F]
            p = jnp.dot(mc, til, preferred_element_type=jnp.float32) * a
            z_cs.append(jnp.dot(p, rep_t, preferred_element_type=jnp.float32))
        z = z_cs[0] if C == 1 else jnp.concatenate(z_cs, axis=-1)       # (tn, C*F)
        y = jnp.dot(z.astype(w_feat.dtype), w_feat,
                    preferred_element_type=jnp.float32) + b_feat        # (tn, O)
        outs.append(y)
    return outs


def _masked_stats(y, tn, n_real):
    """Per-tile, per-lane partial sums / sums-of-squares over the real (unpadded) rows."""
    row = lax.broadcasted_iota(jnp.int32, (tn, 1), 0) + pl.program_id(0) * tn
    msk = (row < n_real).astype(jnp.float32)
    ym = y * msk                                    # mask in {0,1} -> ym*ym == y*y*mask
    s = jnp.sum(ym, axis=0, keepdims=True)
    q = jnp.sum(ym * ym, axis=0, keepdims=True)
    return jnp.concatenate([s, q], axis=0).reshape(1, 2, y.shape[-1])


# ----------------------------------------------------------------------------
# Kernels
# ----------------------------------------------------------------------------
def _stage1_kernel(x_ref, nbr_ref, watt_ref, wfeat_ref, bfeat_ref,
                   rep_ref, til_ref, rep_t_ref, out_ref, stats_ref, *,
                   tn, K, C, F, n_real):
    CF = C * F
    xb = x_ref[...]
    nbrs = [nbr_ref[:, k * CF:(k + 1) * CF] for k in range(K)]
    ys = _attn_members(xb, nbrs, watt_ref[...], wfeat_ref[...], bfeat_ref[...],
                       rep_ref[...], til_ref[...], rep_t_ref[...],
                       C=C, F=F, include_neighbors=True)
    y = jnp.concatenate(ys, axis=-1)                # (tn, (K+1)*O) lane-dense slab
    out_ref[...] = y
    stats_ref[...] = _masked_stats(y, tn, n_real)


def _stage2_kernel(slab_ref, scale_ref, shift_ref, watt_ref, wfeat_ref, bfeat_ref,
                   rep_ref, til_ref, rep_t_ref, out_ref, stats_ref, *,
                   tn, K, C, F, n_real):
    CF = C * F
    # fused acvt1: BatchNorm affine (precomputed per-branch batch stats) + Softsign
    g = slab_ref[...] * scale_ref[...] + shift_ref[...]
    g = g * pl.reciprocal(1.0 + jnp.abs(g), approx=True)
    xb = g[:, :CF]
    nbrs = [g[:, (k + 1) * CF:(k + 2) * CF] for k in range(K)]
    ys = _attn_members(xb, nbrs, watt_ref[...], wfeat_ref[...], bfeat_ref[...],
                       rep_ref[...], til_ref[...], rep_t_ref[...],
                       C=C, F=F, include_neighbors=False)   # torch forward drops neighbors
    y = ys[0]
    out_ref[...] = y
    stats_ref[...] = _masked_stats(y, tn, n_real)


def _cls_kernel(x_ref, scale_ref, shift_ref, w_ref, b_ref, o_ref):
    # fused acvt2 (BN affine + Softsign) + classifier Linear
    y = x_ref[...] * scale_ref[...] + shift_ref[...]
    y = y * pl.reciprocal(1.0 + jnp.abs(y), approx=True)
    o_ref[...] = jnp.dot(y.astype(w_ref.dtype), w_ref[...],
                         preferred_element_type=jnp.float32) + b_ref[...]


# ----------------------------------------------------------------------------
# pallas_call wrappers
# ----------------------------------------------------------------------------
def _attn_stage1(x_flat, nbr_flat, w_att, w_feat, b_feat, *, C, F, O, K, tn, n_real):
    n_pad = x_flat.shape[0]
    CF, FF, K1 = C * F, F * F, K + 1
    grid = n_pad // tn
    rep, til, rep_t = _index_mats(F)
    out_w = K1 * O
    kernel = functools.partial(_stage1_kernel, tn=tn, K=K, C=C, F=F, n_real=n_real)
    return pl.pallas_call(
        kernel,
        out_shape=(jax.ShapeDtypeStruct((n_pad, out_w), jnp.float32),
                   jax.ShapeDtypeStruct((grid, 2, out_w), jnp.float32)),
        grid=(grid,),
        in_specs=[
            pl.BlockSpec((tn, CF), lambda i: (i, 0)),
            pl.BlockSpec((tn, K * CF), lambda i: (i, 0)),
            pl.BlockSpec((1, CF), lambda i: (0, 0)),
            pl.BlockSpec((CF, O), lambda i: (0, 0)),
            pl.BlockSpec((1, O), lambda i: (0, 0)),
            pl.BlockSpec((F, FF), lambda i: (0, 0)),
            pl.BlockSpec((F, FF), lambda i: (0, 0)),
            pl.BlockSpec((FF, F), lambda i: (0, 0)),
        ],
        out_specs=(pl.BlockSpec((tn, out_w), lambda i: (i, 0)),
                   pl.BlockSpec((1, 2, out_w), lambda i: (i, 0, 0))),
        compiler_params=pltpu.CompilerParams(dimension_semantics=("parallel",)),
    )(x_flat, nbr_flat,
      w_att.reshape(1, CF).astype(jnp.float32),
      w_feat.reshape(O, CF).T.astype(jnp.bfloat16),
      b_feat.reshape(1, O).astype(jnp.float32),
      rep, til, rep_t)


def _attn_stage2(slab, scale_row, shift_row, w_att, w_feat, b_feat, *,
                 C, F, O, K, tn, n_real):
    n_pad = slab.shape[0]
    CF, FF, K1 = C * F, F * F, K + 1
    grid = n_pad // tn
    rep, til, rep_t = _index_mats(F)
    in_w = K1 * CF
    kernel = functools.partial(_stage2_kernel, tn=tn, K=K, C=C, F=F, n_real=n_real)
    return pl.pallas_call(
        kernel,
        out_shape=(jax.ShapeDtypeStruct((n_pad, O), jnp.float32),
                   jax.ShapeDtypeStruct((grid, 2, O), jnp.float32)),
        grid=(grid,),
        in_specs=[
            pl.BlockSpec((tn, in_w), lambda i: (i, 0)),
            pl.BlockSpec((1, in_w), lambda i: (0, 0)),
            pl.BlockSpec((1, in_w), lambda i: (0, 0)),
            pl.BlockSpec((1, CF), lambda i: (0, 0)),
            pl.BlockSpec((CF, O), lambda i: (0, 0)),
            pl.BlockSpec((1, O), lambda i: (0, 0)),
            pl.BlockSpec((F, FF), lambda i: (0, 0)),
            pl.BlockSpec((F, FF), lambda i: (0, 0)),
            pl.BlockSpec((FF, F), lambda i: (0, 0)),
        ],
        out_specs=(pl.BlockSpec((tn, O), lambda i: (i, 0)),
                   pl.BlockSpec((1, 2, O), lambda i: (i, 0, 0))),
        compiler_params=pltpu.CompilerParams(dimension_semantics=("parallel",)),
    )(slab, scale_row, shift_row,
      w_att.reshape(1, CF).astype(jnp.float32),
      w_feat.reshape(O, CF).T.astype(jnp.bfloat16),
      b_feat.reshape(1, O).astype(jnp.float32),
      rep, til, rep_t)


def _classifier(x2, scale_row, shift_row, w_cls, b_cls, tn):
    n_pad, d = x2.shape
    nc = w_cls.shape[-1]
    return pl.pallas_call(
        _cls_kernel,
        out_shape=jax.ShapeDtypeStruct((n_pad, nc), jnp.float32),
        grid=(n_pad // tn,),
        in_specs=[pl.BlockSpec((tn, d), lambda i: (i, 0)),
                  pl.BlockSpec((1, d), lambda i: (0, 0)),
                  pl.BlockSpec((1, d), lambda i: (0, 0)),
                  pl.BlockSpec((d, nc), lambda i: (0, 0)),
                  pl.BlockSpec((1, nc), lambda i: (0, 0))],
        out_specs=pl.BlockSpec((tn, nc), lambda i: (i, 0)),
        compiler_params=pltpu.CompilerParams(dimension_semantics=("parallel",)),
    )(x2, scale_row, shift_row, w_cls.astype(jnp.bfloat16), b_cls)


# ----------------------------------------------------------------------------
# Glue, parameters and forward
# ----------------------------------------------------------------------------
def _choose_node_tile(n):
    # Sized for register pressure (review), chosen to divide N so wrapper-side jnp.pad of
    # the big neighbor tensor is avoided whenever N % 8 == 0.
    for t in (32, 16, 8):
        if n % t == 0:
            return t
    return 8


def _bn_rows_from_stats(stats, gamma, beta, n_real, slots, oc, of):
    """Turn per-tile partial sums into per-branch BatchNorm1d affine rows (training mode)."""
    tot = jnp.sum(stats, axis=0)                         # (2, slots*oc*of)
    s = tot[0].reshape(slots, oc, of)
    q = tot[1].reshape(slots, oc, of)
    cnt = float(n_real * of)
    mean = jnp.sum(s, axis=-1) / cnt                     # (slots, oc)
    var = jnp.maximum(jnp.sum(q, axis=-1) / cnt - mean * mean, 0.0)   # biased (train mode)
    scale = gamma[None, :] * lax.rsqrt(var + _BN_EPS)
    shift = beta[None, :] - mean * scale
    d = slots * oc * of
    scale_row = jnp.repeat(scale, of, axis=-1).reshape(1, d)
    shift_row = jnp.repeat(shift, of, axis=-1).reshape(1, d)
    return scale_row, shift_row


def init_afgn_params(key, feat_len, num_class, hidden=(64, 32)):
    c = (1, 4, hidden[1])
    f = (feat_len, hidden[0] // c[1], 1)
    keys = jax.random.split(key, 8)

    def uniform(k, shape, fan_in):
        bound = 1.0 / float(fan_in) ** 0.5
        return jax.random.uniform(k, shape, jnp.float32, -bound, bound)

    params = {
        # feat1: AttnFeatTrans1dSoft(c0, f0 -> c1, f1)
        "w_feat1": uniform(keys[0], (c[1] * f[1], c[0], f[0]), c[0] * f[0]),
        "b_feat1": uniform(keys[1], (c[1] * f[1],), c[0] * f[0]),
        "w_att1": uniform(keys[2], (c[0], f[0]), c[0] * f[0]),
        "b_att1": jnp.zeros((1,), jnp.float32),   # inert: cancels under softmax max-subtract
        "gamma1": jnp.ones((c[1],), jnp.float32),
        "beta1": jnp.zeros((c[1],), jnp.float32),
        # feat2: AttnFeatTrans1dSoft(c1, f1 -> c2, f2)
        "w_feat2": uniform(keys[3], (c[2] * f[2], c[1], f[1]), c[1] * f[1]),
        "b_feat2": uniform(keys[4], (c[2] * f[2],), c[1] * f[1]),
        "w_att2": uniform(keys[5], (c[1], f[1]), c[1] * f[1]),
        "b_att2": jnp.zeros((1,), jnp.float32),   # inert, kept for fidelity
        "gamma2": jnp.ones((c[2],), jnp.float32),
        "beta2": jnp.zeros((c[2],), jnp.float32),
        # classifier: Flatten + Linear(c2*f2, num_class)
        "w_cls": uniform(keys[6], (c[2] * f[2], num_class), c[2] * f[2]),
        "b_cls": uniform(keys[7], (1, num_class), c[2] * f[2]),
    }
    return params, c, f


@functools.partial(jax.jit, static_argnums=(3, 4))
def afgn_forward(params, x, neighbor, c, f):
    N = x.shape[0]
    K = neighbor.shape[1]
    K1 = K + 1
    tn = _choose_node_tile(N)
    n_pad = tn * ((N + tn - 1) // tn)

    x_flat = x.reshape(N, c[0] * f[0])
    nbr_flat = neighbor.reshape(N, K * c[0] * f[0])
    if n_pad != N:
        # TODO(synk): jnp.pad re-copies the whole neighbor tensor; only hit when N % 8 != 0.
        x_flat = jnp.pad(x_flat, ((0, n_pad - N), (0, 0)))
        nbr_flat = jnp.pad(nbr_flat, ((0, n_pad - N), (0, 0)))

    # --- feat1: raw node+neighbor slab + per-tile BN partial stats ---------------------
    o1 = c[1] * f[1]
    out1, stats1 = _attn_stage1(x_flat, nbr_flat,
                                params["w_att1"], params["w_feat1"], params["b_feat1"],
                                C=c[0], F=f[0], O=o1, K=K, tn=tn, n_real=N)
    # acvt1 batch statistics per branch (x, and each neighbor slot separately, as in torch)
    scale1, shift1 = _bn_rows_from_stats(stats1, params["gamma1"], params["beta1"],
                                         N, K1, c[1], f[1])

    # --- feat2: acvt1 fused into the prologue, node branch only ------------------------
    o2 = c[2] * f[2]
    x2_raw, stats2 = _attn_stage2(out1, scale1, shift1,
                                  params["w_att2"], params["w_feat2"], params["b_feat2"],
                                  C=c[1], F=f[1], O=o2, K=K, tn=tn, n_real=N)
    scale2, shift2 = _bn_rows_from_stats(stats2, params["gamma2"], params["beta2"],
                                         N, 1, c[2], f[2])

    # --- acvt2 + classifier fused -------------------------------------------------------
    logits = _classifier(x2_raw, scale2, shift2, params["w_cls"], params["b_cls"], tn)
    return logits[:N]


if __name__ == "__main__":
    FEAT_LEN, NUM_CLASS = 32, 8
    N, K = 2, 3                                # 2 nodes, 3 neighbors each

    key = jax.random.PRNGKey(0)
    kp, kx, kn = jax.random.split(key, 3)
    params, c, f = init_afgn_params(kp, FEAT_LEN, NUM_CLASS)

    x = jax.random.normal(kx, (N, 1, FEAT_LEN), jnp.float32)
    neighbor = jax.random.normal(kn, (N, K, 1, FEAT_LEN), jnp.float32)

    logits = afgn_forward(params, x, neighbor, c, f)
    logits = jax.block_until_ready(logits)
    assert logits.shape == (N, NUM_CLASS)
    assert bool(jnp.all(jnp.isfinite(logits)))
    print("KERNEL_OK")
</pallas_src>

<mosaic_0001>
module attributes {stable_mosaic.version = 11 : i64} {
  func.func @_stage1_kernel(%arg0: i32, %arg1: memref<8x32xf32, #tpu.memory_space<vmem>>, %arg2: memref<8x96xf32, #tpu.memory_space<vmem>>, %arg3: memref<1x32xf32, #tpu.memory_space<vmem>>, %arg4: memref<32x64xbf16, #tpu.memory_space<vmem>>, %arg5: memref<1x64xf32, #tpu.memory_space<vmem>>, %arg6: memref<32x1024xf32, #tpu.memory_space<vmem>>, %arg7: memref<32x1024xf32, #tpu.memory_space<vmem>>, %arg8: memref<1024x32xf32, #tpu.memory_space<vmem>>, %arg9: memref<8x256xf32, #tpu.memory_space<vmem>>, %arg10: memref<1x2x256xf32, #tpu.memory_space<vmem>>) attributes {dimension_semantics = [#tpu.dimension_semantics<parallel>], iteration_bounds = array<i64: 1>, scalar_prefetch = 0 : i64, scratch_operands = 0 : i64, tpu.core_type = #tpu.core_type<tc>, window_params = [{transform_indices = @transform_0, window_bounds = array<i64: 8, 32>}, {transform_indices = @transform_1, window_bounds = array<i64: 8, 96>}, {pipeline_mode = #tpu.pipeline_mode<synchronous>, transform_indices = @transform_2, window_bounds = array<i64: 1, 32>}, {pipeline_mode = #tpu.pipeline_mode<synchronous>, transform_indices = @transform_3, window_bounds = array<i64: 32, 64>}, {pipeline_mode = #tpu.pipeline_mode<synchronous>, transform_indices = @transform_4, window_bounds = array<i64: 1, 64>}, {pipeline_mode = #tpu.pipeline_mode<synchronous>, transform_indices = @transform_5, window_bounds = array<i64: 32, 1024>}, {pipeline_mode = #tpu.pipeline_mode<synchronous>, transform_indices = @transform_6, window_bounds = array<i64: 32, 1024>}, {pipeline_mode = #tpu.pipeline_mode<synchronous>, transform_indices = @transform_7, window_bounds = array<i64: 1024, 32>}, {transform_indices = @transform_8, window_bounds = array<i64: 8, 256>}, {transform_indices = @transform_9, window_bounds = array<i64: 1, 2, 256>}]} {
    %c0 = arith.constant 0 : index
    %c0_0 = arith.constant 0 : index
    %0 = vector.load %arg1[%c0, %c0_0] : memref<8x32xf32, #tpu.memory_space<vmem>>, vector<8x32xf32>
    %c0_1 = arith.constant 0 : index
    %c0_2 = arith.constant 0 : index
    %1 = vector.load %arg2[%c0_1, %c0_2] : memref<8x96xf32, #tpu.memory_space<vmem>>, vector<8x32xf32>
    %c0_3 = arith.constant 0 : index
    %c32 = arith.constant 32 : index
    %2 = vector.load %arg2[%c0_3, %c32] : memref<8x96xf32, #tpu.memory_space<vmem>>, vector<8x32xf32>
    %c0_4 = arith.constant 0 : index
    %c64 = arith.constant 64 : index
    %3 = vector.load %arg2[%c0_4, %c64] : memref<8x96xf32, #tpu.memory_space<vmem>>, vector<8x32xf32>
    %c0_5 = arith.constant 0 : index
    %c0_6 = arith.constant 0 : index
    %4 = vector.load %arg3[%c0_5, %c0_6] : memref<1x32xf32, #tpu.memory_space<vmem>>, vector<1x32xf32>
    %c0_7 = arith.constant 0 : index
    %c0_8 = arith.constant 0 : index
    %5 = vector.load %arg4[%c0_7, %c0_8] : memref<32x64xbf16, #tpu.memory_space<vmem>>, vector<32x64xbf16>
    %c0_9 = arith.constant 0 : index
    %c0_10 = arith.constant 0 : index
    %6 = vector.load %arg5[%c0_9, %c0_10] : memref<1x64xf32, #tpu.memory_space<vmem>>, vector<1x64xf32>
    %c0_11 = arith.constant 0 : index
    %c0_12 = arith.constant 0 : index
    %7 = vector.load %arg6[%c0_11, %c0_12] : memref<32x1024xf32, #tpu.memory_space<vmem>>, vector<32x1024xf32>
    %c0_13 = arith.constant 0 : index
    %c0_14 = arith.constant 0 : index
    %8 = vector.load %arg7[%c0_13, %c0_14] : memref<32x1024xf32, #tpu.memory_space<vmem>>, vector<32x1024xf32>
    %c0_15 = arith.constant 0 : index
    %c0_16 = arith.constant 0 : index
    %9 = vector.load %arg8[%c0_15, %c0_16] : memref<1024x32xf32, #tpu.memory_space<vmem>>, vector<1024x32xf32>
    %10 = vector.broadcast %4 : vector<1x32xf32> to vector<8x32xf32>
    %11 = arith.mulf %0, %10 : vector<8x32xf32>
    %cst = arith.constant dense<0.000000e+00> : vector<8xf32>
    %12 = vector.multi_reduction <add>, %11, %cst [1] : vector<8x32xf32> to vector<8xf32>
    %13 = vector.shape_cast %12 : vector<8xf32> to vector<8x1xf32>
    %14 = vector.broadcast %4 : vector<1x32xf32> to vector<8x32xf32>
    %15 = arith.mulf %1, %14 : vector<8x32xf32>
    %cst_17 = arith.constant dense<0.000000e+00> : vector<8xf32>
    %16 = vector.multi_reduction <add>, %15, %cst_17 [1] : vector<8x32xf32> to vector<8xf32>
    %17 = vector.shape_cast %16 : vector<8xf32> to vector<8x1xf32>
    %18 = arith.addf %13, %17 : vector<8x1xf32>
    %19 = vector.broadcast %4 : vector<1x32xf32> to vector<8x32xf32>
    %20 = arith.mulf %2, %19 : vector<8x32xf32>
    %cst_18 = arith.constant dense<0.000000e+00> : vector<8xf32>
    %21 = vector.multi_reduction <add>, %20, %cst_18 [1] : vector<8x32xf32> to vector<8xf32>
    %22 = vector.shape_cast %21 : vector<8xf32> to vector<8x1xf32>
    %23 = arith.addf %13, %22 : vector<8x1xf32>
    %24 = vector.broadcast %4 : vector<1x32xf32> to vector<8x32xf32>
    %25 = arith.mulf %3, %24 : vector<8x32xf32>
    %cst_19 = arith.constant dense<0.000000e+00> : vector<8xf32>
    %26 = vector.multi_reduction <add>, %25, %cst_19 [1] : vector<8x32xf32> to vector<8xf32>
    %27 = vector.shape_cast %26 : vector<8xf32> to vector<8x1xf32>
    %28 = arith.addf %13, %27 : vector<8x1xf32>
    %29 = arith.maximumf %18, %23 : vector<8x1xf32>
    %30 = arith.maximumf %29, %28 : vector<8x1xf32>
    %31 = arith.subf %18, %30 : vector<8x1xf32>
    %32 = math.exp %31 : vector<8x1xf32>
    %33 = arith.subf %23, %30 : vector<8x1xf32>
    %34 = math.exp %33 : vector<8x1xf32>
    %35 = arith.subf %28, %30 : vector<8x1xf32>
    %36 = math.exp %35 : vector<8x1xf32>
    %37 = arith.addf %32, %34 : vector<8x1xf32>
    %38 = arith.addf %37, %36 : vector<8x1xf32>
    %39 = tpu.reciprocal %38 {approx = true} : vector<8x1xf32> -> vector<8x1xf32>
    %40 = arith.mulf %32, %39 : vector<8x1xf32>
    %41 = arith.mulf %34, %39 : vector<8x1xf32>
    %42 = arith.mulf %36, %39 : vector<8x1xf32>
    %43 = vector.broadcast %40 : vector<8x1xf32> to vector<8x32xf32>
    %44 = arith.mulf %43, %1 : vector<8x32xf32>
    %45 = vector.broadcast %41 : vector<8x1xf32> to vector<8x32xf32>
    %46 = arith.mulf %45, %2 : vector<8x32xf32>
    %47 = arith.addf %44, %46 : vector<8x32xf32>
    %48 = vector.broadcast %42 : vector<8x1xf32> to vector<8x32xf32>
    %49 = arith.mulf %48, %3 : vector<8x32xf32>
    %50 = arith.addf %47, %49 : vector<8x32xf32>
    %cst_20 = arith.constant dense<0.000000e+00> : vector<8x1024xf32>
    %51 = tpu.matmul %0, %7, %cst_20 {dimension_numbers = #tpu.dot_dimension_numbers<[1], [0], [0], [1], [0, 0, 1, 1], [], []>} : vector<8x32xf32>, vector<32x1024xf32>, vector<8x1024xf32> -> vector<8x1024xf32>
    %cst_21 = arith.constant dense<0.000000e+00> : vector<8x1024xf32>
    %52 = tpu.matmul %0, %8, %cst_21 {dimension_numbers = #tpu.dot_dimension_numbers<[1], [0], [0], [1], [0, 0, 1, 1], [], []>} : vector<8x32xf32>, vector<32x1024xf32>, vector<8x1024xf32> -> vector<8x1024xf32>
    %cst_22 = arith.constant dense<0.000000e+00> : vector<8x1024xf32>
    %53 = tpu.matmul %50, %7, %cst_22 {dimension_numbers = #tpu.dot_dimension_numbers<[1], [0], [0], [1], [0, 0, 1, 1], [], []>} : vector<8x32xf32>, vector<32x1024xf32>, vector<8x1024xf32> -> vector<8x1024xf32>
    %cst_23 = arith.constant dense<0.000000e+00> : vector<8x1024xf32>
    %54 = tpu.matmul %50, %8, %cst_23 {dimension_numbers = #tpu.dot_dimension_numbers<[1], [0], [0], [1], [0, 0, 1, 1], [], []>} : vector<8x32xf32>, vector<32x1024xf32>, vector<8x1024xf32> -> vector<8x1024xf32>
    %55 = arith.mulf %51, %54 : vector<8x1024xf32>
    %56 = arith.mulf %53, %52 : vector<8x1024xf32>
    %57 = arith.addf %55, %56 : vector<8x1024xf32>
    %58 = math.absf %57 : vector<8x1024xf32>
    %cst_24 = arith.constant 9.99999996E-13 : f32
    %59 = vector.broadcast %cst_24 : f32 to vector<8x1024xf32>
    %60 = arith.addf %58, %59 : vector<8x1024xf32>
    %61 = math.rsqrt %60 : vector<8x1024xf32>
    %62 = arith.mulf %57, %61 : vector<8x1024xf32>
    %63 = math.absf %62 : vector<8x1024xf32>
    %cst_25 = arith.constant dense<0.000000e+00> : vector<8x32xf32>
    %64 = tpu.matmul %63, %9, %cst_25 {dimension_numbers = #tpu.dot_dimension_numbers<[1], [0], [0], [1], [0, 0, 1, 1], [], []>} : vector<8x1024xf32>, vector<1024x32xf32>, vector<8x32xf32> -> vector<8x32xf32>
    %cst_26 = arith.constant 1.000000e-07 : f32
    %65 = vector.broadcast %cst_26 : f32 to vector<8x32xf32>
    %66 = arith.addf %64, %65 : vector<8x32xf32>
    %67 = tpu.reciprocal %66 {approx = true} : vector<8x32xf32> -> vector<8x32xf32>
    %cst_27 = arith.constant dense<0.000000e+00> : vector<8x1024xf32>
    %68 = tpu.matmul %67, %7, %cst_27 {dimension_numbers = #tpu.dot_dimension_numbers<[1], [0], [0], [1], [0, 0, 1, 1], [], []>} : vector<8x32xf32>, vector<32x1024xf32>, vector<8x1024xf32> -> vector<8x1024xf32>
    %69 = arith.mulf %62, %68 : vector<8x1024xf32>
    %cst_28 = arith.constant dense<0.000000e+00> : vector<8x1024xf32>
    %70 = tpu.matmul %0, %8, %cst_28 {dimension_numbers = #tpu.dot_dimension_numbers<[1], [0], [0], [1], [0, 0, 1, 1], [], []>} : vector<8x32xf32>, vector<32x1024xf32>, vector<8x1024xf32> -> vector<8x1024xf32>
    %71 = arith.mulf %70, %69 : vector<8x1024xf32>
    %cst_29 = arith.constant dense<0.000000e+00> : vector<8x32xf32>
    %72 = tpu.matmul %71, %9, %cst_29 {dimension_numbers = #tpu.dot_dimension_numbers<[1], [0], [0], [1], [0, 0, 1, 1], [], []>} : vector<8x1024xf32>, vector<1024x32xf32>, vector<8x32xf32> -> vector<8x32xf32>
    %73 = arith.truncf %72 : vector<8x32xf32> to vector<8x32xbf16>
    %cst_30 = arith.constant dense<0.000000e+00> : vector<8x64xf32>
    %74 = tpu.matmul %73, %5, %cst_30 {dimension_numbers = #tpu.dot_dimension_numbers<[1], [0], [0], [1], [0, 0, 1, 1], [], []>} : vector<8x32xbf16>, vector<32x64xbf16>, vector<8x64xf32> -> vector<8x64xf32>
    %75 = vector.broadcast %6 : vector<1x64xf32> to vector<8x64xf32>
    %76 = arith.addf %74, %75 : vector<8x64xf32>
    %cst_31 = arith.constant dense<0.000000e+00> : vector<8x1024xf32>
    %77 = tpu.matmul %1, %8, %cst_31 {dimension_numbers = #tpu.dot_dimension_numbers<[1], [0], [0], [1], [0, 0, 1, 1], [], []>} : vector<8x32xf32>, vector<32x1024xf32>, vector<8x1024xf32> -> vector<8x1024xf32>
    %78 = arith.mulf %77, %69 : vector<8x1024xf32>
    %cst_32 = arith.constant dense<0.000000e+00> : vector<8x32xf32>
    %79 = tpu.matmul %78, %9, %cst_32 {dimension_numbers = #tpu.dot_dimension_numbers<[1], [0], [0], [1], [0, 0, 1, 1], [], []>} : vector<8x1024xf32>, vector<1024x32xf32>, vector<8x32xf32> -> vector<8x32xf32>
    %80 = arith.truncf %79 : vector<8x32xf32> to vector<8x32xbf16>
    %cst_33 = arith.constant dense<0.000000e+00> : vector<8x64xf32>
    %81 = tpu.matmul %80, %5, %cst_33 {dimension_numbers = #tpu.dot_dimension_numbers<[1], [0], [0], [1], [0, 0, 1, 1], [], []>} : vector<8x32xbf16>, vector<32x64xbf16>, vector<8x64xf32> -> vector<8x64xf32>
    %82 = vector.broadcast %6 : vector<1x64xf32> to vector<8x64xf32>
    %83 = arith.addf %81, %82 : vector<8x64xf32>
    %cst_34 = arith.constant dense<0.000000e+00> : vector<8x1024xf32>
    %84 = tpu.matmul %2, %8, %cst_34 {dimension_numbers = #tpu.dot_dimension_numbers<[1], [0], [0], [1], [0, 0, 1, 1], [], []>} : vector<8x32xf32>, vector<32x1024xf32>, vector<8x1024xf32> -> vector<8x1024xf32>
    %85 = arith.mulf %84, %69 : vector<8x1024xf32>
    %cst_35 = arith.constant dense<0.000000e+00> : vector<8x32xf32>
    %86 = tpu.matmul %85, %9, %cst_35 {dimension_numbers = #tpu.dot_dimension_numbers<[1], [0], [0], [1], [0, 0, 1, 1], [], []>} : vector<8x1024xf32>, vector<1024x32xf32>, vector<8x32xf32> -> vector<8x32xf32>
    %87 = arith.truncf %86 : vector<8x32xf32> to vector<8x32xbf16>
    %cst_36 = arith.constant dense<0.000000e+00> : vector<8x64xf32>
    %88 = tpu.matmul %87, %5, %cst_36 {dimension_numbers = #tpu.dot_dimension_numbers<[1], [0], [0], [1], [0, 0, 1, 1], [], []>} : vector<8x32xbf16>, vector<32x64xbf16>, vector<8x64xf32> -> vector<8x64xf32>
    %89 = vector.broadcast %6 : vector<1x64xf32> to vector<8x64xf32>
    %90 = arith.addf %88, %89 : vector<8x64xf32>
    %cst_37 = arith.constant dense<0.000000e+00> : vector<8x1024xf32>
    %91 = tpu.matmul %3, %8, %cst_37 {dimension_numbers = #tpu.dot_dimension_numbers<[1], [0], [0], [1], [0, 0, 1, 1], [], []>} : vector<8x32xf32>, vector<32x1024xf32>, vector<8x1024xf32> -> vector<8x1024xf32>
    %92 = arith.mulf %91, %69 : vector<8x1024xf32>
    %cst_38 = arith.constant dense<0.000000e+00> : vector<8x32xf32>
    %93 = tpu.matmul %92, %9, %cst_38 {dimension_numbers = #tpu.dot_dimension_numbers<[1], [0], [0], [1], [0, 0, 1, 1], [], []>} : vector<8x1024xf32>, vector<1024x32xf32>, vector<8x32xf32> -> vector<8x32xf32>
    %94 = arith.truncf %93 : vector<8x32xf32> to vector<8x32xbf16>
    %cst_39 = arith.constant dense<0.000000e+00> : vector<8x64xf32>
    %95 = tpu.matmul %94, %5, %cst_39 {dimension_numbers = #tpu.dot_dimension_numbers<[1], [0], [0], [1], [0, 0, 1, 1], [], []>} : vector<8x32xbf16>, vector<32x64xbf16>, vector<8x64xf32> -> vector<8x64xf32>
    %96 = vector.broadcast %6 : vector<1x64xf32> to vector<8x64xf32>
    %97 = arith.addf %95, %96 : vector<8x64xf32>
    %98 = tpu.concatenate %76, %83, %90, %97 in 1 : vector<8x64xf32>, vector<8x64xf32>, vector<8x64xf32>, vector<8x64xf32> -> vector<8x256xf32>
    %c0_40 = arith.constant 0 : index
    %c0_41 = arith.constant 0 : index
    %99 = vector.load %arg9[%c0_40, %c0_41] : memref<8x256xf32, #tpu.memory_space<vmem>>, vector<8x256xf32>
    tpu.vector_store %arg9[%c0_40, %c0_41], %98 {strides = array<i32>} : memref<8x256xf32, #tpu.memory_space<vmem>>, vector<8x256xf32>,
    %100 = tpu.iota {dimensions = array<i32: 0>} : vector<8x1xi32>
    %c8_i32 = arith.constant 8 : i32
    %101 = arith.muli %arg0, %c8_i32 : i32
    %102 = vector.broadcast %101 : i32 to vector<8x1xi32>
    %103 = arith.addi %100, %102 : vector<8x1xi32>
    %c2_i32 = arith.constant 2 : i32
    %104 = vector.broadcast %c2_i32 : i32 to vector<8x1xi32>
    %105 = arith.cmpi slt, %103, %104 : vector<8x1xi32>
    %106 = arith.extui %105 : vector<8x1xi1> to vector<8x1xi32>
    %107 = arith.sitofp %106 : vector<8x1xi32> to vector<8x1xf32>
    %108 = vector.broadcast %107 : vector<8x1xf32> to vector<8x256xf32>
    %109 = arith.mulf %98, %108 : vector<8x256xf32>
    %cst_42 = arith.constant dense<0.000000e+00> : vector<256xf32>
    %110 = vector.multi_reduction <add>, %109, %cst_42 [0] : vector<8x256xf32> to vector<256xf32>
    %111 = vector.shape_cast %110 : vector<256xf32> to vector<1x256xf32>
    %112 = arith.mulf %109, %109 : vector<8x256xf32>
    %cst_43 = arith.constant dense<0.000000e+00> : vector<256xf32>
    %113 = vector.multi_reduction <add>, %112, %cst_43 [0] : vector<8x256xf32> to vector<256xf32>
    %114 = vector.shape_cast %113 : vector<256xf32> to vector<1x256xf32>
    %115 = tpu.concatenate %111, %114 in 0 : vector<1x256xf32>, vector<1x256xf32> -> vector<2x256xf32>
    %116 = vector.shape_cast %115 : vector<2x256xf32> to vector<1x2x256xf32>
    %c0_44 = arith.constant 0 : index
    %c0_45 = arith.constant 0 : index
    %c0_46 = arith.constant 0 : index
    %117 = vector.load %arg10[%c0_44, %c0_45, %c0_46] : memref<1x2x256xf32, #tpu.memory_space<vmem>>, vector<1x2x256xf32>
    tpu.vector_store %arg10[%c0_44, %c0_45, %c0_46], %116 {strides = array<i32>} : memref<1x2x256xf32, #tpu.memory_space<vmem>>, vector<1x2x256xf32>,
    return
  }
  func.func @transform_0(%arg0: i32) -> (i32, i32) {
    %c0_i32 = arith.constant 0 : i32
    %c0_i32_0 = arith.constant 0 : i32
    return %arg0, %c0_i32 : i32, i32
  }
  func.func @transform_1(%arg0: i32) -> (i32, i32) {
    %c0_i32 = arith.constant 0 : i32
    %c0_i32_0 = arith.constant 0 : i32
    return %arg0, %c0_i32 : i32, i32
  }
  func.func @transform_2(%arg0: i32) -> (i32, i32) {
    %c0_i32 = arith.constant 0 : i32
    %c0_i32_0 = arith.constant 0 : i32
    %c0_i32_1 = arith.constant 0 : i32
    return %c0_i32, %c0_i32_0 : i32, i32
  }
  func.func @transform_3(%arg0: i32) -> (i32, i32) {
    %c0_i32 = arith.constant 0 : i32
    %c0_i32_0 = arith.constant 0 : i32
    %c0_i32_1 = arith.constant 0 : i32
    return %c0_i32, %c0_i32_0 : i32, i32
  }
  func.func @transform_4(%arg0: i32) -> (i32, i32) {
    %c0_i32 = arith.constant 0 : i32
    %c0_i32_0 = arith.constant 0 : i32
    %c0_i32_1 = arith.constant 0 : i32
    return %c0_i32, %c0_i32_0 : i32, i32
  }
  func.func @transform_5(%arg0: i32) -> (i32, i32) {
    %c0_i32 = arith.constant 0 : i32
    %c0_i32_0 = arith.constant 0 : i32
    %c0_i32_1 = arith.constant 0 : i32
    return %c0_i32, %c0_i32_0 : i32, i32
  }
  func.func @transform_6(%arg0: i32) -> (i32, i32) {
    %c0_i32 = arith.constant 0 : i32
    %c0_i32_0 = arith.constant 0 : i32
    %c0_i32_1 = arith.constant 0 : i32
    return %c0_i32, %c0_i32_0 : i32, i32
  }
  func.func @transform_7(%arg0: i32) -> (i32, i32) {
    %c0_i32 = arith.constant 0 : i32
    %c0_i32_0 = arith.constant 0 : i32
    %c0_i32_1 = arith.constant 0 : i32
    return %c0_i32, %c0_i32_0 : i32, i32
  }
  func.func @transform_8(%arg0: i32) -> (i32, i32) {
    %c0_i32 = arith.constant 0 : i32
    %c0_i32_0 = arith.constant 0 : i32
    return %arg0, %c0_i32 : i32, i32
  }
  func.func @transform_9(%arg0: i32) -> (i32, i32, i32) {
    %c0_i32 = arith.constant 0 : i32
    %c0_i32_0 = arith.constant 0 : i32
    %c0_i32_1 = arith.constant 0 : i32
    return %arg0, %c0_i32, %c0_i32_0 : i32, i32, i32
  }
}

module attributes {stable_mosaic.version = 11 : i64} {
  func.func @_cls_kernel(%arg0: i32, %arg1: memref<8x32xf32, #tpu.memory_space<vmem>>, %arg2: memref<1x32xf32, #tpu.memory_space<vmem>>, %arg3: memref<1x32xf32, #tpu.memory_space<vmem>>, %arg4: memref<32x8xbf16, #tpu.memory_space<vmem>>, %arg5: memref<1x8xf32, #tpu.memory_space<vmem>>, %arg6: memref<8x8xf32, #tpu.memory_space<vmem>>) attributes {dimension_semantics = [#tpu.dimension_semantics<parallel>], iteration_bounds = array<i64: 1>, scalar_prefetch = 0 : i64, scratch_operands = 0 : i64, tpu.core_type = #tpu.core_type<tc>, window_params = [{transform_indices = @transform_0, window_bounds = array<i64: 8, 32>}, {pipeline_mode = #tpu.pipeline_mode<synchronous>, transform_indices = @transform_1, window_bounds = array<i64: 1, 32>}, {pipeline_mode = #tpu.pipeline_mode<synchronous>, transform_indices = @transform_2, window_bounds = array<i64: 1, 32>}, {pipeline_mode = #tpu.pipeline_mode<synchronous>, transform_indices = @transform_3, window_bounds = array<i64: 32, 8>}, {pipeline_mode = #tpu.pipeline_mode<synchronous>, transform_indices = @transform_4, window_bounds = array<i64: 1, 8>}, {transform_indices = @transform_5, window_bounds = array<i64: 8, 8>}]} {
    %c0 = arith.constant 0 : index
    %c0_0 = arith.constant 0 : index
    %0 = vector.load %arg1[%c0, %c0_0] : memref<8x32xf32, #tpu.memory_space<vmem>>, vector<8x32xf32>
    %c0_1 = arith.constant 0 : index
    %c0_2 = arith.constant 0 : index
    %1 = vector.load %arg2[%c0_1, %c0_2] : memref<1x32xf32, #tpu.memory_space<vmem>>, vector<1x32xf32>
    %2 = vector.broadcast %1 : vector<1x32xf32> to vector<8x32xf32>
    %3 = arith.mulf %0, %2 : vector<8x32xf32>
    %c0_3 = arith.constant 0 : index
    %c0_4 = arith.constant 0 : index
    %4 = vector.load %arg3[%c0_3, %c0_4] : memref<1x32xf32, #tpu.memory_space<vmem>>, vector<1x32xf32>
    %5 = vector.broadcast %4 : vector<1x32xf32> to vector<8x32xf32>
    %6 = arith.addf %3, %5 : vector<8x32xf32>
    %7 = math.absf %6 : vector<8x32xf32>
    %cst = arith.constant 1.000000e+00 : f32
    %8 = vector.broadcast %cst : f32 to vector<8x32xf32>
    %9 = arith.addf %8, %7 : vector<8x32xf32>
    %10 = tpu.reciprocal %9 {approx = true} : vector<8x32xf32> -> vector<8x32xf32>
    %11 = arith.mulf %6, %10 : vector<8x32xf32>
    %12 = arith.truncf %11 : vector<8x32xf32> to vector<8x32xbf16>
    %c0_5 = arith.constant 0 : index
    %c0_6 = arith.constant 0 : index
    %13 = vector.load %arg4[%c0_5, %c0_6] : memref<32x8xbf16, #tpu.memory_space<vmem>>, vector<32x8xbf16>
    %cst_7 = arith.constant dense<0.000000e+00> : vector<8x8xf32>
    %14 = tpu.matmul %12, %13, %cst_7 {dimension_numbers = #tpu.dot_dimension_numbers<[1], [0], [0], [1], [0, 0, 1, 1], [], []>} : vector<8x32xbf16>, vector<32x8xbf16>, vector<8x8xf32> -> vector<8x8xf32>
    %c0_8 = arith.constant 0 : index
    %c0_9 = arith.constant 0 : index
    %15 = vector.load %arg5[%c0_8, %c0_9] : memref<1x8xf32, #tpu.memory_space<vmem>>, vector<1x8xf32>
    %16 = vector.broadcast %15 : vector<1x8xf32> to vector<8x8xf32>
    %17 = arith.addf %14, %16 : vector<8x8xf32>
    %c0_10 = arith.constant 0 : index
    %c0_11 = arith.constant 0 : index
    %18 = vector.load %arg6[%c0_10, %c0_11] : memref<8x8xf32, #tpu.memory_space<vmem>>, vector<8x8xf32>
    tpu.vector_store %arg6[%c0_10, %c0_11], %17 {strides = array<i32>} : memref<8x8xf32, #tpu.memory_space<vmem>>, vector<8x8xf32>,
    return
  }
  func.func @transform_0(%arg0: i32) -> (i32, i32) {
    %c0_i32 = arith.constant 0 : i32
    %c0_i32_0 = arith.constant 0 : i32
    return %arg0, %c0_i32 : i32, i32
  }
  func.func @transform_1(%arg0: i32) -> (i32, i32) {
    %c0_i32 = arith.constant 0 : i32
    %c0_i32_0 = arith.constant 0 : i32
    %c0_i32_1 = arith.constant 0 : i32
    return %c0_i32, %c0_i32_0 : i32, i32
  }
  func.func @transform_2(%arg0: i32) -> (i32, i32) {
    %c0_i32 = arith.constant 0 : i32
    %c0_i32_0 = arith.constant 0 : i32
    %c0_i32_1 = arith.constant 0 : i32
    return %c0_i32, %c0_i32_0 : i32, i32
  }
  func.func @transform_3(%arg0: i32) -> (i32, i32) {
    %c0_i32 = arith.constant 0 : i32
    %c0_i32_0 = arith.constant 0 : i32
    %c0_i32_1 = arith.constant 0 : i32
    return %c0_i32, %c0_i32_0 : i32, i32
  }
  func.func @transform_4(%arg0: i32) -> (i32, i32) {
    %c0_i32 = arith.constant 0 : i32
    %c0_i32_0 = arith.constant 0 : i32
    %c0_i32_1 = arith.constant 0 : i32
    return %c0_i32, %c0_i32_0 : i32, i32
  }
  func.func @transform_5(%arg0: i32) -> (i32, i32) {
    %c0_i32 = arith.constant 0 : i32
    %c0_i32_0 = arith.constant 0 : i32
    return %arg0, %c0_i32 : i32, i32
  }
}

module attributes {stable_mosaic.version = 11 : i64} {
  func.func @_stage2_kernel(%arg0: i32, %arg1: memref<8x256xf32, #tpu.memory_space<vmem>>, %arg2: memref<1x256xf32, #tpu.memory_space<vmem>>, %arg3: memref<1x256xf32, #tpu.memory_space<vmem>>, %arg4: memref<1x64xf32, #tpu.memory_space<vmem>>, %arg5: memref<64x32xbf16, #tpu.memory_space<vmem>>, %arg6: memref<1x32xf32, #tpu.memory_space<vmem>>, %arg7: memref<16x256xf32, #tpu.memory_space<vmem>>, %arg8: memref<16x256xf32, #tpu.memory_space<vmem>>, %arg9: memref<256x16xf32, #tpu.memory_space<vmem>>, %arg10: memref<8x32xf32, #tpu.memory_space<vmem>>, %arg11: memref<1x2x32xf32, #tpu.memory_space<vmem>>) attributes {dimension_semantics = [#tpu.dimension_semantics<parallel>], iteration_bounds = array<i64: 1>, scalar_prefetch = 0 : i64, scratch_operands = 0 : i64, tpu.core_type = #tpu.core_type<tc>, window_params = [{transform_indices = @transform_0, window_bounds = array<i64: 8, 256>}, {pipeline_mode = #tpu.pipeline_mode<synchronous>, transform_indices = @transform_1, window_bounds = array<i64: 1, 256>}, {pipeline_mode = #tpu.pipeline_mode<synchronous>, transform_indices = @transform_2, window_bounds = array<i64: 1, 256>}, {pipeline_mode = #tpu.pipeline_mode<synchronous>, transform_indices = @transform_3, window_bounds = array<i64: 1, 64>}, {pipeline_mode = #tpu.pipeline_mode<synchronous>, transform_indices = @transform_4, window_bounds = array<i64: 64, 32>}, {pipeline_mode = #tpu.pipeline_mode<synchronous>, transform_indices = @transform_5, window_bounds = array<i64: 1, 32>}, {pipeline_mode = #tpu.pipeline_mode<synchronous>, transform_indices = @transform_6, window_bounds = array<i64: 16, 256>}, {pipeline_mode = #tpu.pipeline_mode<synchronous>, transform_indices = @transform_7, window_bounds = array<i64: 16, 256>}, {pipeline_mode = #tpu.pipeline_mode<synchronous>, transform_indices = @transform_8, window_bounds = array<i64: 256, 16>}, {transform_indices = @transform_9, window_bounds = array<i64: 8, 32>}, {transform_indices = @transform_10, window_bounds = array<i64: 1, 2, 32>}]} {
    %c0 = arith.constant 0 : index
    %c0_0 = arith.constant 0 : index
    %0 = vector.load %arg1[%c0, %c0_0] : memref<8x256xf32, #tpu.memory_space<vmem>>, vector<8x256xf32>
    %c0_1 = arith.constant 0 : index
    %c0_2 = arith.constant 0 : index
    %1 = vector.load %arg2[%c0_1, %c0_2] : memref<1x256xf32, #tpu.memory_space<vmem>>, vector<1x256xf32>
    %2 = vector.broadcast %1 : vector<1x256xf32> to vector<8x256xf32>
    %3 = arith.mulf %0, %2 : vector<8x256xf32>
    %c0_3 = arith.constant 0 : index
    %c0_4 = arith.constant 0 : index
    %4 = vector.load %arg3[%c0_3, %c0_4] : memref<1x256xf32, #tpu.memory_space<vmem>>, vector<1x256xf32>
    %5 = vector.broadcast %4 : vector<1x256xf32> to vector<8x256xf32>
    %6 = arith.addf %3, %5 : vector<8x256xf32>
    %7 = math.absf %6 : vector<8x256xf32>
    %cst = arith.constant 1.000000e+00 : f32
    %8 = vector.broadcast %cst : f32 to vector<8x256xf32>
    %9 = arith.addf %8, %7 : vector<8x256xf32>
    %10 = tpu.reciprocal %9 {approx = true} : vector<8x256xf32> -> vector<8x256xf32>
    %11 = arith.mulf %6, %10 : vector<8x256xf32>
    %12 = vector.extract_strided_slice %11 {offsets = [0, 0], sizes = [8, 64], strides = [1, 1]} : vector<8x256xf32> to vector<8x64xf32>
    %13 = vector.extract_strided_slice %11 {offsets = [0, 64], sizes = [8, 64], strides = [1, 1]} : vector<8x256xf32> to vector<8x64xf32>
    %14 = vector.extract_strided_slice %11 {offsets = [0, 128], sizes = [8, 64], strides = [1, 1]} : vector<8x256xf32> to vector<8x64xf32>
    %15 = vector.extract_strided_slice %11 {offsets = [0, 192], sizes = [8, 64], strides = [1, 1]} : vector<8x256xf32> to vector<8x64xf32>
    %c0_5 = arith.constant 0 : index
    %c0_6 = arith.constant 0 : index
    %16 = vector.load %arg4[%c0_5, %c0_6] : memref<1x64xf32, #tpu.memory_space<vmem>>, vector<1x64xf32>
    %c0_7 = arith.constant 0 : index
    %c0_8 = arith.constant 0 : index
    %17 = vector.load %arg5[%c0_7, %c0_8] : memref<64x32xbf16, #tpu.memory_space<vmem>>, vector<64x32xbf16>
    %c0_9 = arith.constant 0 : index
    %c0_10 = arith.constant 0 : index
    %18 = vector.load %arg6[%c0_9, %c0_10] : memref<1x32xf32, #tpu.memory_space<vmem>>, vector<1x32xf32>
    %c0_11 = arith.constant 0 : index
    %c0_12 = arith.constant 0 : index
    %19 = vector.load %arg7[%c0_11, %c0_12] : memref<16x256xf32, #tpu.memory_space<vmem>>, vector<16x256xf32>
    %c0_13 = arith.constant 0 : index
    %c0_14 = arith.constant 0 : index
    %20 = vector.load %arg8[%c0_13, %c0_14] : memref<16x256xf32, #tpu.memory_space<vmem>>, vector<16x256xf32>
    %c0_15 = arith.constant 0 : index
    %c0_16 = arith.constant 0 : index
    %21 = vector.load %arg9[%c0_15, %c0_16] : memref<256x16xf32, #tpu.memory_space<vmem>>, vector<256x16xf32>
    %22 = vector.broadcast %16 : vector<1x64xf32> to vector<8x64xf32>
    %23 = arith.mulf %12, %22 : vector<8x64xf32>
    %cst_17 = arith.constant dense<0.000000e+00> : vector<8xf32>
    %24 = vector.multi_reduction <add>, %23, %cst_17 [1] : vector<8x64xf32> to vector<8xf32>
    %25 = vector.shape_cast %24 : vector<8xf32> to vector<8x1xf32>
    %26 = vector.broadcast %16 : vector<1x64xf32> to vector<8x64xf32>
    %27 = arith.mulf %13, %26 : vector<8x64xf32>
    %cst_18 = arith.constant dense<0.000000e+00> : vector<8xf32>
    %28 = vector.multi_reduction <add>, %27, %cst_18 [1] : vector<8x64xf32> to vector<8xf32>
    %29 = vector.shape_cast %28 : vector<8xf32> to vector<8x1xf32>
    %30 = arith.addf %25, %29 : vector<8x1xf32>
    %31 = vector.broadcast %16 : vector<1x64xf32> to vector<8x64xf32>
    %32 = arith.mulf %14, %31 : vector<8x64xf32>
    %cst_19 = arith.constant dense<0.000000e+00> : vector<8xf32>
    %33 = vector.multi_reduction <add>, %32, %cst_19 [1] : vector<8x64xf32> to vector<8xf32>
    %34 = vector.shape_cast %33 : vector<8xf32> to vector<8x1xf32>
    %35 = arith.addf %25, %34 : vector<8x1xf32>
    %36 = vector.broadcast %16 : vector<1x64xf32> to vector<8x64xf32>
    %37 = arith.mulf %15, %36 : vector<8x64xf32>
    %cst_20 = arith.constant dense<0.000000e+00> : vector<8xf32>
    %38 = vector.multi_reduction <add>, %37, %cst_20 [1] : vector<8x64xf32> to vector<8xf32>
    %39 = vector.shape_cast %38 : vector<8xf32> to vector<8x1xf32>
    %40 = arith.addf %25, %39 : vector<8x1xf32>
    %41 = arith.maximumf %30, %35 : vector<8x1xf32>
    %42 = arith.maximumf %41, %40 : vector<8x1xf32>
    %43 = arith.subf %30, %42 : vector<8x1xf32>
    %44 = math.exp %43 : vector<8x1xf32>
    %45 = arith.subf %35, %42 : vector<8x1xf32>
    %46 = math.exp %45 : vector<8x1xf32>
    %47 = arith.subf %40, %42 : vector<8x1xf32>
    %48 = math.exp %47 : vector<8x1xf32>
    %49 = arith.addf %44, %46 : vector<8x1xf32>
    %50 = arith.addf %49, %48 : vector<8x1xf32>
    %51 = tpu.reciprocal %50 {approx = true} : vector<8x1xf32> -> vector<8x1xf32>
    %52 = arith.mulf %44, %51 : vector<8x1xf32>
    %53 = arith.mulf %46, %51 : vector<8x1xf32>
    %54 = arith.mulf %48, %51 : vector<8x1xf32>
    %55 = vector.broadcast %52 : vector<8x1xf32> to vector<8x64xf32>
    %56 = arith.mulf %55, %13 : vector<8x64xf32>
    %57 = vector.broadcast %53 : vector<8x1xf32> to vector<8x64xf32>
    %58 = arith.mulf %57, %14 : vector<8x64xf32>
    %59 = arith.addf %56, %58 : vector<8x64xf32>
    %60 = vector.broadcast %54 : vector<8x1xf32> to vector<8x64xf32>
    %61 = arith.mulf %60, %15 : vector<8x64xf32>
    %62 = arith.addf %59, %61 : vector<8x64xf32>
    %63 = vector.extract_strided_slice %12 {offsets = [0, 0], sizes = [8, 16], strides = [1, 1]} : vector<8x64xf32> to vector<8x16xf32>
    %64 = vector.extract_strided_slice %62 {offsets = [0, 0], sizes = [8, 16], strides = [1, 1]} : vector<8x64xf32> to vector<8x16xf32>
    %cst_21 = arith.constant dense<0.000000e+00> : vector<8x256xf32>
    %65 = tpu.matmul %63, %19, %cst_21 {dimension_numbers = #tpu.dot_dimension_numbers<[1], [0], [0], [1], [0, 0, 1, 1], [], []>} : vector<8x16xf32>, vector<16x256xf32>, vector<8x256xf32> -> vector<8x256xf32>
    %cst_22 = arith.constant dense<0.000000e+00> : vector<8x256xf32>
    %66 = tpu.matmul %63, %20, %cst_22 {dimension_numbers = #tpu.dot_dimension_numbers<[1], [0], [0], [1], [0, 0, 1, 1], [], []>} : vector<8x16xf32>, vector<16x256xf32>, vector<8x256xf32> -> vector<8x256xf32>
    %cst_23 = arith.constant dense<0.000000e+00> : vector<8x256xf32>
    %67 = tpu.matmul %64, %19, %cst_23 {dimension_numbers = #tpu.dot_dimension_numbers<[1], [0], [0], [1], [0, 0, 1, 1], [], []>} : vector<8x16xf32>, vector<16x256xf32>, vector<8x256xf32> -> vector<8x256xf32>
    %cst_24 = arith.constant dense<0.000000e+00> : vector<8x256xf32>
    %68 = tpu.matmul %64, %20, %cst_24 {dimension_numbers = #tpu.dot_dimension_numbers<[1], [0], [0], [1], [0, 0, 1, 1], [], []>} : vector<8x16xf32>, vector<16x256xf32>, vector<8x256xf32> -> vector<8x256xf32>
    %69 = arith.mulf %65, %68 : vector<8x256xf32>
    %70 = arith.mulf %67, %66 : vector<8x256xf32>
    %71 = arith.addf %69, %70 : vector<8x256xf32>
    %72 = vector.extract_strided_slice %12 {offsets = [0, 16], sizes = [8, 16], strides = [1, 1]} : vector<8x64xf32> to vector<8x16xf32>
    %73 = vector.extract_strided_slice %62 {offsets = [0, 16], sizes = [8, 16], strides = [1, 1]} : vector<8x64xf32> to vector<8x16xf32>
    %cst_25 = arith.constant dense<0.000000e+00> : vector<8x256xf32>
    %74 = tpu.matmul %72, %19, %cst_25 {dimension_numbers = #tpu.dot_dimension_numbers<[1], [0], [0], [1], [0, 0, 1, 1], [], []>} : vector<8x16xf32>, vector<16x256xf32>, vector<8x256xf32> -> vector<8x256xf32>
    %cst_26 = arith.constant dense<0.000000e+00> : vector<8x256xf32>
    %75 = tpu.matmul %72, %20, %cst_26 {dimension_numbers = #tpu.dot_dimension_numbers<[1], [0], [0], [1], [0, 0, 1, 1], [], []>} : vector<8x16xf32>, vector<16x256xf32>, vector<8x256xf32> -> vector<8x256xf32>
    %cst_27 = arith.constant dense<0.000000e+00> : vector<8x256xf32>
    %76 = tpu.matmul %73, %19, %cst_27 {dimension_numbers = #tpu.dot_dimension_numbers<[1], [0], [0], [1], [0, 0, 1, 1], [], []>} : vector<8x16xf32>, vector<16x256xf32>, vector<8x256xf32> -> vector<8x256xf32>
    %cst_28 = arith.constant dense<0.000000e+00> : vector<8x256xf32>
    %77 = tpu.matmul %73, %20, %cst_28 {dimension_numbers = #tpu.dot_dimension_numbers<[1], [0], [0], [1], [0, 0, 1, 1], [], []>} : vector<8x16xf32>, vector<16x256xf32>, vector<8x256xf32> -> vector<8x256xf32>
    %78 = arith.mulf %74, %77 : vector<8x256xf32>
    %79 = arith.mulf %76, %75 : vector<8x256xf32>
    %80 = arith.addf %78, %79 : vector<8x256xf32>
    %81 = arith.addf %71, %80 : vector<8x256xf32>
    %82 = vector.extract_strided_slice %12 {offsets = [0, 32], sizes = [8, 16], strides = [1, 1]} : vector<8x64xf32> to vector<8x16xf32>
    %83 = vector.extract_strided_slice %62 {offsets = [0, 32], sizes = [8, 16], strides = [1, 1]} : vector<8x64xf32> to vector<8x16xf32>
    %cst_29 = arith.constant dense<0.000000e+00> : vector<8x256xf32>
    %84 = tpu.matmul %82, %19, %cst_29 {dimension_numbers = #tpu.dot_dimension_numbers<[1], [0], [0], [1], [0, 0, 1, 1], [], []>} : vector<8x16xf32>, vector<16x256xf32>, vector<8x256xf32> -> vector<8x256xf32>
    %cst_30 = arith.constant dense<0.000000e+00> : vector<8x256xf32>
    %85 = tpu.matmul %82, %20, %cst_30 {dimension_numbers = #tpu.dot_dimension_numbers<[1], [0], [0], [1], [0, 0, 1, 1], [], []>} : vector<8x16xf32>, vector<16x256xf32>, vector<8x256xf32> -> vector<8x256xf32>
    %cst_31 = arith.constant dense<0.000000e+00> : vector<8x256xf32>
    %86 = tpu.matmul %83, %19, %cst_31 {dimension_numbers = #tpu.dot_dimension_numbers<[1], [0], [0], [1], [0, 0, 1, 1], [], []>} : vector<8x16xf32>, vector<16x256xf32>, vector<8x256xf32> -> vector<8x256xf32>
    %cst_32 = arith.constant dense<0.000000e+00> : vector<8x256xf32>
    %87 = tpu.matmul %83, %20, %cst_32 {dimension_numbers = #tpu.dot_dimension_numbers<[1], [0], [0], [1], [0, 0, 1, 1], [], []>} : vector<8x16xf32>, vector<16x256xf32>, vector<8x256xf32> -> vector<8x256xf32>
    %88 = arith.mulf %84, %87 : vector<8x256xf32>
    %89 = arith.mulf %86, %85 : vector<8x256xf32>
    %90 = arith.addf %88, %89 : vector<8x256xf32>
    %91 = arith.addf %81, %90 : vector<8x256xf32>
    %92 = vector.extract_strided_slice %12 {offsets = [0, 48], sizes = [8, 16], strides = [1, 1]} : vector<8x64xf32> to vector<8x16xf32>
    %93 = vector.extract_strided_slice %62 {offsets = [0, 48], sizes = [8, 16], strides = [1, 1]} : vector<8x64xf32> to vector<8x16xf32>
    %cst_33 = arith.constant dense<0.000000e+00> : vector<8x256xf32>
    %94 = tpu.matmul %92, %19, %cst_33 {dimension_numbers = #tpu.dot_dimension_numbers<[1], [0], [0], [1], [0, 0, 1, 1], [], []>} : vector<8x16xf32>, vector<16x256xf32>, vector<8x256xf32> -> vector<8x256xf32>
    %cst_34 = arith.constant dense<0.000000e+00> : vector<8x256xf32>
    %95 = tpu.matmul %92, %20, %cst_34 {dimension_numbers = #tpu.dot_dimension_numbers<[1], [0], [0], [1], [0, 0, 1, 1], [], []>} : vector<8x16xf32>, vector<16x256xf32>, vector<8x256xf32> -> vector<8x256xf32>
    %cst_35 = arith.constant dense<0.000000e+00> : vector<8x256xf32>
    %96 = tpu.matmul %93, %19, %cst_35 {dimension_numbers = #tpu.dot_dimension_numbers<[1], [0], [0], [1], [0, 0, 1, 1], [], []>} : vector<8x16xf32>, vector<16x256xf32>, vector<8x256xf32> -> vector<8x256xf32>
    %cst_36 = arith.constant dense<0.000000e+00> : vector<8x256xf32>
    %97 = tpu.matmul %93, %20, %cst_36 {dimension_numbers = #tpu.dot_dimension_numbers<[1], [0], [0], [1], [0, 0, 1, 1], [], []>} : vector<8x16xf32>, vector<16x256xf32>, vector<8x256xf32> -> vector<8x256xf32>
    %98 = arith.mulf %94, %97 : vector<8x256xf32>
    %99 = arith.mulf %96, %95 : vector<8x256xf32>
    %100 = arith.addf %98, %99 : vector<8x256xf32>
    %101 = arith.addf %91, %100 : vector<8x256xf32>
    %102 = math.absf %101 : vector<8x256xf32>
    %cst_37 = arith.constant 9.99999996E-13 : f32
    %103 = vector.broadcast %cst_37 : f32 to vector<8x256xf32>
    %104 = arith.addf %102, %103 : vector<8x256xf32>
    %105 = math.rsqrt %104 : vector<8x256xf32>
    %106 = arith.mulf %101, %105 : vector<8x256xf32>
    %107 = math.absf %106 : vector<8x256xf32>
    %cst_38 = arith.constant dense<0.000000e+00> : vector<8x16xf32>
    %108 = tpu.matmul %107, %21, %cst_38 {dimension_numbers = #tpu.dot_dimension_numbers<[1], [0], [0], [1], [0, 0, 1, 1], [], []>} : vector<8x256xf32>, vector<256x16xf32>, vector<8x16xf32> -> vector<8x16xf32>
    %cst_39 = arith.constant 1.000000e-07 : f32
    %109 = vector.broadcast %cst_39 : f32 to vector<8x16xf32>
    %110 = arith.addf %108, %109 : vector<8x16xf32>
    %111 = tpu.reciprocal %110 {approx = true} : vector<8x16xf32> -> vector<8x16xf32>
    %cst_40 = arith.constant dense<0.000000e+00> : vector<8x256xf32>
    %112 = tpu.matmul %111, %19, %cst_40 {dimension_numbers = #tpu.dot_dimension_numbers<[1], [0], [0], [1], [0, 0, 1, 1], [], []>} : vector<8x16xf32>, vector<16x256xf32>, vector<8x256xf32> -> vector<8x256xf32>
    %113 = arith.mulf %106, %112 : vector<8x256xf32>
    %114 = vector.extract_strided_slice %12 {offsets = [0, 0], sizes = [8, 16], strides = [1, 1]} : vector<8x64xf32> to vector<8x16xf32>
    %cst_41 = arith.constant dense<0.000000e+00> : vector<8x256xf32>
    %115 = tpu.matmul %114, %20, %cst_41 {dimension_numbers = #tpu.dot_dimension_numbers<[1], [0], [0], [1], [0, 0, 1, 1], [], []>} : vector<8x16xf32>, vector<16x256xf32>, vector<8x256xf32> -> vector<8x256xf32>
    %116 = arith.mulf %115, %113 : vector<8x256xf32>
    %cst_42 = arith.constant dense<0.000000e+00> : vector<8x16xf32>
    %117 = tpu.matmul %116, %21, %cst_42 {dimension_numbers = #tpu.dot_dimension_numbers<[1], [0], [0], [1], [0, 0, 1, 1], [], []>} : vector<8x256xf32>, vector<256x16xf32>, vector<8x16xf32> -> vector<8x16xf32>
    %118 = vector.extract_strided_slice %12 {offsets = [0, 16], sizes = [8, 16], strides = [1, 1]} : vector<8x64xf32> to vector<8x16xf32>
    %cst_43 = arith.constant dense<0.000000e+00> : vector<8x256xf32>
    %119 = tpu.matmul %118, %20, %cst_43 {dimension_numbers = #tpu.dot_dimension_numbers<[1], [0], [0], [1], [0, 0, 1, 1], [], []>} : vector<8x16xf32>, vector<16x256xf32>, vector<8x256xf32> -> vector<8x256xf32>
    %120 = arith.mulf %119, %113 : vector<8x256xf32>
    %cst_44 = arith.constant dense<0.000000e+00> : vector<8x16xf32>
    %121 = tpu.matmul %120, %21, %cst_44 {dimension_numbers = #tpu.dot_dimension_numbers<[1], [0], [0], [1], [0, 0, 1, 1], [], []>} : vector<8x256xf32>, vector<256x16xf32>, vector<8x16xf32> -> vector<8x16xf32>
    %122 = vector.extract_strided_slice %12 {offsets = [0, 32], sizes = [8, 16], strides = [1, 1]} : vector<8x64xf32> to vector<8x16xf32>
    %cst_45 = arith.constant dense<0.000000e+00> : vector<8x256xf32>
    %123 = tpu.matmul %122, %20, %cst_45 {dimension_numbers = #tpu.dot_dimension_numbers<[1], [0], [0], [1], [0, 0, 1, 1], [], []>} : vector<8x16xf32>, vector<16x256xf32>, vector<8x256xf32> -> vector<8x256xf32>
    %124 = arith.mulf %123, %113 : vector<8x256xf32>
    %cst_46 = arith.constant dense<0.000000e+00> : vector<8x16xf32>
    %125 = tpu.matmul %124, %21, %cst_46 {dimension_numbers = #tpu.dot_dimension_numbers<[1], [0], [0], [1], [0, 0, 1, 1], [], []>} : vector<8x256xf32>, vector<256x16xf32>, vector<8x16xf32> -> vector<8x16xf32>
    %126 = vector.extract_strided_slice %12 {offsets = [0, 48], sizes = [8, 16], strides = [1, 1]} : vector<8x64xf32> to vector<8x16xf32>
    %cst_47 = arith.constant dense<0.000000e+00> : vector<8x256xf32>
    %127 = tpu.matmul %126, %20, %cst_47 {dimension_numbers = #tpu.dot_dimension_numbers<[1], [0], [0], [1], [0, 0, 1, 1], [], []>} : vector<8x16xf32>, vector<16x256xf32>, vector<8x256xf32> -> vector<8x256xf32>
    %128 = arith.mulf %127, %113 : vector<8x256xf32>
    %cst_48 = arith.constant dense<0.000000e+00> : vector<8x16xf32>
    %129 = tpu.matmul %128, %21, %cst_48 {dimension_numbers = #tpu.dot_dimension_numbers<[1], [0], [0], [1], [0, 0, 1, 1], [], []>} : vector<8x256xf32>, vector<256x16xf32>, vector<8x16xf32> -> vector<8x16xf32>
    %130 = tpu.concatenate %117, %121, %125, %129 in 1 : vector<8x16xf32>, vector<8x16xf32>, vector<8x16xf32>, vector<8x16xf32> -> vector<8x64xf32>
    %131 = arith.truncf %130 : vector<8x64xf32> to vector<8x64xbf16>
    %cst_49 = arith.constant dense<0.000000e+00> : vector<8x32xf32>
    %132 = tpu.matmul %131, %17, %cst_49 {dimension_numbers = #tpu.dot_dimension_numbers<[1], [0], [0], [1], [0, 0, 1, 1], [], []>} : vector<8x64xbf16>, vector<64x32xbf16>, vector<8x32xf32> -> vector<8x32xf32>
    %133 = vector.broadcast %18 : vector<1x32xf32> to vector<8x32xf32>
    %134 = arith.addf %132, %133 : vector<8x32xf32>
    %c0_50 = arith.constant 0 : index
    %c0_51 = arith.constant 0 : index
    %135 = vector.load %arg10[%c0_50, %c0_51] : memref<8x32xf32, #tpu.memory_space<vmem>>, vector<8x32xf32>
    tpu.vector_store %arg10[%c0_50, %c0_51], %134 {strides = array<i32>} : memref<8x32xf32, #tpu.memory_space<vmem>>, vector<8x32xf32>,
    %136 = tpu.iota {dimensions = array<i32: 0>} : vector<8x1xi32>
    %c8_i32 = arith.constant 8 : i32
    %137 = arith.muli %arg0, %c8_i32 : i32
    %138 = vector.broadcast %137 : i32 to vector<8x1xi32>
    %139 = arith.addi %136, %138 : vector<8x1xi32>
    %c2_i32 = arith.constant 2 : i32
    %140 = vector.broadcast %c2_i32 : i32 to vector<8x1xi32>
    %141 = arith.cmpi slt, %139, %140 : vector<8x1xi32>
    %142 = arith.extui %141 : vector<8x1xi1> to vector<8x1xi32>
    %143 = arith.sitofp %142 : vector<8x1xi32> to vector<8x1xf32>
    %144 = vector.broadcast %143 : vector<8x1xf32> to vector<8x32xf32>
    %145 = arith.mulf %134, %144 : vector<8x32xf32>
    %cst_52 = arith.constant dense<0.000000e+00> : vector<32xf32>
    %146 = vector.multi_reduction <add>, %145, %cst_52 [0] : vector<8x32xf32> to vector<32xf32>
    %147 = vector.shape_cast %146 : vector<32xf32> to vector<1x32xf32>
    %148 = arith.mulf %145, %145 : vector<8x32xf32>
    %cst_53 = arith.constant dense<0.000000e+00> : vector<32xf32>
    %149 = vector.multi_reduction <add>, %148, %cst_53 [0] : vector<8x32xf32> to vector<32xf32>
    %150 = vector.shape_cast %149 : vector<32xf32> to vector<1x32xf32>
    %151 = tpu.concatenate %147, %150 in 0 : vector<1x32xf32>, vector<1x32xf32> -> vector<2x32xf32>
    %152 = vector.shape_cast %151 : vector<2x32xf32> to vector<1x2x32xf32>
    %c0_54 = arith.constant 0 : index
    %c0_55 = arith.constant 0 : index
    %c0_56 = arith.constant 0 : index
    %153 = vector.load %arg11[%c0_54, %c0_55, %c0_56] : memref<1x2x32xf32, #tpu.memory_space<vmem>>, vector<1x2x32xf32>
    tpu.vector_store %arg11[%c0_54, %c0_55, %c0_56], %152 {strides = array<i32>} : memref<1x2x32xf32, #tpu.memory_space<vmem>>, vector<1x2x32xf32>,
    return
  }
  func.func @transform_0(%arg0: i32) -> (i32, i32) {
    %c0_i32 = arith.constant 0 : i32
    %c0_i32_0 = arith.constant 0 : i32
    return %arg0, %c0_i32 : i32, i32
  }
  func.func @transform_1(%arg0: i32) -> (i32, i32) {
    %c0_i32 = arith.constant 0 : i32
    %c0_i32_0 = arith.constant 0 : i32
    %c0_i32_1 = arith.constant 0 : i32
    return %c0_i32, %c0_i32_0 : i32, i32
  }
  func.func @transform_2(%arg0: i32) -> (i32, i32) {
    %c0_i32 = arith.constant 0 : i32
    %c0_i32_0 = arith.constant 0 : i32
    %c0_i32_1 = arith.constant 0 : i32
    return %c0_i32, %c0_i32_0 : i32, i32
  }
  func.func @transform_3(%arg0: i32) -> (i32, i32) {
    %c0_i32 = arith.constant 0 : i32
    %c0_i32_0 = arith.constant 0 : i32
    %c0_i32_1 = arith.constant 0 : i32
    return %c0_i32, %c0_i32_0 : i32, i32
  }
  func.func @transform_4(%arg0: i32) -> (i32, i32) {
    %c0_i32 = arith.constant 0 : i32
    %c0_i32_0 = arith.constant 0 : i32
    %c0_i32_1 = arith.constant 0 : i32
    return %c0_i32, %c0_i32_0 : i32, i32
  }
  func.func @transform_5(%arg0: i32) -> (i32, i32) {
    %c0_i32 = arith.constant 0 : i32
    %c0_i32_0 = arith.constant 0 : i32
    %c0_i32_1 = arith.constant 0 : i32
    return %c0_i32, %c0_i32_0 : i32, i32
  }
  func.func @transform_6(%arg0: i32) -> (i32, i32) {
    %c0_i32 = arith.constant 0 : i32
    %c0_i32_0 = arith.constant 0 : i32
    %c0_i32_1 = arith.constant 0 : i32
    return %c0_i32, %c0_i32_0 : i32, i32
  }
  func.func @transform_7(%arg0: i32) -> (i32, i32) {
    %c0_i32 = arith.constant 0 : i32
    %c0_i32_0 = arith.constant 0 : i32
    %c0_i32_1 = arith.constant 0 : i32
    return %c0_i32, %c0_i32_0 : i32, i32
  }
  func.func @transform_8(%arg0: i32) -> (i32, i32) {
    %c0_i32 = arith.constant 0 : i32
    %c0_i32_0 = arith.constant 0 : i32
    %c0_i32_1 = arith.constant 0 : i32
    return %c0_i32, %c0_i32_0 : i32, i32
  }
  func.func @transform_9(%arg0: i32) -> (i32, i32) {
    %c0_i32 = arith.constant 0 : i32
    %c0_i32_0 = arith.constant 0 : i32
    return %arg0, %c0_i32 : i32, i32
  }
  func.func @transform_10(%arg0: i32) -> (i32, i32, i32) {
    %c0_i32 = arith.constant 0 : i32
    %c0_i32_0 = arith.constant 0 : i32
    %c0_i32_1 = arith.constant 0 : i32
    return %arg0, %c0_i32, %c0_i32_0 : i32, i32, i32
  }
}

</mosaic_0001>

<llo_original>
// kernel: squeeze.4
$region0: #{squeeze.4}
  %s0 = inlined_call_operand.vmem [shape: f32[256], index: 0, kind: input, shape index: {}]
  %s1 = inlined_call_operand.vmem [shape: f32[4,4,16], index: 1, kind: output, shape index: {}]
  $region1: #{squeeze.4} parent=0
    #allocation0 [shape = 'u8[16384]{0}', space=vmem, size = 0x4000, scoped, tag = 'scoped mem for output reshape']
    #allocation1 [shape = 'u8[4096]{0}', space=vmem, size = 0x1000, scoped, tag = 'scoped mem for input reshape']
    %s3 = ssub.s32 4, 1
    %v4 = vld [vmem:[%s0] sm:%s3]
    %5 = vst [vmem:[#allocation1] sm:%s3] %v4
    %v6 = vld [vmem:[#allocation1] sm:$0x3]
    %vm7 = vcmask 130048
    %8 = vst.msk [vmem:[#allocation0] ss:$16 sm:$0x3] %vm7, %v6
    %v9 = vld [vmem:[#allocation1] sm:$0x3]
    %10 = vrot.lane.b32.xlu0 %v9, 112
    %v11 = vpop.permute.xlu0 %10
    %vm12 = vcmask 130048
    %s13 = scalar_lea.vmem [#allocation0], 1
    %14 = vst.msk [vmem:[%s13] ss:$16 sm:$0x3] %vm12, %v11
    %v15 = vld [vmem:[#allocation1] sm:$0x3]
    %16 = vrot.lane.b32.xlu0 %v15, 96
    %v17 = vpop.permute.xlu0 %16
    %vm18 = vcmask 130048
    %s19 = scalar_lea.vmem [#allocation0], 2
    %20 = vst.msk [vmem:[%s19] ss:$16 sm:$0x3] %vm18, %v17
    %v21 = vld [vmem:[#allocation1] sm:$0x3]
    %22 = vrot.lane.b32.xlu0 %v21, 80
    %v23 = vpop.permute.xlu0 %22
    %vm24 = vcmask 130048
    %s25 = scalar_lea.vmem [#allocation0], 3
    %26 = vst.msk [vmem:[%s25] ss:$16 sm:$0x3] %vm24, %v23
    %v27 = vld [vmem:[#allocation1] sm:$0x3]
    %28 = vrot.lane.b32.xlu0 %v27, 64
    %v29 = vpop.permute.xlu0 %28
    %vm30 = vcmask 130048
    %s31 = scalar_lea.vmem [#allocation0], 8
    %32 = vst.msk [vmem:[%s31] ss:$16 sm:$0x3] %vm30, %v29
    %v33 = vld [vmem:[#allocation1] sm:$0x3]
    %34 = vrot.lane.b32.xlu0 %v33, 48
    %v35 = vpop.permute.xlu0 %34
    %vm36 = vcmask 130048
    %s37 = scalar_lea.vmem [#allocation0], 9
    %38 = vst.msk [vmem:[%s37] ss:$16 sm:$0x3] %vm36, %v35
    %v39 = vld [vmem:[#allocation1] sm:$0x3]
    %40 = vrot.lane.b32.xlu0 %v39, 32
    %v41 = vpop.permute.xlu0 %40
    %vm42 = vcmask 130048
    %s43 = scalar_lea.vmem [#allocation0], 10
    %44 = vst.msk [vmem:[%s43] ss:$16 sm:$0x3] %vm42, %v41
    %v45 = vld [vmem:[#allocation1] sm:$0x3]
    %46 = vrot.lane.b32.xlu0 %v45, 16
    %v47 = vpop.permute.xlu0 %46
    %vm48 = vcmask 130048
    %s49 = scalar_lea.vmem [#allocation0], 11
    %50 = vst.msk [vmem:[%s49] ss:$16 sm:$0x3] %vm48, %v47
    %s52 = ssub.s32 16, 1
    %v53 = vld [vmem:[#allocation0] sm:%s52]
    %s55 = ssub.s32 16, 1
    %56 = vst [vmem:[%s1] sm:%s55] %v53
    %s57 = scalar_lea.vmem [#allocation0], 8
    %v58 = vld [vmem:[%s57] sm:%s52]
    %s60 = ssub.s32 16, 1
    %s61 = scalar_lea.vmem %s1, 4
    %62 = vst [vmem:[%s61] sm:%s60] %v58
    %s63 = scalar_lea.vmem [#allocation0], 16
    %v64 = vld [vmem:[%s63] sm:%s52]
    %s66 = ssub.s32 16, 1
    %s67 = scalar_lea.vmem %s1, 8
    %68 = vst [vmem:[%s67] sm:%s66] %v64
    %s69 = scalar_lea.vmem [#allocation0], 24
    %v70 = vld [vmem:[%s69] sm:%s52]
    %s72 = ssub.s32 16, 1
    %s73 = scalar_lea.vmem %s1, 12
    %74 = vst [vmem:[%s73] sm:%s72] %v70

// kernel: afgn_forward.5
$region0: #{afgn_forward.5}
  #allocation0 [shape = 'u32[]', space=smem, size = 0x4, offset = 0x4, fixed_abs, tag = 'smem constant byte address 0x4 - core index']
  #allocation1 [shape = 'u32[72,128]{1,0:T(1,128)}', space=vmem, size = 0x9000, scoped, tag = 'internal scratch']
  %s0 = inlined_call_operand.vmem [shape: f32[8,32], index: 0, kind: input, shape index: {}]
  %s1 = inlined_call_operand.vmem [shape: f32[1,32], index: 1, kind: input, shape index: {}]
  %s2 = inlined_call_operand.vmem [shape: f32[1,32], index: 2, kind: input, shape index: {}]
  %s3 = inlined_call_operand.vmem [shape: bf16[32,8], index: 3, kind: input, shape index: {}]
  %s4 = inlined_call_operand.vmem [shape: f32[1,8], index: 4, kind: input, shape index: {}]
  %s5 = inlined_call_operand.vmem [shape: f32[8,8], index: 5, kind: output, shape index: {}]
  %s6 = sld [smem:[#allocation0]]
  $region30: #{afgn_forward.5} parent=0
    _
  %s8 = ssub.s32 1, %s6
  %s9 = scalar_select 0, %s8, %s6
  // Predicated region
  $region2: #{afgn_forward.5} parent=0 // pred_check
    _
  $region3: #{afgn_forward.5} parent=0 // pred_check_branch
    %11 = sbr.rel (0) target = $region5
  $region4: #{afgn_forward.5} parent=0 // pred_region
    _
  $region5: #{afgn_forward.5} parent=0 // pred_fallthru
    _
  // Predicated region
  $region6: #{afgn_forward.5} parent=0 // pred_check
    _
  $region7: #{afgn_forward.5} parent=0 // pred_check_branch
    %13 = sbr.rel (0) target = $region9
  $region8: #{afgn_forward.5} parent=0 // pred_region
    _
  $region9: #{afgn_forward.5} parent=0 // pred_fallthru
    _
  // Predicated region
  $region10: #{afgn_forward.5} parent=0 // pred_check
    _
  $region11: #{afgn_forward.5} parent=0 // pred_check_branch
    %15 = sbr.rel (0) target = $region13
  $region12: #{afgn_forward.5} parent=0 // pred_region
    _
  $region13: #{afgn_forward.5} parent=0 // pred_fallthru
    _
  // Predicated region
  $region14: #{afgn_forward.5} parent=0 // pred_check
    _
  $region15: #{afgn_forward.5} parent=0 // pred_check_branch
    %17 = sbr.rel (0) target = $region17
  $region16: #{afgn_forward.5} parent=0 // pred_region
    _
  $region17: #{afgn_forward.5} parent=0 // pred_fallthru
    _
  // Predicated region
  $region18: #{afgn_forward.5} parent=0 // pred_check
    _
  $region19: #{afgn_forward.5} parent=0 // pred_check_branch
    %19 = sbr.rel (0) target = $region21
  $region20: #{afgn_forward.5} parent=0 // pred_region
    _
  $region21: #{afgn_forward.5} parent=0 // pred_fallthru
    _
  %v21 = vld [vmem:[%s0] sm:$0xff]
  %v22 = vld [vmem:[%s1] sm:$0x1]
  %v24 = vperm.slane %v22, 0
  %v26 = vmul.f32 %v21, %v24
  %v27 = vld [vmem:[%s2] sm:$0x1]
  %v29 = vperm.slane %v27, 0
  %v31 = vadd.f32 %v26, %v29
  %v32 = vand.u32 2147483647, %v31
  %v33 = vadd.f32 %v32, 1.0
  %v34 = vrcp.pop %v33
  %v35 = vmul.f32 %v31, %v34
  %v36 = vpack.c.bf16 %v35, %v35
  %v37 = vld [vmem:[%s3] sm:$0xf]
  %v38 = vld [vmem:[%s3 + $0x4] sm:$0xf]
  %v39 = vld [vmem:[%s3 + $0x8] sm:$0xf]
  %v40 = vld [vmem:[%s3 + $0xc] sm:$0xf]
  %v41 = vld [vmem:[%s4] sm:$0x1]
  %v43 = vperm.slane %v41, 0
  %v49 = vunpack.c.l.b16 %v37
  %v50 = vunpack.c.l.b16 %v38
  %v51 = vunpack.c.l.b16 %v39
  %v52 = vunpack.c.l.b16 %v40
  %v53 = vpack.c.b16 %v50, %v49
  %v54 = vpack.c.b16 %v52, %v51
  %vm57 = vcmask 261120
  %v59 = vsel %vm57, %v36, 0
  %61 = vmatpush.bf16.msra.mxu0 0
  %62 = vmatpush.bf16.msra.mxu0 0
  %63 = vmatpush.bf16.msra.mxu0 0
  %64 = vmatpush.bf16.msra.mxu0 0
  %65 = vmatpush.bf16.msra.mxu0 0
  %66 = vmatpush.bf16.msra.mxu0 0
  %67 = vmatpush.bf16.msra.mxu0 %v54
  %68 = vmatpush.bf16.msra.mxu0 %v53
  %69 = vmatmul.bf16.gmra.mxu0 %v59
  %v70 = vpop.f32.mrf.mxu0
  %v71 = vadd.f32 %v43, %v70
  %v72 = vpop.f32.mrf.mxu0
  %73 = vdwg.mxu0
  %vm74 = vcmask 64512
  %75 = vst.msk [vmem:[%s5] sm:$0xff] %vm74, %v71
  // Predicated region
  $region22: #{afgn_forward.5} parent=0 // pred_check
    _
  $region23: #{afgn_forward.5} parent=0 // pred_check_branch
    %77 = sbr.rel (0) target = $region25
  $region24: #{afgn_forward.5} parent=0 // pred_region
    _
  $region25: #{afgn_forward.5} parent=0 // pred_fallthru
    _
  // Predicated region
  $region26: #{afgn_forward.5} parent=0 // pred_check
    _
  $region27: #{afgn_forward.5} parent=0 // pred_check_branch
    %79 = sbr.rel (0) target = $region29
  $region28: #{afgn_forward.5} parent=0 // pred_region
    _
  $region29: #{afgn_forward.5} parent=0 // pred_fallthru
    _

// kernel: afgn_forward.4
$region0: #{afgn_forward.4}
  #allocation0 [shape = 'u32[]', space=smem, size = 0x4, offset = 0x4, fixed_abs, tag = 'smem constant byte address 0x4 - core index']
  #allocation1 [shape = 'u32[72,128]{1,0:T(1,128)}', space=vmem, size = 0x9000, scoped, tag = 'internal scratch']
  %s0 = inlined_call_operand.vmem [shape: f32[8,256], index: 0, kind: input, shape index: {}]
  %s1 = inlined_call_operand.vmem [shape: f32[1,256], index: 1, kind: input, shape index: {}]
  %s2 = inlined_call_operand.vmem [shape: f32[1,256], index: 2, kind: input, shape index: {}]
  %s3 = inlined_call_operand.vmem [shape: f32[1,64], index: 3, kind: input, shape index: {}]
  %s4 = inlined_call_operand.vmem [shape: bf16[64,32], index: 4, kind: input, shape index: {}]
  %s5 = inlined_call_operand.vmem [shape: f32[1,32], index: 5, kind: input, shape index: {}]
  %s6 = inlined_call_operand.vmem [shape: f32[16,256], index: 6, kind: input, shape index: {}]
  %s7 = inlined_call_operand.vmem [shape: f32[16,256], index: 7, kind: input, shape index: {}]
  %s8 = inlined_call_operand.vmem [shape: f32[256,16], index: 8, kind: input, shape index: {}]
  %s9 = inlined_call_operand.vmem [shape: f32[8,32], index: 9, kind: output, shape index: {0}]
  %s10 = inlined_call_operand.vmem [shape: f32[1,2,32], index: 10, kind: output, shape index: {1}]
  %11 = xla_tuple %s9, %s10
  %s12 = sld [smem:[#allocation0]]
  $region54: #{afgn_forward.4} parent=0
    _
  %s14 = ssub.s32 1, %s12
  %s15 = scalar_select 0, %s14, %s12
  // Predicated region
  $region2: #{afgn_forward.4} parent=0 // pred_check
    _
  $region3: #{afgn_forward.4} parent=0 // pred_check_branch
    %17 = sbr.rel (0) target = $region5
  $region4: #{afgn_forward.4} parent=0 // pred_region
    _
  $region5: #{afgn_forward.4} parent=0 // pred_fallthru
    _
  // Predicated region
  $region6: #{afgn_forward.4} parent=0 // pred_check
    _
  $region7: #{afgn_forward.4} parent=0 // pred_check_branch
    %19 = sbr.rel (0) target = $region9
  $region8: #{afgn_forward.4} parent=0 // pred_region
    _
  $region9: #{afgn_forward.4} parent=0 // pred_fallthru
    _
  // Predicated region
  $region10: #{afgn_forward.4} parent=0 // pred_check
    _
  $region11: #{afgn_forward.4} parent=0 // pred_check_branch
    %21 = sbr.rel (0) target = $region13
  $region12: #{afgn_forward.4} parent=0 // pred_region
    _
  $region13: #{afgn_forward.4} parent=0 // pred_fallthru
    _
  // Predicated region
  $region14: #{afgn_forward.4} parent=0 // pred_check
    _
  $region15: #{afgn_forward.4} parent=0 // pred_check_branch
    %23 = sbr.rel (0) target = $region17
  $region16: #{afgn_forward.4} parent=0 // pred_region
    _
  $region17: #{afgn_forward.4} parent=0 // pred_fallthru
    _
  // Predicated region
  $region18: #{afgn_forward.4} parent=0 // pred_check
    _
  $region19: #{afgn_forward.4} parent=0 // pred_check_branch
    %25 = sbr.rel (0) target = $region21
  $region20: #{afgn_forward.4} parent=0 // pred_region
    _
  $region21: #{afgn_forward.4} parent=0 // pred_fallthru
    _
  // Predicated region
  $region22: #{afgn_forward.4} parent=0 // pred_check
    _
  $region23: #{afgn_forward.4} parent=0 // pred_check_branch
    %27 = sbr.rel (0) target = $region25
  $region24: #{afgn_forward.4} parent=0 // pred_region
    _
  $region25: #{afgn_forward.4} parent=0 // pred_fallthru
    _
  // Predicated region
  $region26: #{afgn_forward.4} parent=0 // pred_check
    _
  $region27: #{afgn_forward.4} parent=0 // pred_check_branch
    %29 = sbr.rel (0) target = $region29
  $region28: #{afgn_forward.4} parent=0 // pred_region
    _
  $region29: #{afgn_forward.4} parent=0 // pred_fallthru
    _
  // Predicated region
  $region30: #{afgn_forward.4} parent=0 // pred_check
    _
  $region31: #{afgn_forward.4} parent=0 // pred_check_branch
    %31 = sbr.rel (0) target = $region33
  $region32: #{afgn_forward.4} parent=0 // pred_region
    _
  $region33: #{afgn_forward.4} parent=0 // pred_fallthru
    _
  // Predicated region
  $region34: #{afgn_forward.4} parent=0 // pred_check
    _
  $region35: #{afgn_forward.4} parent=0 // pred_check_branch
    %33 = sbr.rel (0) target = $region37
  $region36: #{afgn_forward.4} parent=0 // pred_region
    _
  $region37: #{afgn_forward.4} parent=0 // pred_fallthru
    _
  %v35 = vld [vmem:[%s0] sm:$0xff]
  %v36 = vld [vmem:[%s0 + $0x8] sm:$0xff]
  %v37 = vld [vmem:[%s1] sm:$0x3]
  %v39 = vperm.slane %v37, 0
  %v40 = vperm.slane %v37, 1
  %v43 = vmul.f32 %v35, %v39
  %v44 = vmul.f32 %v36, %v40
  %v45 = vld [vmem:[%s2] sm:$0x3]
  %v47 = vperm.slane %v45, 0
  %v48 = vperm.slane %v45, 1
  %v51 = vadd.f32 %v43, %v47
  %v52 = vadd.f32 %v44, %v48
  %v53 = vand.u32 2147483647, %v51
  %v54 = vand.u32 2147483647, %v52
  %v55 = vadd.f32 %v53, 1.0
  %v56 = vadd.f32 %v54, 1.0
  %v57 = vrcp.pop %v55
  %v58 = vrcp.pop %v56
  %v59 = vmul.f32 %v51, %v57
  %v60 = vmul.f32 %v52, %v58
  %v61 = vld [vmem:[%s3] sm:$0x1]
  %v62 = vld [vmem:[%s4] sm:$0xf]
  %v63 = vld [vmem:[%s4 + $0x4] sm:$0xf]
  %v64 = vld [vmem:[%s4 + $0x8] sm:$0xf]
  %v65 = vld [vmem:[%s4 + $0xc] sm:$0xf]
  %v66 = vld [vmem:[%s4 + $0x10] sm:$0xf]
  %v67 = vld [vmem:[%s4 + $0x14] sm:$0xf]
  %v68 = vld [vmem:[%s4 + $0x18] sm:$0xf]
  %v69 = vld [vmem:[%s4 + $0x1c] sm:$0xf]
  %v70 = vld [vmem:[%s5] sm:$0x1]
  %v71 = vld [vmem:[%s6] sm:$0xff]
  %v72 = vld [vmem:[%s6 + $0x8] sm:$0xff]
  %v73 = vld [vmem:[%s6 + $0x10] sm:$0xff]
  %v74 = vld [vmem:[%s6 + $0x18] sm:$0xff]
  %v75 = vld [vmem:[%s7] sm:$0xff]
  %v76 = vld [vmem:[%s7 + $0x8] sm:$0xff]
  %v77 = vld [vmem:[%s7 + $0x10] sm:$0xff]
  %v78 = vld [vmem:[%s7 + $0x18] sm:$0xff]
  %v79 = vld [vmem:[%s8] sm:$0xff]
  %v80 = vld [vmem:[%s8 + $0x8] sm:$0xff]
  %v81 = vld [vmem:[%s8 + $0x10] sm:$0xff]
  %v82 = vld [vmem:[%s8 + $0x18] sm:$0xff]
  %v83 = vld [vmem:[%s8 + $0x20] sm:$0xff]
  %v84 = vld [vmem:[%s8 + $0x28] sm:$0xff]
  %v85 = vld [vmem:[%s8 + $0x30] sm:$0xff]
  %v86 = vld [vmem:[%s8 + $0x38] sm:$0xff]
  %v87 = vld [vmem:[%s8 + $0x40] sm:$0xff]
  %v88 = vld [vmem:[%s8 + $0x48] sm:$0xff]
  %v89 = vld [vmem:[%s8 + $0x50] sm:$0xff]
  %v90 = vld [vmem:[%s8 + $0x58] sm:$0xff]
  %v91 = vld [vmem:[%s8 + $0x60] sm:$0xff]
  %v92 = vld [vmem:[%s8 + $0x68] sm:$0xff]
  %v93 = vld [vmem:[%s8 + $0x70] sm:$0xff]
  %v94 = vld [vmem:[%s8 + $0x78] sm:$0xff]
  %v95 = vld [vmem:[%s8 + $0x80] sm:$0xff]
  %v96 = vld [vmem:[%s8 + $0x88] sm:$0xff]
  %v97 = vld [vmem:[%s8 + $0x90] sm:$0xff]
  %v98 = vld [vmem:[%s8 + $0x98] sm:$0xff]
  %v99 = vld [vmem:[%s8 + $0xa0] sm:$0xff]
  %v100 = vld [vmem:[%s8 + $0xa8] sm:$0xff]
  %v101 = vld [vmem:[%s8 + $0xb0] sm:$0xff]
  %v102 = vld [vmem:[%s8 + $0xb8] sm:$0xff]
  %v103 = vld [vmem:[%s8 + $0xc0] sm:$0xff]
  %v104 = vld [vmem:[%s8 + $0xc8] sm:$0xff]
  %v105 = vld [vmem:[%s8 + $0xd0] sm:$0xff]
  %v106 = vld [vmem:[%s8 + $0xd8] sm:$0xff]
  %v107 = vld [vmem:[%s8 + $0xe0] sm:$0xff]
  %v108 = vld [vmem:[%s8 + $0xe8] sm:$0xff]
  %v109 = vld [vmem:[%s8 + $0xf0] sm:$0xff]
  %v110 = vld [vmem:[%s8 + $0xf8] sm:$0xff]
  %v112 = vperm.slane %v61, 0
  %v114 = vmul.f32 %v59, %v112
  %vm115 = vcmask 523264
  %v116 = vsel %vm115, %v114, 0.0
  %117 = vadd.xlane.f32.xlu0 %v116
  %v118 = vpop.xlane.xlu0 %117
  %119 = vrot.lane.b32.xlu0 %v112, 64
  %v120 = vpop.permute.xlu0 %119
  %v122 = vmul.f32 %v59, %v120
  %124 = vrot.lane.b32.xlu0 %v122, 64
  %v125 = vpop.permute.xlu0 %124
  %v127 = vsel %vm115, %v125, 0.0
  %128 = vadd.xlane.f32.xlu0 %v127
  %v129 = vpop.xlane.xlu0 %128
  %v130 = vadd.f32 %v118, %v129
  %v131 = vmul.f32 %v60, %v112
  %v132 = vsel %vm115, %v131, 0.0
  %133 = vadd.xlane.f32.xlu0 %v132
  %v134 = vpop.xlane.xlu0 %133
  %v135 = vadd.f32 %v118, %v134
  %v136 = vmul.f32 %v60, %v120
  %138 = vrot.lane.b32.xlu0 %v136, 64
  %v139 = vpop.permute.xlu0 %138
  %v141 = vsel %vm115, %v139, 0.0
  %142 = vadd.xlane.f32.xlu0 %v141
  %v143 = vpop.xlane.xlu0 %142
  %v144 = vadd.f32 %v118, %v143
  %v145 = vmax.f32 %v130, %v135
  %v146 = vmax.f32 %v145, %v144
  %v147 = vsub.f32 %v130, %v146
  %v148 = vmul.f32 %v147, 1.442695
  %v149 = vpow.pop %v148
  %v150 = vsub.f32 %v135, %v146
  %v151 = vmul.f32 %v150, 1.442695
  %v152 = vpow.pop %v151
  %v153 = vsub.f32 %v144, %v146
  %v154 = vmul.f32 %v153, 1.442695
  %v155 = vpow.pop %v154
  %v156 = vadd.f32 %v149, %v152
  %v157 = vadd.f32 %v156, %v155
  %v158 = vrcp.pop %v157
  %v159 = vmul.f32 %v149, %v158
  %v160 = vmul.f32 %v152, %v158
  %v161 = vmul.f32 %v155, %v158
  %v162 = vmul.f32 %v159, %v59
  %v163 = vmul.f32 %v160, %v60
  %165 = vrot.lane.b32.xlu0 %v163, 64
  %v166 = vpop.permute.xlu0 %165
  %v168 = vadd.f32 %v162, %v166
  %v169 = vmul.f32 %v161, %v60
  %v170 = vadd.f32 %v168, %v169
  %vm171 = vcmask 130048
  %v173 = vsel %vm171, %v59, 0
  %175 = vmatpush.msra.mxu0 0.0
  %176 = vmatpush.msra.mxu0 0.0
  %177 = vmatpush.msra.mxu0 0.0
  %178 = vmatpush.msra.mxu0 0.0
  %179 = vmatpush.msra.mxu0 0.0
  %180 = vmatpush.msra.mxu0 0.0
  %181 = vmatpush.msra.mxu0 0.0
  %182 = vmatpush.msra.mxu0 0.0
  %183 = vmatpush.msra.mxu0 0.0
  %184 = vmatpush.msra.mxu0 0.0
  %185 = vmatpush.msra.mxu0 0.0
  %186 = vmatpush.msra.mxu0 0.0
  %187 = vmatpush.msra.mxu0 0.0
  %188 = vmatpush.msra.mxu0 0.0
  %189 = vmatpush.msra.mxu0 %v73
  %190 = vmatpush.msra.mxu0 %v71
  %191 = vmatmul.f32.gmra.mxu0 %v173
  %v192 = vpop.f32.mrf.mxu0
  %v193 = vadd.f32 0.0, %v192
  %194 = vdwg.mxu0
  %195 = vmatpush.msra.mxu0 0.0
  %196 = vmatpush.msra.mxu0 0.0
  %197 = vmatpush.msra.mxu0 0.0
  %198 = vmatpush.msra.mxu0 0.0
  %199 = vmatpush.msra.mxu0 0.0
  %200 = vmatpush.msra.mxu0 0.0
  %201 = vmatpush.msra.mxu0 0.0
  %202 = vmatpush.msra.mxu0 0.0
  %203 = vmatpush.msra.mxu0 0.0
  %204 = vmatpush.msra.mxu0 0.0
  %205 = vmatpush.msra.mxu0 0.0
  %206 = vmatpush.msra.mxu0 0.0
  %207 = vmatpush.msra.mxu0 0.0
  %208 = vmatpush.msra.mxu0 0.0
  %209 = vmatpush.msra.mxu0 %v74
  %210 = vmatpush.msra.mxu0 %v72
  %211 = vmatmul.f32.gmra.mxu0 %v173
  %v212 = vpop.f32.mrf.mxu0
  %v213 = vadd.f32 0.0, %v212
  %214 = vdwg.mxu0
  %215 = vmatpush.msra.mxu0 0.0
  %216 = vmatpush.msra.mxu0 0.0
  %217 = vmatpush.msra.mxu0 0.0
  %218 = vmatpush.msra.mxu0 0.0
  %219 = vmatpush.msra.mxu0 0.0
  %220 = vmatpush.msra.mxu0 0.0
  %221 = vmatpush.msra.mxu0 0.0
  %222 = vmatpush.msra.mxu0 0.0
  %223 = vmatpush.msra.mxu0 0.0
  %224 = vmatpush.msra.mxu0 0.0
  %225 = vmatpush.msra.mxu0 0.0
  %226 = vmatpush.msra.mxu0 0.0
  %227 = vmatpush.msra.mxu0 0.0
  %228 = vmatpush.msra.mxu0 0.0
  %229 = vmatpush.msra.mxu0 %v77
  %230 = vmatpush.msra.mxu0 %v75
  %231 = vmatmul.f32.gmra.mxu0 %v173
  %v232 = vpop.f32.mrf.mxu0
  %v233 = vadd.f32 0.0, %v232
  %234 = vdwg.mxu0
  %235 = vmatpush.msra.mxu0 0.0
  %236 = vmatpush.msra.mxu0 0.0
  %237 = vmatpush.msra.mxu0 0.0
  %238 = vmatpush.msra.mxu0 0.0
  %239 = vmatpush.msra.mxu0 0.0
  %240 = vmatpush.msra.mxu0 0.0
  %241 = vmatpush.msra.mxu0 0.0
  %242 = vmatpush.msra.mxu0 0.0
  %243 = vmatpush.msra.mxu0 0.0
  %244 = vmatpush.msra.mxu0 0.0
  %245 = vmatpush.msra.mxu0 0.0
  %246 = vmatpush.msra.mxu0 0.0
  %247 = vmatpush.msra.mxu0 0.0
  %248 = vmatpush.msra.mxu0 0.0
  %249 = vmatpush.msra.mxu0 %v78
  %250 = vmatpush.msra.mxu0 %v76
  %251 = vmatmul.f32.gmra.mxu0 %v173
  %v252 = vpop.f32.mrf.mxu0
  %v253 = vadd.f32 0.0, %v252
  %254 = vdwg.mxu0
  %256 = vrot.lane.b32.xlu0 %v170, 64
  %v257 = vpop.permute.xlu0 %256
  %v258 = vsel %vm171, %v257, 0
  %260 = vmatpush.msra.mxu0 0.0
  %261 = vmatpush.msra.mxu0 0.0
  %262 = vmatpush.msra.mxu0 0.0
  %263 = vmatpush.msra.mxu0 0.0
  %264 = vmatpush.msra.mxu0 0.0
  %265 = vmatpush.msra.mxu0 0.0
  %266 = vmatpush.msra.mxu0 0.0
  %267 = vmatpush.msra.mxu0 0.0
  %268 = vmatpush.msra.mxu0 0.0
  %269 = vmatpush.msra.mxu0 0.0
  %270 = vmatpush.msra.mxu0 0.0
  %271 = vmatpush.msra.mxu0 0.0
  %272 = vmatpush.msra.mxu0 0.0
  %273 = vmatpush.msra.mxu0 0.0
  %274 = vmatpush.msra.mxu0 %v73
  %275 = vmatpush.msra.mxu0 %v71
  %276 = vmatmul.f32.gmra.mxu0 %v258
  %v277 = vpop.f32.mrf.mxu0
  %v278 = vadd.f32 0.0, %v277
  %279 = vdwg.mxu0
  %280 = vmatpush.msra.mxu0 0.0
  %281 = vmatpush.msra.mxu0 0.0
  %282 = vmatpush.msra.mxu0 0.0
  %283 = vmatpush.msra.mxu0 0.0
  %284 = vmatpush.msra.mxu0 0.0
  %285 = vmatpush.msra.mxu0 0.0
  %286 = vmatpush.msra.mxu0 0.0
  %287 = vmatpush.msra.mxu0 0.0
  %288 = vmatpush.msra.mxu0 0.0
  %289 = vmatpush.msra.mxu0 0.0
  %290 = vmatpush.msra.mxu0 0.0
  %291 = vmatpush.msra.mxu0 0.0
  %292 = vmatpush.msra.mxu0 0.0
  %293 = vmatpush.msra.mxu0 0.0
  %294 = vmatpush.msra.mxu0 %v74
  %295 = vmatpush.msra.mxu0 %v72
  %296 = vmatmul.f32.gmra.mxu0 %v258
  %v297 = vpop.f32.mrf.mxu0
  %v298 = vadd.f32 0.0, %v297
  %299 = vdwg.mxu0
  %300 = vmatpush.msra.mxu0 0.0
  %301 = vmatpush.msra.mxu0 0.0
  %302 = vmatpush.msra.mxu0 0.0
  %303 = vmatpush.msra.mxu0 0.0
  %304 = vmatpush.msra.mxu0 0.0
  %305 = vmatpush.msra.mxu0 0.0
  %306 = vmatpush.msra.mxu0 0.0
  %307 = vmatpush.msra.mxu0 0.0
  %308 = vmatpush.msra.mxu0 0.0
  %309 = vmatpush.msra.mxu0 0.0
  %310 = vmatpush.msra.mxu0 0.0
  %311 = vmatpush.msra.mxu0 0.0
  %312 = vmatpush.msra.mxu0 0.0
  %313 = vmatpush.msra.mxu0 0.0
  %314 = vmatpush.msra.mxu0 %v77
  %315 = vmatpush.msra.mxu0 %v75
  %316 = vmatmul.f32.gmra.mxu0 %v258
  %v317 = vpop.f32.mrf.mxu0
  %v318 = vadd.f32 0.0, %v317
  %319 = vdwg.mxu0
  %320 = vmatpush.msra.mxu0 0.0
  %321 = vmatpush.msra.mxu0 0.0
  %322 = vmatpush.msra.mxu0 0.0
  %323 = vmatpush.msra.mxu0 0.0
  %324 = vmatpush.msra.mxu0 0.0
  %325 = vmatpush.msra.mxu0 0.0
  %326 = vmatpush.msra.mxu0 0.0
  %327 = vmatpush.msra.mxu0 0.0
  %328 = vmatpush.msra.mxu0 0.0
  %329 = vmatpush.msra.mxu0 0.0
  %330 = vmatpush.msra.mxu0 0.0
  %331 = vmatpush.msra.mxu0 0.0
  %332 = vmatpush.msra.mxu0 0.0
  %333 = vmatpush.msra.mxu0 0.0
  %334 = vmatpush.msra.mxu0 %v78
  %335 = vmatpush.msra.mxu0 %v76
  %336 = vmatmul.f32.gmra.mxu0 %v258
  %v337 = vpop.f32.mrf.mxu0
  %v338 = vadd.f32 0.0, %v337
  %339 = vdwg.mxu0
  %v340 = vmul.f32 %v193, %v318
  %v341 = vmul.f32 %v213, %v338
  %v342 = vmul.f32 %v278, %v233
  %v343 = vmul.f32 %v298, %v253
  %v344 = vadd.f32 %v340, %v342
  %v345 = vadd.f32 %v341, %v343
  %346 = vrot.lane.b32.xlu0 %v59, 112
  %v347 = vpop.permute.xlu0 %346
  %v348 = vsel %vm171, %v347, 0
  %350 = vmatpush.msra.mxu0 0.0
  %351 = vmatpush.msra.mxu0 0.0
  %352 = vmatpush.msra.mxu0 0.0
  %353 = vmatpush.msra.mxu0 0.0
  %354 = vmatpush.msra.mxu0 0.0
  %355 = vmatpush.msra.mxu0 0.0
  %356 = vmatpush.msra.mxu0 0.0
  %357 = vmatpush.msra.mxu0 0.0
  %358 = vmatpush.msra.mxu0 0.0
  %359 = vmatpush.msra.mxu0 0.0
  %360 = vmatpush.msra.mxu0 0.0
  %361 = vmatpush.msra.mxu0 0.0
  %362 = vmatpush.msra.mxu0 0.0
  %363 = vmatpush.msra.mxu0 0.0
  %364 = vmatpush.msra.mxu0 %v73
  %365 = vmatpush.msra.mxu0 %v71
  %366 = vmatmul.f32.gmra.mxu0 %v348
  %v367 = vpop.f32.mrf.mxu0
  %v368 = vadd.f32 0.0, %v367
  %369 = vdwg.mxu0
  %370 = vmatpush.msra.mxu0 0.0
  %371 = vmatpush.msra.mxu0 0.0
  %372 = vmatpush.msra.mxu0 0.0
  %373 = vmatpush.msra.mxu0 0.0
  %374 = vmatpush.msra.mxu0 0.0
  %375 = vmatpush.msra.mxu0 0.0
  %376 = vmatpush.msra.mxu0 0.0
  %377 = vmatpush.msra.mxu0 0.0
  %378 = vmatpush.msra.mxu0 0.0
  %379 = vmatpush.msra.mxu0 0.0
  %380 = vmatpush.msra.mxu0 0.0
  %381 = vmatpush.msra.mxu0 0.0
  %382 = vmatpush.msra.mxu0 0.0
  %383 = vmatpush.msra.mxu0 0.0
  %384 = vmatpush.msra.mxu0 %v74
  %385 = vmatpush.msra.mxu0 %v72
  %386 = vmatmul.f32.gmra.mxu0 %v348
  %v387 = vpop.f32.mrf.mxu0
  %v388 = vadd.f32 0.0, %v387
  %389 = vdwg.mxu0
  %390 = vmatpush.msra.mxu0 0.0
  %391 = vmatpush.msra.mxu0 0.0
  %392 = vmatpush.msra.mxu0 0.0
  %393 = vmatpush.msra.mxu0 0.0
  %394 = vmatpush.msra.mxu0 0.0
  %395 = vmatpush.msra.mxu0 0.0
  %396 = vmatpush.msra.mxu0 0.0
  %397 = vmatpush.msra.mxu0 0.0
  %398 = vmatpush.msra.mxu0 0.0
  %399 = vmatpush.msra.mxu0 0.0
  %400 = vmatpush.msra.mxu0 0.0
  %401 = vmatpush.msra.mxu0 0.0
  %402 = vmatpush.msra.mxu0 0.0
  %403 = vmatpush.msra.mxu0 0.0
  %404 = vmatpush.msra.mxu0 %v77
  %405 = vmatpush.msra.mxu0 %v75
  %406 = vmatmul.f32.gmra.mxu0 %v348
  %v407 = vpop.f32.mrf.mxu0
  %v408 = vadd.f32 0.0, %v407
  %409 = vdwg.mxu0
  %410 = vmatpush.msra.mxu0 0.0
  %411 = vmatpush.msra.mxu0 0.0
  %412 = vmatpush.msra.mxu0 0.0
  %413 = vmatpush.msra.mxu0 0.0
  %414 = vmatpush.msra.mxu0 0.0
  %415 = vmatpush.msra.mxu0 0.0
  %416 = vmatpush.msra.mxu0 0.0
  %417 = vmatpush.msra.mxu0 0.0
  %418 = vmatpush.msra.mxu0 0.0
  %419 = vmatpush.msra.mxu0 0.0
  %420 = vmatpush.msra.mxu0 0.0
  %421 = vmatpush.msra.mxu0 0.0
  %422 = vmatpush.msra.mxu0 0.0
  %423 = vmatpush.msra.mxu0 0.0
  %424 = vmatpush.msra.mxu0 %v78
  %425 = vmatpush.msra.mxu0 %v76
  %426 = vmatmul.f32.gmra.mxu0 %v348
  %v427 = vpop.f32.mrf.mxu0
  %v428 = vadd.f32 0.0, %v427
  %429 = vdwg.mxu0
  %430 = vrot.lane.b32.xlu0 %v170, 48
  %v431 = vpop.permute.xlu0 %430
  %v432 = vsel %vm171, %v431, 0
  %434 = vmatpush.msra.mxu0 0.0
  %435 = vmatpush.msra.mxu0 0.0
  %436 = vmatpush.msra.mxu0 0.0
  %437 = vmatpush.msra.mxu0 0.0
  %438 = vmatpush.msra.mxu0 0.0
  %439 = vmatpush.msra.mxu0 0.0
  %440 = vmatpush.msra.mxu0 0.0
  %441 = vmatpush.msra.mxu0 0.0
  %442 = vmatpush.msra.mxu0 0.0
  %443 = vmatpush.msra.mxu0 0.0
  %444 = vmatpush.msra.mxu0 0.0
  %445 = vmatpush.msra.mxu0 0.0
  %446 = vmatpush.msra.mxu0 0.0
  %447 = vmatpush.msra.mxu0 0.0
  %448 = vmatpush.msra.mxu0 %v73
  %449 = vmatpush.msra.mxu0 %v71
  %450 = vmatmul.f32.gmra.mxu0 %v432
  %v451 = vpop.f32.mrf.mxu0
  %v452 = vadd.f32 0.0, %v451
  %453 = vdwg.mxu0
  %454 = vmatpush.msra.mxu0 0.0
  %455 = vmatpush.msra.mxu0 0.0
  %456 = vmatpush.msra.mxu0 0.0
  %457 = vmatpush.msra.mxu0 0.0
  %458 = vmatpush.msra.mxu0 0.0
  %459 = vmatpush.msra.mxu0 0.0
  %460 = vmatpush.msra.mxu0 0.0
  %461 = vmatpush.msra.mxu0 0.0
  %462 = vmatpush.msra.mxu0 0.0
  %463 = vmatpush.msra.mxu0 0.0
  %464 = vmatpush.msra.mxu0 0.0
  %465 = vmatpush.msra.mxu0 0.0
  %466 = vmatpush.msra.mxu0 0.0
  %467 = vmatpush.msra.mxu0 0.0
  %468 = vmatpush.msra.mxu0 %v74
  %469 = vmatpush.msra.mxu0 %v72
  %470 = vmatmul.f32.gmra.mxu0 %v432
  %v471 = vpop.f32.mrf.mxu0
  %v472 = vadd.f32 0.0, %v471
  %473 = vdwg.mxu0
  %474 = vmatpush.msra.mxu0 0.0
  %475 = vmatpush.msra.mxu0 0.0
  %476 = vmatpush.msra.mxu0 0.0
  %477 = vmatpush.msra.mxu0 0.0
  %478 = vmatpush.msra.mxu0 0.0
  %479 = vmatpush.msra.mxu0 0.0
  %480 = vmatpush.msra.mxu0 0.0
  %481 = vmatpush.msra.mxu0 0.0
  %482 = vmatpush.msra.mxu0 0.0
  %483 = vmatpush.msra.mxu0 0.0
  %484 = vmatpush.msra.mxu0 0.0
  %485 = vmatpush.msra.mxu0 0.0
  %486 = vmatpush.msra.mxu0 0.0
  %487 = vmatpush.msra.mxu0 0.0
  %488 = vmatpush.msra.mxu0 %v77
  %489 = vmatpush.msra.mxu0 %v75
  %490 = vmatmul.f32.gmra.mxu0 %v432
  %v491 = vpop.f32.mrf.mxu0
  %v492 = vadd.f32 0.0, %v491
  %493 = vdwg.mxu0
  %494 = vmatpush.msra.mxu0 0.0
  %495 = vmatpush.msra.mxu0 0.0
  %496 = vmatpush.msra.mxu0 0.0
  %497 = vmatpush.msra.mxu0 0.0
  %498 = vmatpush.msra.mxu0 0.0
  %499 = vmatpush.msra.mxu0 0.0
  %500 = vmatpush.msra.mxu0 0.0
  %501 = vmatpush.msra.mxu0 0.0
  %502 = vmatpush.msra.mxu0 0.0
  %503 = vmatpush.msra.mxu0 0.0
  %504 = vmatpush.msra.mxu0 0.0
  %505 = vmatpush.msra.mxu0 0.0
  %506 = vmatpush.msra.mxu0 0.0
  %507 = vmatpush.msra.mxu0 0.0
  %508 = vmatpush.msra.mxu0 %v78
  %509 = vmatpush.msra.mxu0 %v76
  %510 = vmatmul.f32.gmra.mxu0 %v432
  %v511 = vpop.f32.mrf.mxu0
  %v512 = vadd.f32 0.0, %v511
  %513 = vdwg.mxu0
  %v514 = vmul.f32 %v368, %v492
  %v515 = vmul.f32 %v388, %v512
  %v516 = vmul.f32 %v452, %v408
  %v517 = vmul.f32 %v472, %v428
  %v518 = vadd.f32 %v514, %v516
  %v519 = vadd.f32 %v515, %v517
  %v520 = vadd.f32 %v344, %v518
  %v521 = vadd.f32 %v345, %v519
  %522 = vrot.lane.b32.xlu0 %v59, 96
  %v523 = vpop.permute.xlu0 %522
  %v524 = vsel %vm171, %v523, 0
  %526 = vmatpush.msra.mxu0 0.0
  %527 = vmatpush.msra.mxu0 0.0
  %528 = vmatpush.msra.mxu0 0.0
  %529 = vmatpush.msra.mxu0 0.0
  %530 = vmatpush.msra.mxu0 0.0
  %531 = vmatpush.msra.mxu0 0.0
  %532 = vmatpush.msra.mxu0 0.0
  %533 = vmatpush.msra.mxu0 0.0
  %534 = vmatpush.msra.mxu0 0.0
  %535 = vmatpush.msra.mxu0 0.0
  %536 = vmatpush.msra.mxu0 0.0
  %537 = vmatpush.msra.mxu0 0.0
  %538 = vmatpush.msra.mxu0 0.0
  %539 = vmatpush.msra.mxu0 0.0
  %540 = vmatpush.msra.mxu0 %v73
  %541 = vmatpush.msra.mxu0 %v71
  %542 = vmatmul.f32.gmra.mxu0 %v524
  %v543 = vpop.f32.mrf.mxu0
  %v544 = vadd.f32 0.0, %v543
  %545 = vdwg.mxu0
  %546 = vmatpush.msra.mxu0 0.0
  %547 = vmatpush.msra.mxu0 0.0
  %548 = vmatpush.msra.mxu0 0.0
  %549 = vmatpush.msra.mxu0 0.0
  %550 = vmatpush.msra.mxu0 0.0
  %551 = vmatpush.msra.mxu0 0.0
  %552 = vmatpush.msra.mxu0 0.0
  %553 = vmatpush.msra.mxu0 0.0
  %554 = vmatpush.msra.mxu0 0.0
  %555 = vmatpush.msra.mxu0 0.0
  %556 = vmatpush.msra.mxu0 0.0
  %557 = vmatpush.msra.mxu0 0.0
  %558 = vmatpush.msra.mxu0 0.0
  %559 = vmatpush.msra.mxu0 0.0
  %560 = vmatpush.msra.mxu0 %v74
  %561 = vmatpush.msra.mxu0 %v72
  %562 = vmatmul.f32.gmra.mxu0 %v524
  %v563 = vpop.f32.mrf.mxu0
  %v564 = vadd.f32 0.0, %v563
  %565 = vdwg.mxu0
  %566 = vmatpush.msra.mxu0 0.0
  %567 = vmatpush.msra.mxu0 0.0
  %568 = vmatpush.msra.mxu0 0.0
  %569 = vmatpush.msra.mxu0 0.0
  %570 = vmatpush.msra.mxu0 0.0
  %571 = vmatpush.msra.mxu0 0.0
  %572 = vmatpush.msra.mxu0 0.0
  %573 = vmatpush.msra.mxu0 0.0
  %574 = vmatpush.msra.mxu0 0.0
  %575 = vmatpush.msra.mxu0 0.0
  %576 = vmatpush.msra.mxu0 0.0
  %577 = vmatpush.msra.mxu0 0.0
  %578 = vmatpush.msra.mxu0 0.0
  %579 = vmatpush.msra.mxu0 0.0
  %580 = vmatpush.msra.mxu0 %v77
  %581 = vmatpush.msra.mxu0 %v75
  %582 = vmatmul.f32.gmra.mxu0 %v524
  %v583 = vpop.f32.mrf.mxu0
  %v584 = vadd.f32 0.0, %v583
  %585 = vdwg.mxu0
  %586 = vmatpush.msra.mxu0 0.0
  %587 = vmatpush.msra.mxu0 0.0
  %588 = vmatpush.msra.mxu0 0.0
  %589 = vmatpush.msra.mxu0 0.0
  %590 = vmatpush.msra.mxu0 0.0
  %591 = vmatpush.msra.mxu0 0.0
  %592 = vmatpush.msra.mxu0 0.0
  %593 = vmatpush.msra.mxu0 0.0
  %594 = vmatpush.msra.mxu0 0.0
  %595 = vmatpush.msra.mxu0 0.0
  %596 = vmatpush.msra.mxu0 0.0
  %597 = vmatpush.msra.mxu0 0.0
  %598 = vmatpush.msra.mxu0 0.0
  %599 = vmatpush.msra.mxu0 0.0
  %600 = vmatpush.msra.mxu0 %v78
  %601 = vmatpush.msra.mxu0 %v76
  %602 = vmatmul.f32.gmra.mxu0 %v524
  %v603 = vpop.f32.mrf.mxu0
  %v604 = vadd.f32 0.0, %v603
  %605 = vdwg.mxu0
  %606 = vrot.lane.b32.xlu0 %v170, 32
  %v607 = vpop.permute.xlu0 %606
  %v608 = vsel %vm171, %v607, 0
  %610 = vmatpush.msra.mxu0 0.0
  %611 = vmatpush.msra.mxu0 0.0
  %612 = vmatpush.msra.mxu0 0.0
  %613 = vmatpush.msra.mxu0 0.0
  %614 = vmatpush.msra.mxu0 0.0
  %615 = vmatpush.msra.mxu0 0.0
  %616 = vmatpush.msra.mxu0 0.0
  %617 = vmatpush.msra.mxu0 0.0
  %618 = vmatpush.msra.mxu0 0.0
  %619 = vmatpush.msra.mxu0 0.0
  %620 = vmatpush.msra.mxu0 0.0
  %621 = vmatpush.msra.mxu0 0.0
  %622 = vmatpush.msra.mxu0 0.0
  %623 = vmatpush.msra.mxu0 0.0
  %624 = vmatpush.msra.mxu0 %v73
  %625 = vmatpush.msra.mxu0 %v71
  %626 = vmatmul.f32.gmra.mxu0 %v608
  %v627 = vpop.f32.mrf.mxu0
  %v628 = vadd.f32 0.0, %v627
  %629 = vdwg.mxu0
  %630 = vmatpush.msra.mxu0 0.0
  %631 = vmatpush.msra.mxu0 0.0
  %632 = vmatpush.msra.mxu0 0.0
  %633 = vmatpush.msra.mxu0 0.0
  %634 = vmatpush.msra.mxu0 0.0
  %635 = vmatpush.msra.mxu0 0.0
  %636 = vmatpush.msra.mxu0 0.0
  %637 = vmatpush.msra.mxu0 0.0
  %638 = vmatpush.msra.mxu0 0.0
  %639 = vmatpush.msra.mxu0 0.0
  %640 = vmatpush.msra.mxu0 0.0
  %641 = vmatpush.msra.mxu0 0.0
  %642 = vmatpush.msra.mxu0 0.0
  %643 = vmatpush.msra.mxu0 0.0
  %644 = vmatpush.msra.mxu0 %v74
  %645 = vmatpush.msra.mxu0 %v72
  %646 = vmatmul.f32.gmra.mxu0 %v608
  %v647 = vpop.f32.mrf.mxu0
  %v648 = vadd.f32 0.0, %v647
  %649 = vdwg.mxu0
  %650 = vmatpush.msra.mxu0 0.0
  %651 = vmatpush.msra.mxu0 0.0
  %652 = vmatpush.msra.mxu0 0.0
  %653 = vmatpush.msra.mxu0 0.0
  %654 = vmatpush.msra.mxu0 0.0
  %655 = vmatpush.msra.mxu0 0.0
  %656 = vmatpush.msra.mxu0 0.0
  %657 = vmatpush.msra.mxu0 0.0
  %658 = vmatpush.msra.mxu0 0.0
  %659 = vmatpush.msra.mxu0 0.0
  %660 = vmatpush.msra.mxu0 0.0
  %661 = vmatpush.msra.mxu0 0.0
  %662 = vmatpush.msra.mxu0 0.0
  %663 = vmatpush.msra.mxu0 0.0
  %664 = vmatpush.msra.mxu0 %v77
  %665 = vmatpush.msra.mxu0 %v75
  %666 = vmatmul.f32.gmra.mxu0 %v608
  %v667 = vpop.f32.mrf.mxu0
  %v668 = vadd.f32 0.0, %v667
  %669 = vdwg.mxu0
  %670 = vmatpush.msra.mxu0 0.0
  %671 = vmatpush.msra.mxu0 0.0
  %672 = vmatpush.msra.mxu0 0.0
  %673 = vmatpush.msra.mxu0 0.0
  %674 = vmatpush.msra.mxu0 0.0
  %675 = vmatpush.msra.mxu0 0.0
  %676 = vmatpush.msra.mxu0 0.0
  %677 = vmatpush.msra.mxu0 0.0
  %678 = vmatpush.msra.mxu0 0.0
  %679 = vmatpush.msra.mxu0 0.0
  %680 = vmatpush.msra.mxu0 0.0
  %681 = vmatpush.msra.mxu0 0.0
  %682 = vmatpush.msra.mxu0 0.0
  %683 = vmatpush.msra.mxu0 0.0
  %684 = vmatpush.msra.mxu0 %v78
  %685 = vmatpush.msra.mxu0 %v76
  %686 = vmatmul.f32.gmra.mxu0 %v608
  %v687 = vpop.f32.mrf.mxu0
  %v688 = vadd.f32 0.0, %v687
  %689 = vdwg.mxu0
  %v690 = vmul.f32 %v544, %v668
  %v691 = vmul.f32 %v564, %v688
  %v692 = vmul.f32 %v628, %v584
  %v693 = vmul.f32 %v648, %v604
  %v694 = vadd.f32 %v690, %v692
  %v695 = vadd.f32 %v691, %v693
  %v696 = vadd.f32 %v520, %v694
  %v697 = vadd.f32 %v521, %v695
  %698 = vrot.lane.b32.xlu0 %v59, 80
  %v699 = vpop.permute.xlu0 %698
  %v700 = vsel %vm171, %v699, 0
  %702 = vmatpush.msra.mxu0 0.0
  %703 = vmatpush.msra.mxu0 0.0
  %704 = vmatpush.msra.mxu0 0.0
  %705 = vmatpush.msra.mxu0 0.0
  %706 = vmatpush.msra.mxu0 0.0
  %707 = vmatpush.msra.mxu0 0.0
  %708 = vmatpush.msra.mxu0 0.0
  %709 = vmatpush.msra.mxu0 0.0
  %710 = vmatpush.msra.mxu0 0.0
  %711 = vmatpush.msra.mxu0 0.0
  %712 = vmatpush.msra.mxu0 0.0
  %713 = vmatpush.msra.mxu0 0.0
  %714 = vmatpush.msra.mxu0 0.0
  %715 = vmatpush.msra.mxu0 0.0
  %716 = vmatpush.msra.mxu0 %v73
  %717 = vmatpush.msra.mxu0 %v71
  %718 = vmatmul.f32.gmra.mxu0 %v700
  %v719 = vpop.f32.mrf.mxu0
  %v720 = vadd.f32 0.0, %v719
  %721 = vdwg.mxu0
  %722 = vmatpush.msra.mxu0 0.0
  %723 = vmatpush.msra.mxu0 0.0
  %724 = vmatpush.msra.mxu0 0.0
  %725 = vmatpush.msra.mxu0 0.0
  %726 = vmatpush.msra.mxu0 0.0
  %727 = vmatpush.msra.mxu0 0.0
  %728 = vmatpush.msra.mxu0 0.0
  %729 = vmatpush.msra.mxu0 0.0
  %730 = vmatpush.msra.mxu0 0.0
  %731 = vmatpush.msra.mxu0 0.0
  %732 = vmatpush.msra.mxu0 0.0
  %733 = vmatpush.msra.mxu0 0.0
  %734 = vmatpush.msra.mxu0 0.0
  %735 = vmatpush.msra.mxu0 0.0
  %736 = vmatpush.msra.mxu0 %v74
  %737 = vmatpush.msra.mxu0 %v72
  %738 = vmatmul.f32.gmra.mxu0 %v700
  %v739 = vpop.f32.mrf.mxu0
  %v740 = vadd.f32 0.0, %v739
  %741 = vdwg.mxu0
  %742 = vmatpush.msra.mxu0 0.0
  %743 = vmatpush.msra.mxu0 0.0
  %744 = vmatpush.msra.mxu0 0.0
  %745 = vmatpush.msra.mxu0 0.0
  %746 = vmatpush.msra.mxu0 0.0
  %747 = vmatpush.msra.mxu0 0.0
  %748 = vmatpush.msra.mxu0 0.0
  %749 = vmatpush.msra.mxu0 0.0
  %750 = vmatpush.msra.mxu0 0.0
  %751 = vmatpush.msra.mxu0 0.0
  %752 = vmatpush.msra.mxu0 0.0
  %753 = vmatpush.msra.mxu0 0.0
  %754 = vmatpush.msra.mxu0 0.0
  %755 = vmatpush.msra.mxu0 0.0
  %756 = vmatpush.msra.mxu0 %v77
  %757 = vmatpush.msra.mxu0 %v75
  %758 = vmatmul.f32.gmra.mxu0 %v700
  %v759 = vpop.f32.mrf.mxu0
  %v760 = vadd.f32 0.0, %v759
  %761 = vdwg.mxu0
  %762 = vmatpush.msra.mxu0 0.0
  %763 = vmatpush.msra.mxu0 0.0
  %764 = vmatpush.msra.mxu0 0.0
  %765 = vmatpush.msra.mxu0 0.0
  %766 = vmatpush.msra.mxu0 0.0
  %767 = vmatpush.msra.mxu0 0.0
  %768 = vmatpush.msra.mxu0 0.0
  %769 = vmatpush.msra.mxu0 0.0
  %770 = vmatpush.msra.mxu0 0.0
  %771 = vmatpush.msra.mxu0 0.0
  %772 = vmatpush.msra.mxu0 0.0
  %773 = vmatpush.msra.mxu0 0.0
  %774 = vmatpush.msra.mxu0 0.0
  %775 = vmatpush.msra.mxu0 0.0
  %776 = vmatpush.msra.mxu0 %v78
  %777 = vmatpush.msra.mxu0 %v76
  %778 = vmatmul.f32.gmra.mxu0 %v700
  %v779 = vpop.f32.mrf.mxu0
  %v780 = vadd.f32 0.0, %v779
  %781 = vdwg.mxu0
  %782 = vrot.lane.b32.xlu0 %v170, 16
  %v783 = vpop.permute.xlu0 %782
  %v784 = vsel %vm171, %v783, 0
  %786 = vmatpush.msra.mxu0 0.0
  %787 = vmatpush.msra.mxu0 0.0
  %788 = vmatpush.msra.mxu0 0.0
  %789 = vmatpush.msra.mxu0 0.0
  %790 = vmatpush.msra.mxu0 0.0
  %791 = vmatpush.msra.mxu0 0.0
  %792 = vmatpush.msra.mxu0 0.0
  %793 = vmatpush.msra.mxu0 0.0
  %794 = vmatpush.msra.mxu0 0.0
  %795 = vmatpush.msra.mxu0 0.0
  %796 = vmatpush.msra.mxu0 0.0
  %797 = vmatpush.msra.mxu0 0.0
  %798 = vmatpush.msra.mxu0 0.0
  %799 = vmatpush.msra.mxu0 0.0
  %800 = vmatpush.msra.mxu0 %v73
  %801 = vmatpush.msra.mxu0 %v71
  %802 = vmatmul.f32.gmra.mxu0 %v784
  %v803 = vpop.f32.mrf.mxu0
  %v804 = vadd.f32 0.0, %v803
  %805 = vdwg.mxu0
  %806 = vmatpush.msra.mxu0 0.0
  %807 = vmatpush.msra.mxu0 0.0
  %808 = vmatpush.msra.mxu0 0.0
  %809 = vmatpush.msra.mxu0 0.0
  %810 = vmatpush.msra.mxu0 0.0
  %811 = vmatpush.msra.mxu0 0.0
  %812 = vmatpush.msra.mxu0 0.0
  %813 = vmatpush.msra.mxu0 0.0
  %814 = vmatpush.msra.mxu0 0.0
  %815 = vmatpush.msra.mxu0 0.0
  %816 = vmatpush.msra.mxu0 0.0
  %817 = vmatpush.msra.mxu0 0.0
  %818 = vmatpush.msra.mxu0 0.0
  %819 = vmatpush.msra.mxu0 0.0
  %820 = vmatpush.msra.mxu0 %v74
  %821 = vmatpush.msra.mxu0 %v72
  %822 = vmatmul.f32.gmra.mxu0 %v784
  %v823 = vpop.f32.mrf.mxu0
  %v824 = vadd.f32 0.0, %v823
  %825 = vdwg.mxu0
  %826 = vmatpush.msra.mxu0 0.0
  %827 = vmatpush.msra.mxu0 0.0
  %828 = vmatpush.msra.mxu0 0.0
  %829 = vmatpush.msra.mxu0 0.0
  %830 = vmatpush.msra.mxu0 0.0
  %831 = vmatpush.msra.mxu0 0.0
  %832 = vmatpush.msra.mxu0 0.0
  %833 = vmatpush.msra.mxu0 0.0
  %834 = vmatpush.msra.mxu0 0.0
  %835 = vmatpush.msra.mxu0 0.0
  %836 = vmatpush.msra.mxu0 0.0
  %837 = vmatpush.msra.mxu0 0.0
  %838 = vmatpush.msra.mxu0 0.0
  %839 = vmatpush.msra.mxu0 0.0
  %840 = vmatpush.msra.mxu0 %v77
  %841 = vmatpush.msra.mxu0 %v75
  %842 = vmatmul.f32.gmra.mxu0 %v784
  %v843 = vpop.f32.mrf.mxu0
  %v844 = vadd.f32 0.0, %v843
  %845 = vdwg.mxu0
  %846 = vmatpush.msra.mxu0 0.0
  %847 = vmatpush.msra.mxu0 0.0
  %848 = vmatpush.msra.mxu0 0.0
  %849 = vmatpush.msra.mxu0 0.0
  %850 = vmatpush.msra.mxu0 0.0
  %851 = vmatpush.msra.mxu0 0.0
  %852 = vmatpush.msra.mxu0 0.0
  %853 = vmatpush.msra.mxu0 0.0
  %854 = vmatpush.msra.mxu0 0.0
  %855 = vmatpush.msra.mxu0 0.0
  %856 = vmatpush.msra.mxu0 0.0
  %857 = vmatpush.msra.mxu0 0.0
  %858 = vmatpush.msra.mxu0 0.0
  %859 = vmatpush.msra.mxu0 0.0
  %860 = vmatpush.msra.mxu0 %v78
  %861 = vmatpush.msra.mxu0 %v76
  %862 = vmatmul.f32.gmra.mxu0 %v784
  %v863 = vpop.f32.mrf.mxu0
  %v864 = vadd.f32 0.0, %v863
  %865 = vdwg.mxu0
  %v866 = vmul.f32 %v720, %v844
  %v867 = vmul.f32 %v740, %v864
  %v868 = vmul.f32 %v804, %v760
  %v869 = vmul.f32 %v824, %v780
  %v870 = vadd.f32 %v866, %v868
  %v871 = vadd.f32 %v867, %v869
  %v872 = vadd.f32 %v696, %v870
  %v873 = vadd.f32 %v697, %v871
  %v874 = vand.u32 2147483647, %v872
  %v875 = vand.u32 2147483647, %v873
  %v876 = vadd.f32 %v874, 1e-12
  %v877 = vadd.f32 %v875, 1e-12
  %v878 = vrsqrt.pop %v876
  %v879 = vmul.f32 %v878, %v876
  %v880 = vmul.f32 %v879, %v878
  %v881 = vmul.f32 0.5, %v880
  %v882 = vsub.f32 1.5, %v881
  %v883 = vmul.f32 %v878, %v882
  %vm884 = vweird.f32 %v876
  %vm885 = vweird.f32 %v878
  %vm886 = vmor %vm884, %vm885
  %v887 = vsel %vm886, %v878, %v883
  %v888 = vrsqrt.pop %v877
  %v889 = vmul.f32 %v888, %v877
  %v890 = vmul.f32 %v889, %v888
  %v891 = vmul.f32 0.5, %v890
  %v892 = vsub.f32 1.5, %v891
  %v893 = vmul.f32 %v888, %v892
  %vm894 = vweird.f32 %v877
  %vm895 = vweird.f32 %v888
  %vm896 = vmor %vm894, %vm895
  %v897 = vsel %vm896, %v888, %v893
  %v898 = vmul.f32 %v872, %v887
  %v899 = vmul.f32 %v873, %v897
  %v900 = vand.u32 2147483647, %v898
  %v901 = vand.u32 2147483647, %v899
  %902 = vmatpush.msra.mxu0 %v94
  %903 = vmatpush.msra.mxu0 %v93
  %904 = vmatpush.msra.mxu0 %v92
  %905 = vmatpush.msra.mxu0 %v91
  %906 = vmatpush.msra.mxu0 %v90
  %907 = vmatpush.msra.mxu0 %v89
  %908 = vmatpush.msra.mxu0 %v88
  %909 = vmatpush.msra.mxu0 %v87
  %910 = vmatpush.msra.mxu0 %v86
  %911 = vmatpush.msra.mxu0 %v85
  %912 = vmatpush.msra.mxu0 %v84
  %913 = vmatpush.msra.mxu0 %v83
  %914 = vmatpush.msra.mxu0 %v82
  %915 = vmatpush.msra.mxu0 %v81
  %916 = vmatpush.msra.mxu0 %v80
  %917 = vmatpush.msra.mxu0 %v79
  %918 = vmatmul.f32.gmra.mxu0 %v900
  %v919 = vpop.f32.mrf.mxu0
  %v920 = vadd.f32 1e-07, %v919
  %921 = vdwg.mxu0
  %922 = vmatpush.msra.mxu0 %v110
  %923 = vmatpush.msra.mxu0 %v109
  %924 = vmatpush.msra.mxu0 %v108
  %925 = vmatpush.msra.mxu0 %v107
  %926 = vmatpush.msra.mxu0 %v106
  %927 = vmatpush.msra.mxu0 %v105
  %928 = vmatpush.msra.mxu0 %v104
  %929 = vmatpush.msra.mxu0 %v103
  %930 = vmatpush.msra.mxu0 %v102
  %931 = vmatpush.msra.mxu0 %v101
  %932 = vmatpush.msra.mxu0 %v100
  %933 = vmatpush.msra.mxu0 %v99
  %934 = vmatpush.msra.mxu0 %v98
  %935 = vmatpush.msra.mxu0 %v97
  %936 = vmatpush.msra.mxu0 %v96
  %937 = vmatpush.msra.mxu0 %v95
  %938 = vmatmul.f32.gmra.mxu0 %v901
  %v939 = vpop.f32.mrf.mxu0
  %v940 = vadd.f32 %v920, %v939
  %941 = vdwg.mxu0
  %v942 = vrcp.pop %v940
  %v944 = vsel %vm171, %v942, 0
  %946 = vmatpush.msra.mxu0 0.0
  %947 = vmatpush.msra.mxu0 0.0
  %948 = vmatpush.msra.mxu0 0.0
  %949 = vmatpush.msra.mxu0 0.0
  %950 = vmatpush.msra.mxu0 0.0
  %951 = vmatpush.msra.mxu0 0.0
  %952 = vmatpush.msra.mxu0 0.0
  %953 = vmatpush.msra.mxu0 0.0
  %954 = vmatpush.msra.mxu0 0.0
  %955 = vmatpush.msra.mxu0 0.0
  %956 = vmatpush.msra.mxu0 0.0
  %957 = vmatpush.msra.mxu0 0.0
  %958 = vmatpush.msra.mxu0 0.0
  %959 = vmatpush.msra.mxu0 0.0
  %960 = vmatpush.msra.mxu0 %v73
  %961 = vmatpush.msra.mxu0 %v71
  %962 = vmatmul.f32.gmra.mxu0 %v944
  %v963 = vpop.f32.mrf.mxu0
  %v964 = vadd.f32 0.0, %v963
  %965 = vdwg.mxu0
  %966 = vmatpush.msra.mxu0 0.0
  %967 = vmatpush.msra.mxu0 0.0
  %968 = vmatpush.msra.mxu0 0.0
  %969 = vmatpush.msra.mxu0 0.0
  %970 = vmatpush.msra.mxu0 0.0
  %971 = vmatpush.msra.mxu0 0.0
  %972 = vmatpush.msra.mxu0 0.0
  %973 = vmatpush.msra.mxu0 0.0
  %974 = vmatpush.msra.mxu0 0.0
  %975 = vmatpush.msra.mxu0 0.0
  %976 = vmatpush.msra.mxu0 0.0
  %977 = vmatpush.msra.mxu0 0.0
  %978 = vmatpush.msra.mxu0 0.0
  %979 = vmatpush.msra.mxu0 0.0
  %980 = vmatpush.msra.mxu0 %v74
  %981 = vmatpush.msra.mxu0 %v72
  %982 = vmatmul.f32.gmra.mxu0 %v944
  %v983 = vpop.f32.mrf.mxu0
  %v984 = vadd.f32 0.0, %v983
  %985 = vdwg.mxu0
  %v986 = vmul.f32 %v898, %v964
  %v987 = vmul.f32 %v899, %v984
  %v988 = vmul.f32 %v233, %v986
  %v989 = vmul.f32 %v253, %v987
  %990 = vmatpush.msra.mxu0 %v94
  %991 = vmatpush.msra.mxu0 %v93
  %992 = vmatpush.msra.mxu0 %v92
  %993 = vmatpush.msra.mxu0 %v91
  %994 = vmatpush.msra.mxu0 %v90
  %995 = vmatpush.msra.mxu0 %v89
  %996 = vmatpush.msra.mxu0 %v88
  %997 = vmatpush.msra.mxu0 %v87
  %998 = vmatpush.msra.mxu0 %v86
  %999 = vmatpush.msra.mxu0 %v85
  %1000 = vmatpush.msra.mxu0 %v84
  %1001 = vmatpush.msra.mxu0 %v83
  %1002 = vmatpush.msra.mxu0 %v82
  %1003 = vmatpush.msra.mxu0 %v81
  %1004 = vmatpush.msra.mxu0 %v80
  %1005 = vmatpush.msra.mxu0 %v79
  %1006 = vmatmul.f32.gmra.mxu0 %v988
  %v1007 = vpop.f32.mrf.mxu0
  %v1008 = vadd.f32 0.0, %v1007
  %1009 = vdwg.mxu0
  %1010 = vmatpush.msra.mxu0 %v110
  %1011 = vmatpush.msra.mxu0 %v109
  %1012 = vmatpush.msra.mxu0 %v108
  %1013 = vmatpush.msra.mxu0 %v107
  %1014 = vmatpush.msra.mxu0 %v106
  %1015 = vmatpush.msra.mxu0 %v105
  %1016 = vmatpush.msra.mxu0 %v104
  %1017 = vmatpush.msra.mxu0 %v103
  %1018 = vmatpush.msra.mxu0 %v102
  %1019 = vmatpush.msra.mxu0 %v101
  %1020 = vmatpush.msra.mxu0 %v100
  %1021 = vmatpush.msra.mxu0 %v99
  %1022 = vmatpush.msra.mxu0 %v98
  %1023 = vmatpush.msra.mxu0 %v97
  %1024 = vmatpush.msra.mxu0 %v96
  %1025 = vmatpush.msra.mxu0 %v95
  %1026 = vmatmul.f32.gmra.mxu0 %v989
  %v1027 = vpop.f32.mrf.mxu0
  %v1028 = vadd.f32 %v1008, %v1027
  %1029 = vdwg.mxu0
  %v1030 = vmul.f32 %v408, %v986
  %v1031 = vmul.f32 %v428, %v987
  %1032 = vmatpush.msra.mxu0 %v94
  %1033 = vmatpush.msra.mxu0 %v93
  %1034 = vmatpush.msra.mxu0 %v92
  %1035 = vmatpush.msra.mxu0 %v91
  %1036 = vmatpush.msra.mxu0 %v90
  %1037 = vmatpush.msra.mxu0 %v89
  %1038 = vmatpush.msra.mxu0 %v88
  %1039 = vmatpush.msra.mxu0 %v87
  %1040 = vmatpush.msra.mxu0 %v86
  %1041 = vmatpush.msra.mxu0 %v85
  %1042 = vmatpush.msra.mxu0 %v84
  %1043 = vmatpush.msra.mxu0 %v83
  %1044 = vmatpush.msra.mxu0 %v82
  %1045 = vmatpush.msra.mxu0 %v81
  %1046 = vmatpush.msra.mxu0 %v80
  %1047 = vmatpush.msra.mxu0 %v79
  %1048 = vmatmul.f32.gmra.mxu0 %v1030
  %v1049 = vpop.f32.mrf.mxu0
  %v1050 = vadd.f32 0.0, %v1049
  %1051 = vdwg.mxu0
  %1052 = vmatpush.msra.mxu0 %v110
  %1053 = vmatpush.msra.mxu0 %v109
  %1054 = vmatpush.msra.mxu0 %v108
  %1055 = vmatpush.msra.mxu0 %v107
  %1056 = vmatpush.msra.mxu0 %v106
  %1057 = vmatpush.msra.mxu0 %v105
  %1058 = vmatpush.msra.mxu0 %v104
  %1059 = vmatpush.msra.mxu0 %v103
  %1060 = vmatpush.msra.mxu0 %v102
  %1061 = vmatpush.msra.mxu0 %v101
  %1062 = vmatpush.msra.mxu0 %v100
  %1063 = vmatpush.msra.mxu0 %v99
  %1064 = vmatpush.msra.mxu0 %v98
  %1065 = vmatpush.msra.mxu0 %v97
  %1066 = vmatpush.msra.mxu0 %v96
  %1067 = vmatpush.msra.mxu0 %v95
  %1068 = vmatmul.f32.gmra.mxu0 %v1031
  %v1069 = vpop.f32.mrf.mxu0
  %v1070 = vadd.f32 %v1050, %v1069
  %1071 = vdwg.mxu0
  %v1072 = vmul.f32 %v584, %v986
  %v1073 = vmul.f32 %v604, %v987
  %1074 = vmatpush.msra.mxu0 %v94
  %1075 = vmatpush.msra.mxu0 %v93
  %1076 = vmatpush.msra.mxu0 %v92
  %1077 = vmatpush.msra.mxu0 %v91
  %1078 = vmatpush.msra.mxu0 %v90
  %1079 = vmatpush.msra.mxu0 %v89
  %1080 = vmatpush.msra.mxu0 %v88
  %1081 = vmatpush.msra.mxu0 %v87
  %1082 = vmatpush.msra.mxu0 %v86
  %1083 = vmatpush.msra.mxu0 %v85
  %1084 = vmatpush.msra.mxu0 %v84
  %1085 = vmatpush.msra.mxu0 %v83
  %1086 = vmatpush.msra.mxu0 %v82
  %1087 = vmatpush.msra.mxu0 %v81
  %1088 = vmatpush.msra.mxu0 %v80
  %1089 = vmatpush.msra.mxu0 %v79
  %1090 = vmatmul.f32.gmra.mxu0 %v1072
  %v1091 = vpop.f32.mrf.mxu0
  %v1092 = vadd.f32 0.0, %v1091
  %1093 = vdwg.mxu0
  %1094 = vmatpush.msra.mxu0 %v110
  %1095 = vmatpush.msra.mxu0 %v109
  %1096 = vmatpush.msra.mxu0 %v108
  %1097 = vmatpush.msra.mxu0 %v107
  %1098 = vmatpush.msra.mxu0 %v106
  %1099 = vmatpush.msra.mxu0 %v105
  %1100 = vmatpush.msra.mxu0 %v104
  %1101 = vmatpush.msra.mxu0 %v103
  %1102 = vmatpush.msra.mxu0 %v102
  %1103 = vmatpush.msra.mxu0 %v101
  %1104 = vmatpush.msra.mxu0 %v100
  %1105 = vmatpush.msra.mxu0 %v99
  %1106 = vmatpush.msra.mxu0 %v98
  %1107 = vmatpush.msra.mxu0 %v97
  %1108 = vmatpush.msra.mxu0 %v96
  %1109 = vmatpush.msra.mxu0 %v95
  %1110 = vmatmul.f32.gmra.mxu0 %v1073
  %v1111 = vpop.f32.mrf.mxu0
  %v1112 = vadd.f32 %v1092, %v1111
  %1113 = vdwg.mxu0
  %v1114 = vmul.f32 %v760, %v986
  %v1115 = vmul.f32 %v780, %v987
  %1116 = vmatpush.msra.mxu0 %v94
  %1117 = vmatpush.msra.mxu0 %v93
  %1118 = vmatpush.msra.mxu0 %v92
  %1119 = vmatpush.msra.mxu0 %v91
  %1120 = vmatpush.msra.mxu0 %v90
  %1121 = vmatpush.msra.mxu0 %v89
  %1122 = vmatpush.msra.mxu0 %v88
  %1123 = vmatpush.msra.mxu0 %v87
  %1124 = vmatpush.msra.mxu0 %v86
  %1125 = vmatpush.msra.mxu0 %v85
  %1126 = vmatpush.msra.mxu0 %v84
  %1127 = vmatpush.msra.mxu0 %v83
  %1128 = vmatpush.msra.mxu0 %v82
  %1129 = vmatpush.msra.mxu0 %v81
  %1130 = vmatpush.msra.mxu0 %v80
  %1131 = vmatpush.msra.mxu0 %v79
  %1132 = vmatmul.f32.gmra.mxu0 %v1114
  %v1133 = vpop.f32.mrf.mxu0
  %v1134 = vadd.f32 0.0, %v1133
  %1135 = vdwg.mxu0
  %1136 = vmatpush.msra.mxu0 %v110
  %1137 = vmatpush.msra.mxu0 %v109
  %1138 = vmatpush.msra.mxu0 %v108
  %1139 = vmatpush.msra.mxu0 %v107
  %1140 = vmatpush.msra.mxu0 %v106
  %1141 = vmatpush.msra.mxu0 %v105
  %1142 = vmatpush.msra.mxu0 %v104
  %1143 = vmatpush.msra.mxu0 %v103
  %1144 = vmatpush.msra.mxu0 %v102
  %1145 = vmatpush.msra.mxu0 %v101
  %1146 = vmatpush.msra.mxu0 %v100
  %1147 = vmatpush.msra.mxu0 %v99
  %1148 = vmatpush.msra.mxu0 %v98
  %1149 = vmatpush.msra.mxu0 %v97
  %1150 = vmatpush.msra.mxu0 %v96
  %1151 = vmatpush.msra.mxu0 %v95
  %1152 = vmatmul.f32.gmra.mxu0 %v1115
  %v1153 = vpop.f32.mrf.mxu0
  %v1154 = vadd.f32 %v1134, %v1153
  %1155 = vdwg.mxu0
  %1157 = vrot.lane.b32.xlu0 %v1070, 16
  %v1158 = vpop.permute.xlu0 %1157
  %1161 = vrot.lane.b32.xlu0 %v1112, 32
  %v1162 = vpop.permute.xlu0 %1161
  %1165 = vrot.lane.b32.xlu0 %v1154, 48
  %v1166 = vpop.permute.xlu0 %1165
  %v1168 = vsel %vm171, %v1028, %v1158
  %vm1169 = vcmask 261120
  %v1170 = vsel %vm1169, %v1168, %v1162
  %vm1171 = vcmask 392192
  %v1172 = vsel %vm1171, %v1170, %v1166
  %v1173 = vpack.c.bf16 %v1172, %v1172
  %v1175 = vperm.slane %v70, 0
  %v1185 = vunpack.c.l.b16 %v62
  %v1186 = vunpack.c.l.b16 %v63
  %v1187 = vunpack.c.l.b16 %v64
  %v1188 = vunpack.c.l.b16 %v65
  %v1189 = vunpack.c.l.b16 %v66
  %v1190 = vunpack.c.l.b16 %v67
  %v1191 = vunpack.c.l.b16 %v68
  %v1192 = vunpack.c.l.b16 %v69
  %v1193 = vpack.c.b16 %v1186, %v1185
  %v1194 = vpack.c.b16 %v1188, %v1187
  %v1195 = vpack.c.b16 %v1190, %v1189
  %v1196 = vpack.c.b16 %v1192, %v1191
  %v1202 = vsel %vm115, %v1173, 0
  %1204 = vmatpush.bf16.msra.mxu0 0
  %1205 = vmatpush.bf16.msra.mxu0 0
  %1206 = vmatpush.bf16.msra.mxu0 0
  %1207 = vmatpush.bf16.msra.mxu0 0
  %1208 = vmatpush.bf16.msra.mxu0 %v1196
  %1209 = vmatpush.bf16.msra.mxu0 %v1195
  %1210 = vmatpush.bf16.msra.mxu0 %v1194
  %1211 = vmatpush.bf16.msra.mxu0 %v1193
  %1212 = vmatmul.bf16.gmra.mxu0 %v1202
  %v1213 = vpop.f32.mrf.mxu0
  %v1214 = vadd.f32 %v1175, %v1213
  %v1215 = vpop.f32.mrf.mxu0
  %1216 = vdwg.mxu0
  %1217 = vst.msk [vmem:[%s9] sm:$0xff] %vm1169, %v1214
  %v1218 = vlaneseq
  %v1219 = vshrl.u32 %v1218, 7
  %s1220 = smul.u32 0, 8
  %v1221 = vstv %s1220
  %v1222 = vadd.s32 %v1219, %v1221
  %vm1223 = vcmp.lt.s32.totalorder %v1222, 2
  %v1224 = vsel %vm1223, 1, 0
  %v1225 = vcvt.s32.f32 %v1224
  %v1226 = vmul.f32 %v1214, %v1225
  %v1227 = vsel %vm1169, %v1226, 0.0
  %v1228 = vrot.slane %v1227, 4
  %v1229 = vadd.f32 %v1227, %v1228
  %v1230 = vrot.slane %v1229, 2
  %v1231 = vadd.f32 %v1229, %v1230
  %v1232 = vrot.slane %v1231, 1
  %v1233 = vadd.f32 %v1231, %v1232
  %v1234 = vmul.f32 %v1226, %v1226
  %v1235 = vsel %vm1169, %v1234, 0.0
  %v1236 = vrot.slane %v1235, 4
  %v1237 = vadd.f32 %v1235, %v1236
  %v1238 = vrot.slane %v1237, 2
  %v1239 = vadd.f32 %v1237, %v1238
  %v1240 = vrot.slane %v1239, 1
  %v1241 = vadd.f32 %v1239, %v1240
  %vm1242 = vcmask 1040384
  %v1243 = vsel %vm1242, %v1233, %v1241
  %vm1244 = vcmask 254976
  %1245 = vst.msk [vmem:[%s10] sm:$0x3] %vm1244, %v1243
  // Predicated region
  $region38: #{afgn_forward.4} parent=0 // pred_check
    _
  $region39: #{afgn_forward.4} parent=0 // pred_check_branch
    %1247 = sbr.rel (0) target = $region41
  $region40: #{afgn_forward.4} parent=0 // pred_region
    _
  $region41: #{afgn_forward.4} parent=0 // pred_fallthru
    _
  // Predicated region
  $region42: #{afgn_forward.4} parent=0 // pred_check
    _
  $region43: #{afgn_forward.4} parent=0 // pred_check_branch
    %1249 = sbr.rel (0) target = $region45
  $region44: #{afgn_forward.4} parent=0 // pred_region
    _
  $region45: #{afgn_forward.4} parent=0 // pred_fallthru
    _
  // Predicated region
  $region46: #{afgn_forward.4} parent=0 // pred_check
    _
  $region47: #{afgn_forward.4} parent=0 // pred_check_branch
    %1251 = sbr.rel (0) target = $region49
  $region48: #{afgn_forward.4} parent=0 // pred_region
    _
  $region49: #{afgn_forward.4} parent=0 // pred_fallthru
    _
  // Predicated region
  $region50: #{afgn_forward.4} parent=0 // pred_check
    _
  $region51: #{afgn_forward.4} parent=0 // pred_check_branch
    %1253 = sbr.rel (0) target = $region53
  $region52: #{afgn_forward.4} parent=0 // pred_region
    _
  $region53: #{afgn_forward.4} parent=0 // pred_fallthru
    _

// kernel: afgn_forward.3
$region0: #{afgn_forward.3}
  #allocation0 [shape = 'u32[]', space=smem, size = 0x4, offset = 0x4, fixed_abs, tag = 'smem constant byte address 0x4 - core index']
  #allocation1 [shape = 'u32[72,128]{1,0:T(1,128)}', space=vmem, size = 0x9000, scoped, tag = 'internal scratch']
  %s0 = inlined_call_operand.vmem [shape: f32[8,32], index: 0, kind: input, shape index: {}]
  %s1 = inlined_call_operand.vmem [shape: f32[8,96], index: 1, kind: input, shape index: {}]
  %s2 = inlined_call_operand.vmem [shape: f32[1,32], index: 2, kind: input, shape index: {}]
  %s3 = inlined_call_operand.vmem [shape: bf16[32,64], index: 3, kind: input, shape index: {}]
  %s4 = inlined_call_operand.vmem [shape: f32[1,64], index: 4, kind: input, shape index: {}]
  %s5 = inlined_call_operand.vmem [shape: f32[32,1024], index: 5, kind: input, shape index: {}]
  %s6 = inlined_call_operand.vmem [shape: f32[32,1024], index: 6, kind: input, shape index: {}]
  %s7 = inlined_call_operand.vmem [shape: f32[1024,32], index: 7, kind: input, shape index: {}]
  %s8 = inlined_call_operand.vmem [shape: f32[8,256], index: 8, kind: output, shape index: {0}]
  %s9 = inlined_call_operand.vmem [shape: f32[1,2,256], index: 9, kind: output, shape index: {1}]
  %10 = xla_tuple %s8, %s9
  %s11 = sld [smem:[#allocation0]]
  $region50: #{afgn_forward.3} parent=0
    _
  %s13 = ssub.s32 1, %s11
  %s14 = scalar_select 0, %s13, %s11
  // Predicated region
  $region2: #{afgn_forward.3} parent=0 // pred_check
    _
  $region3: #{afgn_forward.3} parent=0 // pred_check_branch
    %16 = sbr.rel (0) target = $region5
  $region4: #{afgn_forward.3} parent=0 // pred_region
    _
  $region5: #{afgn_forward.3} parent=0 // pred_fallthru
    _
  // Predicated region
  $region6: #{afgn_forward.3} parent=0 // pred_check
    _
  $region7: #{afgn_forward.3} parent=0 // pred_check_branch
    %18 = sbr.rel (0) target = $region9
  $region8: #{afgn_forward.3} parent=0 // pred_region
    _
  $region9: #{afgn_forward.3} parent=0 // pred_fallthru
    _
  // Predicated region
  $region10: #{afgn_forward.3} parent=0 // pred_check
    _
  $region11: #{afgn_forward.3} parent=0 // pred_check_branch
    %20 = sbr.rel (0) target = $region13
  $region12: #{afgn_forward.3} parent=0 // pred_region
    _
  $region13: #{afgn_forward.3} parent=0 // pred_fallthru
    _
  // Predicated region
  $region14: #{afgn_forward.3} parent=0 // pred_check
    _
  $region15: #{afgn_forward.3} parent=0 // pred_check_branch
    %22 = sbr.rel (0) target = $region17
  $region16: #{afgn_forward.3} parent=0 // pred_region
    _
  $region17: #{afgn_forward.3} parent=0 // pred_fallthru
    _
  // Predicated region
  $region18: #{afgn_forward.3} parent=0 // pred_check
    _
  $region19: #{afgn_forward.3} parent=0 // pred_check_branch
    %24 = sbr.rel (0) target = $region21
  $region20: #{afgn_forward.3} parent=0 // pred_region
    _
  $region21: #{afgn_forward.3} parent=0 // pred_fallthru
    _
  // Predicated region
  $region22: #{afgn_forward.3} parent=0 // pred_check
    _
  $region23: #{afgn_forward.3} parent=0 // pred_check_branch
    %26 = sbr.rel (0) target = $region25
  $region24: #{afgn_forward.3} parent=0 // pred_region
    _
  $region25: #{afgn_forward.3} parent=0 // pred_fallthru
    _
  // Predicated region
  $region26: #{afgn_forward.3} parent=0 // pred_check
    _
  $region27: #{afgn_forward.3} parent=0 // pred_check_branch
    %28 = sbr.rel (0) target = $region29
  $region28: #{afgn_forward.3} parent=0 // pred_region
    _
  $region29: #{afgn_forward.3} parent=0 // pred_fallthru
    _
  // Predicated region
  $region30: #{afgn_forward.3} parent=0 // pred_check
    _
  $region31: #{afgn_forward.3} parent=0 // pred_check_branch
    %30 = sbr.rel (0) target = $region33
  $region32: #{afgn_forward.3} parent=0 // pred_region
    _
  $region33: #{afgn_forward.3} parent=0 // pred_fallthru
    _
  %v32 = vld [vmem:[%s0] sm:$0xff]
  %v33 = vld [vmem:[%s1] sm:$0xff]
  %v34 = vld [vmem:[%s2] sm:$0x1]
  %v35 = vld [vmem:[%s3] sm:$0xf]
  %v36 = vld [vmem:[%s3 + $0x4] sm:$0xf]
  %v37 = vld [vmem:[%s3 + $0x8] sm:$0xf]
  %v38 = vld [vmem:[%s3 + $0xc] sm:$0xf]
  %v39 = vld [vmem:[%s4] sm:$0x1]
  %v40 = vld [vmem:[%s5] sm:$0xff]
  %v41 = vld [vmem:[%s5 + $0x8] sm:$0xff]
  %v42 = vld [vmem:[%s5 + $0x10] sm:$0xff]
  %v43 = vld [vmem:[%s5 + $0x18] sm:$0xff]
  %v44 = vld [vmem:[%s5 + $0x20] sm:$0xff]
  %v45 = vld [vmem:[%s5 + $0x28] sm:$0xff]
  %v46 = vld [vmem:[%s5 + $0x30] sm:$0xff]
  %v47 = vld [vmem:[%s5 + $0x38] sm:$0xff]
  %v48 = vld [vmem:[%s5 + $0x40] sm:$0xff]
  %v49 = vld [vmem:[%s5 + $0x48] sm:$0xff]
  %v50 = vld [vmem:[%s5 + $0x50] sm:$0xff]
  %v51 = vld [vmem:[%s5 + $0x58] sm:$0xff]
  %v52 = vld [vmem:[%s5 + $0x60] sm:$0xff]
  %v53 = vld [vmem:[%s5 + $0x68] sm:$0xff]
  %v54 = vld [vmem:[%s5 + $0x70] sm:$0xff]
  %v55 = vld [vmem:[%s5 + $0x78] sm:$0xff]
  %v56 = vld [vmem:[%s5 + $0x80] sm:$0xff]
  %v57 = vld [vmem:[%s5 + $0x88] sm:$0xff]
  %v58 = vld [vmem:[%s5 + $0x90] sm:$0xff]
  %v59 = vld [vmem:[%s5 + $0x98] sm:$0xff]
  %v60 = vld [vmem:[%s5 + $0xa0] sm:$0xff]
  %v61 = vld [vmem:[%s5 + $0xa8] sm:$0xff]
  %v62 = vld [vmem:[%s5 + $0xb0] sm:$0xff]
  %v63 = vld [vmem:[%s5 + $0xb8] sm:$0xff]
  %v64 = vld [vmem:[%s5 + $0xc0] sm:$0xff]
  %v65 = vld [vmem:[%s5 + $0xc8] sm:$0xff]
  %v66 = vld [vmem:[%s5 + $0xd0] sm:$0xff]
  %v67 = vld [vmem:[%s5 + $0xd8] sm:$0xff]
  %v68 = vld [vmem:[%s5 + $0xe0] sm:$0xff]
  %v69 = vld [vmem:[%s5 + $0xe8] sm:$0xff]
  %v70 = vld [vmem:[%s5 + $0xf0] sm:$0xff]
  %v71 = vld [vmem:[%s5 + $0xf8] sm:$0xff]
  %v72 = vld [vmem:[%s6] sm:$0xff]
  %v73 = vld [vmem:[%s6 + $0x8] sm:$0xff]
  %v74 = vld [vmem:[%s6 + $0x10] sm:$0xff]
  %v75 = vld [vmem:[%s6 + $0x18] sm:$0xff]
  %v76 = vld [vmem:[%s6 + $0x20] sm:$0xff]
  %v77 = vld [vmem:[%s6 + $0x28] sm:$0xff]
  %v78 = vld [vmem:[%s6 + $0x30] sm:$0xff]
  %v79 = vld [vmem:[%s6 + $0x38] sm:$0xff]
  %v80 = vld [vmem:[%s6 + $0x40] sm:$0xff]
  %v81 = vld [vmem:[%s6 + $0x48] sm:$0xff]
  %v82 = vld [vmem:[%s6 + $0x50] sm:$0xff]
  %v83 = vld [vmem:[%s6 + $0x58] sm:$0xff]
  %v84 = vld [vmem:[%s6 + $0x60] sm:$0xff]
  %v85 = vld [vmem:[%s6 + $0x68] sm:$0xff]
  %v86 = vld [vmem:[%s6 + $0x70] sm:$0xff]
  %v87 = vld [vmem:[%s6 + $0x78] sm:$0xff]
  %v88 = vld [vmem:[%s6 + $0x80] sm:$0xff]
  %v89 = vld [vmem:[%s6 + $0x88] sm:$0xff]
  %v90 = vld [vmem:[%s6 + $0x90] sm:$0xff]
  %v91 = vld [vmem:[%s6 + $0x98] sm:$0xff]
  %v92 = vld [vmem:[%s6 + $0xa0] sm:$0xff]
  %v93 = vld [vmem:[%s6 + $0xa8] sm:$0xff]
  %v94 = vld [vmem:[%s6 + $0xb0] sm:$0xff]
  %v95 = vld [vmem:[%s6 + $0xb8] sm:$0xff]
  %v96 = vld [vmem:[%s6 + $0xc0] sm:$0xff]
  %v97 = vld [vmem:[%s6 + $0xc8] sm:$0xff]
  %v98 = vld [vmem:[%s6 + $0xd0] sm:$0xff]
  %v99 = vld [vmem:[%s6 + $0xd8] sm:$0xff]
  %v100 = vld [vmem:[%s6 + $0xe0] sm:$0xff]
  %v101 = vld [vmem:[%s6 + $0xe8] sm:$0xff]
  %v102 = vld [vmem:[%s6 + $0xf0] sm:$0xff]
  %v103 = vld [vmem:[%s6 + $0xf8] sm:$0xff]
  %v104 = vld [vmem:[%s7] sm:$0xff]
  %v105 = vld [vmem:[%s7 + $0x8] sm:$0xff]
  %v106 = vld [vmem:[%s7 + $0x10] sm:$0xff]
  %v107 = vld [vmem:[%s7 + $0x18] sm:$0xff]
  %v108 = vld [vmem:[%s7 + $0x20] sm:$0xff]
  %v109 = vld [vmem:[%s7 + $0x28] sm:$0xff]
  %v110 = vld [vmem:[%s7 + $0x30] sm:$0xff]
  %v111 = vld [vmem:[%s7 + $0x38] sm:$0xff]
  %v112 = vld [vmem:[%s7 + $0x40] sm:$0xff]
  %v113 = vld [vmem:[%s7 + $0x48] sm:$0xff]
  %v114 = vld [vmem:[%s7 + $0x50] sm:$0xff]
  %v115 = vld [vmem:[%s7 + $0x58] sm:$0xff]
  %v116 = vld [vmem:[%s7 + $0x60] sm:$0xff]
  %v117 = vld [vmem:[%s7 + $0x68] sm:$0xff]
  %v118 = vld [vmem:[%s7 + $0x70] sm:$0xff]
  %v119 = vld [vmem:[%s7 + $0x78] sm:$0xff]
  %v120 = vld [vmem:[%s7 + $0x80] sm:$0xff]
  %v121 = vld [vmem:[%s7 + $0x88] sm:$0xff]
  %v122 = vld [vmem:[%s7 + $0x90] sm:$0xff]
  %v123 = vld [vmem:[%s7 + $0x98] sm:$0xff]
  %v124 = vld [vmem:[%s7 + $0xa0] sm:$0xff]
  %v125 = vld [vmem:[%s7 + $0xa8] sm:$0xff]
  %v126 = vld [vmem:[%s7 + $0xb0] sm:$0xff]
  %v127 = vld [vmem:[%s7 + $0xb8] sm:$0xff]
  %v128 = vld [vmem:[%s7 + $0xc0] sm:$0xff]
  %v129 = vld [vmem:[%s7 + $0xc8] sm:$0xff]
  %v130 = vld [vmem:[%s7 + $0xd0] sm:$0xff]
  %v131 = vld [vmem:[%s7 + $0xd8] sm:$0xff]
  %v132 = vld [vmem:[%s7 + $0xe0] sm:$0xff]
  %v133 = vld [vmem:[%s7 + $0xe8] sm:$0xff]
  %v134 = vld [vmem:[%s7 + $0xf0] sm:$0xff]
  %v135 = vld [vmem:[%s7 + $0xf8] sm:$0xff]
  %v136 = vld [vmem:[%s7 + $0x100] sm:$0xff]
  %v137 = vld [vmem:[%s7 + $0x108] sm:$0xff]
  %v138 = vld [vmem:[%s7 + $0x110] sm:$0xff]
  %v139 = vld [vmem:[%s7 + $0x118] sm:$0xff]
  %v140 = vld [vmem:[%s7 + $0x120] sm:$0xff]
  %v141 = vld [vmem:[%s7 + $0x128] sm:$0xff]
  %v142 = vld [vmem:[%s7 + $0x130] sm:$0xff]
  %v143 = vld [vmem:[%s7 + $0x138] sm:$0xff]
  %v144 = vld [vmem:[%s7 + $0x140] sm:$0xff]
  %v145 = vld [vmem:[%s7 + $0x148] sm:$0xff]
  %v146 = vld [vmem:[%s7 + $0x150] sm:$0xff]
  %v147 = vld [vmem:[%s7 + $0x158] sm:$0xff]
  %v148 = vld [vmem:[%s7 + $0x160] sm:$0xff]
  %v149 = vld [vmem:[%s7 + $0x168] sm:$0xff]
  %v150 = vld [vmem:[%s7 + $0x170] sm:$0xff]
  %v151 = vld [vmem:[%s7 + $0x178] sm:$0xff]
  %v152 = vld [vmem:[%s7 + $0x180] sm:$0xff]
  %v153 = vld [vmem:[%s7 + $0x188] sm:$0xff]
  %v154 = vld [vmem:[%s7 + $0x190] sm:$0xff]
  %v155 = vld [vmem:[%s7 + $0x198] sm:$0xff]
  %v156 = vld [vmem:[%s7 + $0x1a0] sm:$0xff]
  %v157 = vld [vmem:[%s7 + $0x1a8] sm:$0xff]
  %v158 = vld [vmem:[%s7 + $0x1b0] sm:$0xff]
  %v159 = vld [vmem:[%s7 + $0x1b8] sm:$0xff]
  %v160 = vld [vmem:[%s7 + $0x1c0] sm:$0xff]
  %v161 = vld [vmem:[%s7 + $0x1c8] sm:$0xff]
  %v162 = vld [vmem:[%s7 + $0x1d0] sm:$0xff]
  %v163 = vld [vmem:[%s7 + $0x1d8] sm:$0xff]
  %v164 = vld [vmem:[%s7 + $0x1e0] sm:$0xff]
  %v165 = vld [vmem:[%s7 + $0x1e8] sm:$0xff]
  %v166 = vld [vmem:[%s7 + $0x1f0] sm:$0xff]
  %v167 = vld [vmem:[%s7 + $0x1f8] sm:$0xff]
  %v168 = vld [vmem:[%s7 + $0x200] sm:$0xff]
  %v169 = vld [vmem:[%s7 + $0x208] sm:$0xff]
  %v170 = vld [vmem:[%s7 + $0x210] sm:$0xff]
  %v171 = vld [vmem:[%s7 + $0x218] sm:$0xff]
  %v172 = vld [vmem:[%s7 + $0x220] sm:$0xff]
  %v173 = vld [vmem:[%s7 + $0x228] sm:$0xff]
  %v174 = vld [vmem:[%s7 + $0x230] sm:$0xff]
  %v175 = vld [vmem:[%s7 + $0x238] sm:$0xff]
  %v176 = vld [vmem:[%s7 + $0x240] sm:$0xff]
  %v177 = vld [vmem:[%s7 + $0x248] sm:$0xff]
  %v178 = vld [vmem:[%s7 + $0x250] sm:$0xff]
  %v179 = vld [vmem:[%s7 + $0x258] sm:$0xff]
  %v180 = vld [vmem:[%s7 + $0x260] sm:$0xff]
  %v181 = vld [vmem:[%s7 + $0x268] sm:$0xff]
  %v182 = vld [vmem:[%s7 + $0x270] sm:$0xff]
  %v183 = vld [vmem:[%s7 + $0x278] sm:$0xff]
  %v184 = vld [vmem:[%s7 + $0x280] sm:$0xff]
  %v185 = vld [vmem:[%s7 + $0x288] sm:$0xff]
  %v186 = vld [vmem:[%s7 + $0x290] sm:$0xff]
  %v187 = vld [vmem:[%s7 + $0x298] sm:$0xff]
  %v188 = vld [vmem:[%s7 + $0x2a0] sm:$0xff]
  %v189 = vld [vmem:[%s7 + $0x2a8] sm:$0xff]
  %v190 = vld [vmem:[%s7 + $0x2b0] sm:$0xff]
  %v191 = vld [vmem:[%s7 + $0x2b8] sm:$0xff]
  %v192 = vld [vmem:[%s7 + $0x2c0] sm:$0xff]
  %v193 = vld [vmem:[%s7 + $0x2c8] sm:$0xff]
  %v194 = vld [vmem:[%s7 + $0x2d0] sm:$0xff]
  %v195 = vld [vmem:[%s7 + $0x2d8] sm:$0xff]
  %v196 = vld [vmem:[%s7 + $0x2e0] sm:$0xff]
  %v197 = vld [vmem:[%s7 + $0x2e8] sm:$0xff]
  %v198 = vld [vmem:[%s7 + $0x2f0] sm:$0xff]
  %v199 = vld [vmem:[%s7 + $0x2f8] sm:$0xff]
  %v200 = vld [vmem:[%s7 + $0x300] sm:$0xff]
  %v201 = vld [vmem:[%s7 + $0x308] sm:$0xff]
  %v202 = vld [vmem:[%s7 + $0x310] sm:$0xff]
  %v203 = vld [vmem:[%s7 + $0x318] sm:$0xff]
  %v204 = vld [vmem:[%s7 + $0x320] sm:$0xff]
  %v205 = vld [vmem:[%s7 + $0x328] sm:$0xff]
  %v206 = vld [vmem:[%s7 + $0x330] sm:$0xff]
  %v207 = vld [vmem:[%s7 + $0x338] sm:$0xff]
  %v208 = vld [vmem:[%s7 + $0x340] sm:$0xff]
  %v209 = vld [vmem:[%s7 + $0x348] sm:$0xff]
  %v210 = vld [vmem:[%s7 + $0x350] sm:$0xff]
  %v211 = vld [vmem:[%s7 + $0x358] sm:$0xff]
  %v212 = vld [vmem:[%s7 + $0x360] sm:$0xff]
  %v213 = vld [vmem:[%s7 + $0x368] sm:$0xff]
  %v214 = vld [vmem:[%s7 + $0x370] sm:$0xff]
  %v215 = vld [vmem:[%s7 + $0x378] sm:$0xff]
  %v216 = vld [vmem:[%s7 + $0x380] sm:$0xff]
  %v217 = vld [vmem:[%s7 + $0x388] sm:$0xff]
  %v218 = vld [vmem:[%s7 + $0x390] sm:$0xff]
  %v219 = vld [vmem:[%s7 + $0x398] sm:$0xff]
  %v220 = vld [vmem:[%s7 + $0x3a0] sm:$0xff]
  %v221 = vld [vmem:[%s7 + $0x3a8] sm:$0xff]
  %v222 = vld [vmem:[%s7 + $0x3b0] sm:$0xff]
  %v223 = vld [vmem:[%s7 + $0x3b8] sm:$0xff]
  %v224 = vld [vmem:[%s7 + $0x3c0] sm:$0xff]
  %v225 = vld [vmem:[%s7 + $0x3c8] sm:$0xff]
  %v226 = vld [vmem:[%s7 + $0x3d0] sm:$0xff]
  %v227 = vld [vmem:[%s7 + $0x3d8] sm:$0xff]
  %v228 = vld [vmem:[%s7 + $0x3e0] sm:$0xff]
  %v229 = vld [vmem:[%s7 + $0x3e8] sm:$0xff]
  %v230 = vld [vmem:[%s7 + $0x3f0] sm:$0xff]
  %v231 = vld [vmem:[%s7 + $0x3f8] sm:$0xff]
  %v233 = vperm.slane %v34, 0
  %v235 = vmul.f32 %v32, %v233
  %vm236 = vcmask 261120
  %v237 = vsel %vm236, %v235, 0.0
  %238 = vadd.xlane.f32.xlu0 %v237
  %v239 = vpop.xlane.xlu0 %238
  %v240 = vmul.f32 %v33, %v233
  %v241 = vsel %vm236, %v240, 0.0
  %242 = vadd.xlane.f32.xlu0 %v241
  %v243 = vpop.xlane.xlu0 %242
  %v244 = vadd.f32 %v239, %v243
  %245 = vrot.lane.b32.xlu0 %v233, 32
  %v246 = vpop.permute.xlu0 %245
  %v248 = vmul.f32 %v33, %v246
  %250 = vrot.lane.b32.xlu0 %v248, 96
  %v251 = vpop.permute.xlu0 %250
  %v253 = vsel %vm236, %v251, 0.0
  %254 = vadd.xlane.f32.xlu0 %v253
  %v255 = vpop.xlane.xlu0 %254
  %v256 = vadd.f32 %v239, %v255
  %257 = vrot.lane.b32.xlu0 %v233, 64
  %v258 = vpop.permute.xlu0 %257
  %v260 = vmul.f32 %v33, %v258
  %262 = vrot.lane.b32.xlu0 %v260, 64
  %v263 = vpop.permute.xlu0 %262
  %v265 = vsel %vm236, %v263, 0.0
  %266 = vadd.xlane.f32.xlu0 %v265
  %v267 = vpop.xlane.xlu0 %266
  %v268 = vadd.f32 %v239, %v267
  %v269 = vmax.f32 %v244, %v256
  %v270 = vmax.f32 %v269, %v268
  %v271 = vsub.f32 %v244, %v270
  %v272 = vmul.f32 %v271, 1.442695
  %v273 = vpow.pop %v272
  %v274 = vsub.f32 %v256, %v270
  %v275 = vmul.f32 %v274, 1.442695
  %v276 = vpow.pop %v275
  %v277 = vsub.f32 %v268, %v270
  %v278 = vmul.f32 %v277, 1.442695
  %v279 = vpow.pop %v278
  %v280 = vadd.f32 %v273, %v276
  %v281 = vadd.f32 %v280, %v279
  %v282 = vrcp.pop %v281
  %v283 = vmul.f32 %v273, %v282
  %v284 = vmul.f32 %v276, %v282
  %v285 = vmul.f32 %v279, %v282
  %v286 = vmul.f32 %v283, %v33
  %v287 = vmul.f32 %v284, %v33
  %289 = vrot.lane.b32.xlu0 %v287, 96
  %v290 = vpop.permute.xlu0 %289
  %v292 = vadd.f32 %v286, %v290
  %v293 = vmul.f32 %v285, %v33
  %295 = vrot.lane.b32.xlu0 %v293, 64
  %v296 = vpop.permute.xlu0 %295
  %v298 = vadd.f32 %v292, %v296
  %v300 = vsel %vm236, %v32, 0
  %302 = vmatpush.msra.mxu0 0.0
  %303 = vmatpush.msra.mxu0 0.0
  %304 = vmatpush.msra.mxu0 0.0
  %305 = vmatpush.msra.mxu0 0.0
  %306 = vmatpush.msra.mxu0 0.0
  %307 = vmatpush.msra.mxu0 0.0
  %308 = vmatpush.msra.mxu0 0.0
  %309 = vmatpush.msra.mxu0 0.0
  %310 = vmatpush.msra.mxu0 0.0
  %311 = vmatpush.msra.mxu0 0.0
  %312 = vmatpush.msra.mxu0 0.0
  %313 = vmatpush.msra.mxu0 0.0
  %314 = vmatpush.msra.mxu0 %v64
  %315 = vmatpush.msra.mxu0 %v56
  %316 = vmatpush.msra.mxu0 %v48
  %317 = vmatpush.msra.mxu0 %v40
  %318 = vmatmul.f32.gmra.mxu0 %v300
  %v319 = vpop.f32.mrf.mxu0
  %v320 = vadd.f32 0.0, %v319
  %321 = vdwg.mxu0
  %322 = vmatpush.msra.mxu0 0.0
  %323 = vmatpush.msra.mxu0 0.0
  %324 = vmatpush.msra.mxu0 0.0
  %325 = vmatpush.msra.mxu0 0.0
  %326 = vmatpush.msra.mxu0 0.0
  %327 = vmatpush.msra.mxu0 0.0
  %328 = vmatpush.msra.mxu0 0.0
  %329 = vmatpush.msra.mxu0 0.0
  %330 = vmatpush.msra.mxu0 0.0
  %331 = vmatpush.msra.mxu0 0.0
  %332 = vmatpush.msra.mxu0 0.0
  %333 = vmatpush.msra.mxu0 0.0
  %334 = vmatpush.msra.mxu0 %v65
  %335 = vmatpush.msra.mxu0 %v57
  %336 = vmatpush.msra.mxu0 %v49
  %337 = vmatpush.msra.mxu0 %v41
  %338 = vmatmul.f32.gmra.mxu0 %v300
  %v339 = vpop.f32.mrf.mxu0
  %v340 = vadd.f32 0.0, %v339
  %341 = vdwg.mxu0
  %342 = vmatpush.msra.mxu0 0.0
  %343 = vmatpush.msra.mxu0 0.0
  %344 = vmatpush.msra.mxu0 0.0
  %345 = vmatpush.msra.mxu0 0.0
  %346 = vmatpush.msra.mxu0 0.0
  %347 = vmatpush.msra.mxu0 0.0
  %348 = vmatpush.msra.mxu0 0.0
  %349 = vmatpush.msra.mxu0 0.0
  %350 = vmatpush.msra.mxu0 0.0
  %351 = vmatpush.msra.mxu0 0.0
  %352 = vmatpush.msra.mxu0 0.0
  %353 = vmatpush.msra.mxu0 0.0
  %354 = vmatpush.msra.mxu0 %v66
  %355 = vmatpush.msra.mxu0 %v58
  %356 = vmatpush.msra.mxu0 %v50
  %357 = vmatpush.msra.mxu0 %v42
  %358 = vmatmul.f32.gmra.mxu0 %v300
  %v359 = vpop.f32.mrf.mxu0
  %v360 = vadd.f32 0.0, %v359
  %361 = vdwg.mxu0
  %362 = vmatpush.msra.mxu0 0.0
  %363 = vmatpush.msra.mxu0 0.0
  %364 = vmatpush.msra.mxu0 0.0
  %365 = vmatpush.msra.mxu0 0.0
  %366 = vmatpush.msra.mxu0 0.0
  %367 = vmatpush.msra.mxu0 0.0
  %368 = vmatpush.msra.mxu0 0.0
  %369 = vmatpush.msra.mxu0 0.0
  %370 = vmatpush.msra.mxu0 0.0
  %371 = vmatpush.msra.mxu0 0.0
  %372 = vmatpush.msra.mxu0 0.0
  %373 = vmatpush.msra.mxu0 0.0
  %374 = vmatpush.msra.mxu0 %v67
  %375 = vmatpush.msra.mxu0 %v59
  %376 = vmatpush.msra.mxu0 %v51
  %377 = vmatpush.msra.mxu0 %v43
  %378 = vmatmul.f32.gmra.mxu0 %v300
  %v379 = vpop.f32.mrf.mxu0
  %v380 = vadd.f32 0.0, %v379
  %381 = vdwg.mxu0
  %382 = vmatpush.msra.mxu0 0.0
  %383 = vmatpush.msra.mxu0 0.0
  %384 = vmatpush.msra.mxu0 0.0
  %385 = vmatpush.msra.mxu0 0.0
  %386 = vmatpush.msra.mxu0 0.0
  %387 = vmatpush.msra.mxu0 0.0
  %388 = vmatpush.msra.mxu0 0.0
  %389 = vmatpush.msra.mxu0 0.0
  %390 = vmatpush.msra.mxu0 0.0
  %391 = vmatpush.msra.mxu0 0.0
  %392 = vmatpush.msra.mxu0 0.0
  %393 = vmatpush.msra.mxu0 0.0
  %394 = vmatpush.msra.mxu0 %v68
  %395 = vmatpush.msra.mxu0 %v60
  %396 = vmatpush.msra.mxu0 %v52
  %397 = vmatpush.msra.mxu0 %v44
  %398 = vmatmul.f32.gmra.mxu0 %v300
  %v399 = vpop.f32.mrf.mxu0
  %v400 = vadd.f32 0.0, %v399
  %401 = vdwg.mxu0
  %402 = vmatpush.msra.mxu0 0.0
  %403 = vmatpush.msra.mxu0 0.0
  %404 = vmatpush.msra.mxu0 0.0
  %405 = vmatpush.msra.mxu0 0.0
  %406 = vmatpush.msra.mxu0 0.0
  %407 = vmatpush.msra.mxu0 0.0
  %408 = vmatpush.msra.mxu0 0.0
  %409 = vmatpush.msra.mxu0 0.0
  %410 = vmatpush.msra.mxu0 0.0
  %411 = vmatpush.msra.mxu0 0.0
  %412 = vmatpush.msra.mxu0 0.0
  %413 = vmatpush.msra.mxu0 0.0
  %414 = vmatpush.msra.mxu0 %v69
  %415 = vmatpush.msra.mxu0 %v61
  %416 = vmatpush.msra.mxu0 %v53
  %417 = vmatpush.msra.mxu0 %v45
  %418 = vmatmul.f32.gmra.mxu0 %v300
  %v419 = vpop.f32.mrf.mxu0
  %v420 = vadd.f32 0.0, %v419
  %421 = vdwg.mxu0
  %422 = vmatpush.msra.mxu0 0.0
  %423 = vmatpush.msra.mxu0 0.0
  %424 = vmatpush.msra.mxu0 0.0
  %425 = vmatpush.msra.mxu0 0.0
  %426 = vmatpush.msra.mxu0 0.0
  %427 = vmatpush.msra.mxu0 0.0
  %428 = vmatpush.msra.mxu0 0.0
  %429 = vmatpush.msra.mxu0 0.0
  %430 = vmatpush.msra.mxu0 0.0
  %431 = vmatpush.msra.mxu0 0.0
  %432 = vmatpush.msra.mxu0 0.0
  %433 = vmatpush.msra.mxu0 0.0
  %434 = vmatpush.msra.mxu0 %v70
  %435 = vmatpush.msra.mxu0 %v62
  %436 = vmatpush.msra.mxu0 %v54
  %437 = vmatpush.msra.mxu0 %v46
  %438 = vmatmul.f32.gmra.mxu0 %v300
  %v439 = vpop.f32.mrf.mxu0
  %v440 = vadd.f32 0.0, %v439
  %441 = vdwg.mxu0
  %442 = vmatpush.msra.mxu0 0.0
  %443 = vmatpush.msra.mxu0 0.0
  %444 = vmatpush.msra.mxu0 0.0
  %445 = vmatpush.msra.mxu0 0.0
  %446 = vmatpush.msra.mxu0 0.0
  %447 = vmatpush.msra.mxu0 0.0
  %448 = vmatpush.msra.mxu0 0.0
  %449 = vmatpush.msra.mxu0 0.0
  %450 = vmatpush.msra.mxu0 0.0
  %451 = vmatpush.msra.mxu0 0.0
  %452 = vmatpush.msra.mxu0 0.0
  %453 = vmatpush.msra.mxu0 0.0
  %454 = vmatpush.msra.mxu0 %v71
  %455 = vmatpush.msra.mxu0 %v63
  %456 = vmatpush.msra.mxu0 %v55
  %457 = vmatpush.msra.mxu0 %v47
  %458 = vmatmul.f32.gmra.mxu0 %v300
  %v459 = vpop.f32.mrf.mxu0
  %v460 = vadd.f32 0.0, %v459
  %461 = vdwg.mxu0
  %462 = vmatpush.msra.mxu0 0.0
  %463 = vmatpush.msra.mxu0 0.0
  %464 = vmatpush.msra.mxu0 0.0
  %465 = vmatpush.msra.mxu0 0.0
  %466 = vmatpush.msra.mxu0 0.0
  %467 = vmatpush.msra.mxu0 0.0
  %468 = vmatpush.msra.mxu0 0.0
  %469 = vmatpush.msra.mxu0 0.0
  %470 = vmatpush.msra.mxu0 0.0
  %471 = vmatpush.msra.mxu0 0.0
  %472 = vmatpush.msra.mxu0 0.0
  %473 = vmatpush.msra.mxu0 0.0
  %474 = vmatpush.msra.mxu0 %v96
  %475 = vmatpush.msra.mxu0 %v88
  %476 = vmatpush.msra.mxu0 %v80
  %477 = vmatpush.msra.mxu0 %v72
  %478 = vmatmul.f32.gmra.mxu0 %v300
  %v479 = vpop.f32.mrf.mxu0
  %v480 = vadd.f32 0.0, %v479
  %481 = vdwg.mxu0
  %482 = vmatpush.msra.mxu0 0.0
  %483 = vmatpush.msra.mxu0 0.0
  %484 = vmatpush.msra.mxu0 0.0
  %485 = vmatpush.msra.mxu0 0.0
  %486 = vmatpush.msra.mxu0 0.0
  %487 = vmatpush.msra.mxu0 0.0
  %488 = vmatpush.msra.mxu0 0.0
  %489 = vmatpush.msra.mxu0 0.0
  %490 = vmatpush.msra.mxu0 0.0
  %491 = vmatpush.msra.mxu0 0.0
  %492 = vmatpush.msra.mxu0 0.0
  %493 = vmatpush.msra.mxu0 0.0
  %494 = vmatpush.msra.mxu0 %v97
  %495 = vmatpush.msra.mxu0 %v89
  %496 = vmatpush.msra.mxu0 %v81
  %497 = vmatpush.msra.mxu0 %v73
  %498 = vmatmul.f32.gmra.mxu0 %v300
  %v499 = vpop.f32.mrf.mxu0
  %v500 = vadd.f32 0.0, %v499
  %501 = vdwg.mxu0
  %502 = vmatpush.msra.mxu0 0.0
  %503 = vmatpush.msra.mxu0 0.0
  %504 = vmatpush.msra.mxu0 0.0
  %505 = vmatpush.msra.mxu0 0.0
  %506 = vmatpush.msra.mxu0 0.0
  %507 = vmatpush.msra.mxu0 0.0
  %508 = vmatpush.msra.mxu0 0.0
  %509 = vmatpush.msra.mxu0 0.0
  %510 = vmatpush.msra.mxu0 0.0
  %511 = vmatpush.msra.mxu0 0.0
  %512 = vmatpush.msra.mxu0 0.0
  %513 = vmatpush.msra.mxu0 0.0
  %514 = vmatpush.msra.mxu0 %v98
  %515 = vmatpush.msra.mxu0 %v90
  %516 = vmatpush.msra.mxu0 %v82
  %517 = vmatpush.msra.mxu0 %v74
  %518 = vmatmul.f32.gmra.mxu0 %v300
  %v519 = vpop.f32.mrf.mxu0
  %v520 = vadd.f32 0.0, %v519
  %521 = vdwg.mxu0
  %522 = vmatpush.msra.mxu0 0.0
  %523 = vmatpush.msra.mxu0 0.0
  %524 = vmatpush.msra.mxu0 0.0
  %525 = vmatpush.msra.mxu0 0.0
  %526 = vmatpush.msra.mxu0 0.0
  %527 = vmatpush.msra.mxu0 0.0
  %528 = vmatpush.msra.mxu0 0.0
  %529 = vmatpush.msra.mxu0 0.0
  %530 = vmatpush.msra.mxu0 0.0
  %531 = vmatpush.msra.mxu0 0.0
  %532 = vmatpush.msra.mxu0 0.0
  %533 = vmatpush.msra.mxu0 0.0
  %534 = vmatpush.msra.mxu0 %v99
  %535 = vmatpush.msra.mxu0 %v91
  %536 = vmatpush.msra.mxu0 %v83
  %537 = vmatpush.msra.mxu0 %v75
  %538 = vmatmul.f32.gmra.mxu0 %v300
  %v539 = vpop.f32.mrf.mxu0
  %v540 = vadd.f32 0.0, %v539
  %541 = vdwg.mxu0
  %542 = vmatpush.msra.mxu0 0.0
  %543 = vmatpush.msra.mxu0 0.0
  %544 = vmatpush.msra.mxu0 0.0
  %545 = vmatpush.msra.mxu0 0.0
  %546 = vmatpush.msra.mxu0 0.0
  %547 = vmatpush.msra.mxu0 0.0
  %548 = vmatpush.msra.mxu0 0.0
  %549 = vmatpush.msra.mxu0 0.0
  %550 = vmatpush.msra.mxu0 0.0
  %551 = vmatpush.msra.mxu0 0.0
  %552 = vmatpush.msra.mxu0 0.0
  %553 = vmatpush.msra.mxu0 0.0
  %554 = vmatpush.msra.mxu0 %v100
  %555 = vmatpush.msra.mxu0 %v92
  %556 = vmatpush.msra.mxu0 %v84
  %557 = vmatpush.msra.mxu0 %v76
  %558 = vmatmul.f32.gmra.mxu0 %v300
  %v559 = vpop.f32.mrf.mxu0
  %v560 = vadd.f32 0.0, %v559
  %561 = vdwg.mxu0
  %562 = vmatpush.msra.mxu0 0.0
  %563 = vmatpush.msra.mxu0 0.0
  %564 = vmatpush.msra.mxu0 0.0
  %565 = vmatpush.msra.mxu0 0.0
  %566 = vmatpush.msra.mxu0 0.0
  %567 = vmatpush.msra.mxu0 0.0
  %568 = vmatpush.msra.mxu0 0.0
  %569 = vmatpush.msra.mxu0 0.0
  %570 = vmatpush.msra.mxu0 0.0
  %571 = vmatpush.msra.mxu0 0.0
  %572 = vmatpush.msra.mxu0 0.0
  %573 = vmatpush.msra.mxu0 0.0
  %574 = vmatpush.msra.mxu0 %v101
  %575 = vmatpush.msra.mxu0 %v93
  %576 = vmatpush.msra.mxu0 %v85
  %577 = vmatpush.msra.mxu0 %v77
  %578 = vmatmul.f32.gmra.mxu0 %v300
  %v579 = vpop.f32.mrf.mxu0
  %v580 = vadd.f32 0.0, %v579
  %581 = vdwg.mxu0
  %582 = vmatpush.msra.mxu0 0.0
  %583 = vmatpush.msra.mxu0 0.0
  %584 = vmatpush.msra.mxu0 0.0
  %585 = vmatpush.msra.mxu0 0.0
  %586 = vmatpush.msra.mxu0 0.0
  %587 = vmatpush.msra.mxu0 0.0
  %588 = vmatpush.msra.mxu0 0.0
  %589 = vmatpush.msra.mxu0 0.0
  %590 = vmatpush.msra.mxu0 0.0
  %591 = vmatpush.msra.mxu0 0.0
  %592 = vmatpush.msra.mxu0 0.0
  %593 = vmatpush.msra.mxu0 0.0
  %594 = vmatpush.msra.mxu0 %v102
  %595 = vmatpush.msra.mxu0 %v94
  %596 = vmatpush.msra.mxu0 %v86
  %597 = vmatpush.msra.mxu0 %v78
  %598 = vmatmul.f32.gmra.mxu0 %v300
  %v599 = vpop.f32.mrf.mxu0
  %v600 = vadd.f32 0.0, %v599
  %601 = vdwg.mxu0
  %602 = vmatpush.msra.mxu0 0.0
  %603 = vmatpush.msra.mxu0 0.0
  %604 = vmatpush.msra.mxu0 0.0
  %605 = vmatpush.msra.mxu0 0.0
  %606 = vmatpush.msra.mxu0 0.0
  %607 = vmatpush.msra.mxu0 0.0
  %608 = vmatpush.msra.mxu0 0.0
  %609 = vmatpush.msra.mxu0 0.0
  %610 = vmatpush.msra.mxu0 0.0
  %611 = vmatpush.msra.mxu0 0.0
  %612 = vmatpush.msra.mxu0 0.0
  %613 = vmatpush.msra.mxu0 0.0
  %614 = vmatpush.msra.mxu0 %v103
  %615 = vmatpush.msra.mxu0 %v95
  %616 = vmatpush.msra.mxu0 %v87
  %617 = vmatpush.msra.mxu0 %v79
  %618 = vmatmul.f32.gmra.mxu0 %v300
  %v619 = vpop.f32.mrf.mxu0
  %v620 = vadd.f32 0.0, %v619
  %621 = vdwg.mxu0
  %v623 = vsel %vm236, %v298, 0
  %625 = vmatpush.msra.mxu0 0.0
  %626 = vmatpush.msra.mxu0 0.0
  %627 = vmatpush.msra.mxu0 0.0
  %628 = vmatpush.msra.mxu0 0.0
  %629 = vmatpush.msra.mxu0 0.0
  %630 = vmatpush.msra.mxu0 0.0
  %631 = vmatpush.msra.mxu0 0.0
  %632 = vmatpush.msra.mxu0 0.0
  %633 = vmatpush.msra.mxu0 0.0
  %634 = vmatpush.msra.mxu0 0.0
  %635 = vmatpush.msra.mxu0 0.0
  %636 = vmatpush.msra.mxu0 0.0
  %637 = vmatpush.msra.mxu0 %v64
  %638 = vmatpush.msra.mxu0 %v56
  %639 = vmatpush.msra.mxu0 %v48
  %640 = vmatpush.msra.mxu0 %v40
  %641 = vmatmul.f32.gmra.mxu0 %v623
  %v642 = vpop.f32.mrf.mxu0
  %v643 = vadd.f32 0.0, %v642
  %644 = vdwg.mxu0
  %645 = vmatpush.msra.mxu0 0.0
  %646 = vmatpush.msra.mxu0 0.0
  %647 = vmatpush.msra.mxu0 0.0
  %648 = vmatpush.msra.mxu0 0.0
  %649 = vmatpush.msra.mxu0 0.0
  %650 = vmatpush.msra.mxu0 0.0
  %651 = vmatpush.msra.mxu0 0.0
  %652 = vmatpush.msra.mxu0 0.0
  %653 = vmatpush.msra.mxu0 0.0
  %654 = vmatpush.msra.mxu0 0.0
  %655 = vmatpush.msra.mxu0 0.0
  %656 = vmatpush.msra.mxu0 0.0
  %657 = vmatpush.msra.mxu0 %v65
  %658 = vmatpush.msra.mxu0 %v57
  %659 = vmatpush.msra.mxu0 %v49
  %660 = vmatpush.msra.mxu0 %v41
  %661 = vmatmul.f32.gmra.mxu0 %v623
  %v662 = vpop.f32.mrf.mxu0
  %v663 = vadd.f32 0.0, %v662
  %664 = vdwg.mxu0
  %665 = vmatpush.msra.mxu0 0.0
  %666 = vmatpush.msra.mxu0 0.0
  %667 = vmatpush.msra.mxu0 0.0
  %668 = vmatpush.msra.mxu0 0.0
  %669 = vmatpush.msra.mxu0 0.0
  %670 = vmatpush.msra.mxu0 0.0
  %671 = vmatpush.msra.mxu0 0.0
  %672 = vmatpush.msra.mxu0 0.0
  %673 = vmatpush.msra.mxu0 0.0
  %674 = vmatpush.msra.mxu0 0.0
  %675 = vmatpush.msra.mxu0 0.0
  %676 = vmatpush.msra.mxu0 0.0
  %677 = vmatpush.msra.mxu0 %v66
  %678 = vmatpush.msra.mxu0 %v58
  %679 = vmatpush.msra.mxu0 %v50
  %680 = vmatpush.msra.mxu0 %v42
  %681 = vmatmul.f32.gmra.mxu0 %v623
  %v682 = vpop.f32.mrf.mxu0
  %v683 = vadd.f32 0.0, %v682
  %684 = vdwg.mxu0
  %685 = vmatpush.msra.mxu0 0.0
  %686 = vmatpush.msra.mxu0 0.0
  %687 = vmatpush.msra.mxu0 0.0
  %688 = vmatpush.msra.mxu0 0.0
  %689 = vmatpush.msra.mxu0 0.0
  %690 = vmatpush.msra.mxu0 0.0
  %691 = vmatpush.msra.mxu0 0.0
  %692 = vmatpush.msra.mxu0 0.0
  %693 = vmatpush.msra.mxu0 0.0
  %694 = vmatpush.msra.mxu0 0.0
  %695 = vmatpush.msra.mxu0 0.0
  %696 = vmatpush.msra.mxu0 0.0
  %697 = vmatpush.msra.mxu0 %v67
  %698 = vmatpush.msra.mxu0 %v59
  %699 = vmatpush.msra.mxu0 %v51
  %700 = vmatpush.msra.mxu0 %v43
  %701 = vmatmul.f32.gmra.mxu0 %v623
  %v702 = vpop.f32.mrf.mxu0
  %v703 = vadd.f32 0.0, %v702
  %704 = vdwg.mxu0
  %705 = vmatpush.msra.mxu0 0.0
  %706 = vmatpush.msra.mxu0 0.0
  %707 = vmatpush.msra.mxu0 0.0
  %708 = vmatpush.msra.mxu0 0.0
  %709 = vmatpush.msra.mxu0 0.0
  %710 = vmatpush.msra.mxu0 0.0
  %711 = vmatpush.msra.mxu0 0.0
  %712 = vmatpush.msra.mxu0 0.0
  %713 = vmatpush.msra.mxu0 0.0
  %714 = vmatpush.msra.mxu0 0.0
  %715 = vmatpush.msra.mxu0 0.0
  %716 = vmatpush.msra.mxu0 0.0
  %717 = vmatpush.msra.mxu0 %v68
  %718 = vmatpush.msra.mxu0 %v60
  %719 = vmatpush.msra.mxu0 %v52
  %720 = vmatpush.msra.mxu0 %v44
  %721 = vmatmul.f32.gmra.mxu0 %v623
  %v722 = vpop.f32.mrf.mxu0
  %v723 = vadd.f32 0.0, %v722
  %724 = vdwg.mxu0
  %725 = vmatpush.msra.mxu0 0.0
  %726 = vmatpush.msra.mxu0 0.0
  %727 = vmatpush.msra.mxu0 0.0
  %728 = vmatpush.msra.mxu0 0.0
  %729 = vmatpush.msra.mxu0 0.0
  %730 = vmatpush.msra.mxu0 0.0
  %731 = vmatpush.msra.mxu0 0.0
  %732 = vmatpush.msra.mxu0 0.0
  %733 = vmatpush.msra.mxu0 0.0
  %734 = vmatpush.msra.mxu0 0.0
  %735 = vmatpush.msra.mxu0 0.0
  %736 = vmatpush.msra.mxu0 0.0
  %737 = vmatpush.msra.mxu0 %v69
  %738 = vmatpush.msra.mxu0 %v61
  %739 = vmatpush.msra.mxu0 %v53
  %740 = vmatpush.msra.mxu0 %v45
  %741 = vmatmul.f32.gmra.mxu0 %v623
  %v742 = vpop.f32.mrf.mxu0
  %v743 = vadd.f32 0.0, %v742
  %744 = vdwg.mxu0
  %745 = vmatpush.msra.mxu0 0.0
  %746 = vmatpush.msra.mxu0 0.0
  %747 = vmatpush.msra.mxu0 0.0
  %748 = vmatpush.msra.mxu0 0.0
  %749 = vmatpush.msra.mxu0 0.0
  %750 = vmatpush.msra.mxu0 0.0
  %751 = vmatpush.msra.mxu0 0.0
  %752 = vmatpush.msra.mxu0 0.0
  %753 = vmatpush.msra.mxu0 0.0
  %754 = vmatpush.msra.mxu0 0.0
  %755 = vmatpush.msra.mxu0 0.0
  %756 = vmatpush.msra.mxu0 0.0
  %757 = vmatpush.msra.mxu0 %v70
  %758 = vmatpush.msra.mxu0 %v62
  %759 = vmatpush.msra.mxu0 %v54
  %760 = vmatpush.msra.mxu0 %v46
  %761 = vmatmul.f32.gmra.mxu0 %v623
  %v762 = vpop.f32.mrf.mxu0
  %v763 = vadd.f32 0.0, %v762
  %764 = vdwg.mxu0
  %765 = vmatpush.msra.mxu0 0.0
  %766 = vmatpush.msra.mxu0 0.0
  %767 = vmatpush.msra.mxu0 0.0
  %768 = vmatpush.msra.mxu0 0.0
  %769 = vmatpush.msra.mxu0 0.0
  %770 = vmatpush.msra.mxu0 0.0
  %771 = vmatpush.msra.mxu0 0.0
  %772 = vmatpush.msra.mxu0 0.0
  %773 = vmatpush.msra.mxu0 0.0
  %774 = vmatpush.msra.mxu0 0.0
  %775 = vmatpush.msra.mxu0 0.0
  %776 = vmatpush.msra.mxu0 0.0
  %777 = vmatpush.msra.mxu0 %v71
  %778 = vmatpush.msra.mxu0 %v63
  %779 = vmatpush.msra.mxu0 %v55
  %780 = vmatpush.msra.mxu0 %v47
  %781 = vmatmul.f32.gmra.mxu0 %v623
  %v782 = vpop.f32.mrf.mxu0
  %v783 = vadd.f32 0.0, %v782
  %784 = vdwg.mxu0
  %785 = vmatpush.msra.mxu0 0.0
  %786 = vmatpush.msra.mxu0 0.0
  %787 = vmatpush.msra.mxu0 0.0
  %788 = vmatpush.msra.mxu0 0.0
  %789 = vmatpush.msra.mxu0 0.0
  %790 = vmatpush.msra.mxu0 0.0
  %791 = vmatpush.msra.mxu0 0.0
  %792 = vmatpush.msra.mxu0 0.0
  %793 = vmatpush.msra.mxu0 0.0
  %794 = vmatpush.msra.mxu0 0.0
  %795 = vmatpush.msra.mxu0 0.0
  %796 = vmatpush.msra.mxu0 0.0
  %797 = vmatpush.msra.mxu0 %v96
  %798 = vmatpush.msra.mxu0 %v88
  %799 = vmatpush.msra.mxu0 %v80
  %800 = vmatpush.msra.mxu0 %v72
  %801 = vmatmul.f32.gmra.mxu0 %v623
  %v802 = vpop.f32.mrf.mxu0
  %v803 = vadd.f32 0.0, %v802
  %804 = vdwg.mxu0
  %805 = vmatpush.msra.mxu0 0.0
  %806 = vmatpush.msra.mxu0 0.0
  %807 = vmatpush.msra.mxu0 0.0
  %808 = vmatpush.msra.mxu0 0.0
  %809 = vmatpush.msra.mxu0 0.0
  %810 = vmatpush.msra.mxu0 0.0
  %811 = vmatpush.msra.mxu0 0.0
  %812 = vmatpush.msra.mxu0 0.0
  %813 = vmatpush.msra.mxu0 0.0
  %814 = vmatpush.msra.mxu0 0.0
  %815 = vmatpush.msra.mxu0 0.0
  %816 = vmatpush.msra.mxu0 0.0
  %817 = vmatpush.msra.mxu0 %v97
  %818 = vmatpush.msra.mxu0 %v89
  %819 = vmatpush.msra.mxu0 %v81
  %820 = vmatpush.msra.mxu0 %v73
  %821 = vmatmul.f32.gmra.mxu0 %v623
  %v822 = vpop.f32.mrf.mxu0
  %v823 = vadd.f32 0.0, %v822
  %824 = vdwg.mxu0
  %825 = vmatpush.msra.mxu0 0.0
  %826 = vmatpush.msra.mxu0 0.0
  %827 = vmatpush.msra.mxu0 0.0
  %828 = vmatpush.msra.mxu0 0.0
  %829 = vmatpush.msra.mxu0 0.0
  %830 = vmatpush.msra.mxu0 0.0
  %831 = vmatpush.msra.mxu0 0.0
  %832 = vmatpush.msra.mxu0 0.0
  %833 = vmatpush.msra.mxu0 0.0
  %834 = vmatpush.msra.mxu0 0.0
  %835 = vmatpush.msra.mxu0 0.0
  %836 = vmatpush.msra.mxu0 0.0
  %837 = vmatpush.msra.mxu0 %v98
  %838 = vmatpush.msra.mxu0 %v90
  %839 = vmatpush.msra.mxu0 %v82
  %840 = vmatpush.msra.mxu0 %v74
  %841 = vmatmul.f32.gmra.mxu0 %v623
  %v842 = vpop.f32.mrf.mxu0
  %v843 = vadd.f32 0.0, %v842
  %844 = vdwg.mxu0
  %845 = vmatpush.msra.mxu0 0.0
  %846 = vmatpush.msra.mxu0 0.0
  %847 = vmatpush.msra.mxu0 0.0
  %848 = vmatpush.msra.mxu0 0.0
  %849 = vmatpush.msra.mxu0 0.0
  %850 = vmatpush.msra.mxu0 0.0
  %851 = vmatpush.msra.mxu0 0.0
  %852 = vmatpush.msra.mxu0 0.0
  %853 = vmatpush.msra.mxu0 0.0
  %854 = vmatpush.msra.mxu0 0.0
  %855 = vmatpush.msra.mxu0 0.0
  %856 = vmatpush.msra.mxu0 0.0
  %857 = vmatpush.msra.mxu0 %v99
  %858 = vmatpush.msra.mxu0 %v91
  %859 = vmatpush.msra.mxu0 %v83
  %860 = vmatpush.msra.mxu0 %v75
  %861 = vmatmul.f32.gmra.mxu0 %v623
  %v862 = vpop.f32.mrf.mxu0
  %v863 = vadd.f32 0.0, %v862
  %864 = vdwg.mxu0
  %865 = vmatpush.msra.mxu0 0.0
  %866 = vmatpush.msra.mxu0 0.0
  %867 = vmatpush.msra.mxu0 0.0
  %868 = vmatpush.msra.mxu0 0.0
  %869 = vmatpush.msra.mxu0 0.0
  %870 = vmatpush.msra.mxu0 0.0
  %871 = vmatpush.msra.mxu0 0.0
  %872 = vmatpush.msra.mxu0 0.0
  %873 = vmatpush.msra.mxu0 0.0
  %874 = vmatpush.msra.mxu0 0.0
  %875 = vmatpush.msra.mxu0 0.0
  %876 = vmatpush.msra.mxu0 0.0
  %877 = vmatpush.msra.mxu0 %v100
  %878 = vmatpush.msra.mxu0 %v92
  %879 = vmatpush.msra.mxu0 %v84
  %880 = vmatpush.msra.mxu0 %v76
  %881 = vmatmul.f32.gmra.mxu0 %v623
  %v882 = vpop.f32.mrf.mxu0
  %v883 = vadd.f32 0.0, %v882
  %884 = vdwg.mxu0
  %885 = vmatpush.msra.mxu0 0.0
  %886 = vmatpush.msra.mxu0 0.0
  %887 = vmatpush.msra.mxu0 0.0
  %888 = vmatpush.msra.mxu0 0.0
  %889 = vmatpush.msra.mxu0 0.0
  %890 = vmatpush.msra.mxu0 0.0
  %891 = vmatpush.msra.mxu0 0.0
  %892 = vmatpush.msra.mxu0 0.0
  %893 = vmatpush.msra.mxu0 0.0
  %894 = vmatpush.msra.mxu0 0.0
  %895 = vmatpush.msra.mxu0 0.0
  %896 = vmatpush.msra.mxu0 0.0
  %897 = vmatpush.msra.mxu0 %v101
  %898 = vmatpush.msra.mxu0 %v93
  %899 = vmatpush.msra.mxu0 %v85
  %900 = vmatpush.msra.mxu0 %v77
  %901 = vmatmul.f32.gmra.mxu0 %v623
  %v902 = vpop.f32.mrf.mxu0
  %v903 = vadd.f32 0.0, %v902
  %904 = vdwg.mxu0
  %905 = vmatpush.msra.mxu0 0.0
  %906 = vmatpush.msra.mxu0 0.0
  %907 = vmatpush.msra.mxu0 0.0
  %908 = vmatpush.msra.mxu0 0.0
  %909 = vmatpush.msra.mxu0 0.0
  %910 = vmatpush.msra.mxu0 0.0
  %911 = vmatpush.msra.mxu0 0.0
  %912 = vmatpush.msra.mxu0 0.0
  %913 = vmatpush.msra.mxu0 0.0
  %914 = vmatpush.msra.mxu0 0.0
  %915 = vmatpush.msra.mxu0 0.0
  %916 = vmatpush.msra.mxu0 0.0
  %917 = vmatpush.msra.mxu0 %v102
  %918 = vmatpush.msra.mxu0 %v94
  %919 = vmatpush.msra.mxu0 %v86
  %920 = vmatpush.msra.mxu0 %v78
  %921 = vmatmul.f32.gmra.mxu0 %v623
  %v922 = vpop.f32.mrf.mxu0
  %v923 = vadd.f32 0.0, %v922
  %924 = vdwg.mxu0
  %925 = vmatpush.msra.mxu0 0.0
  %926 = vmatpush.msra.mxu0 0.0
  %927 = vmatpush.msra.mxu0 0.0
  %928 = vmatpush.msra.mxu0 0.0
  %929 = vmatpush.msra.mxu0 0.0
  %930 = vmatpush.msra.mxu0 0.0
  %931 = vmatpush.msra.mxu0 0.0
  %932 = vmatpush.msra.mxu0 0.0
  %933 = vmatpush.msra.mxu0 0.0
  %934 = vmatpush.msra.mxu0 0.0
  %935 = vmatpush.msra.mxu0 0.0
  %936 = vmatpush.msra.mxu0 0.0
  %937 = vmatpush.msra.mxu0 %v103
  %938 = vmatpush.msra.mxu0 %v95
  %939 = vmatpush.msra.mxu0 %v87
  %940 = vmatpush.msra.mxu0 %v79
  %941 = vmatmul.f32.gmra.mxu0 %v623
  %v942 = vpop.f32.mrf.mxu0
  %v943 = vadd.f32 0.0, %v942
  %944 = vdwg.mxu0
  %v945 = vmul.f32 %v320, %v803
  %v946 = vmul.f32 %v340, %v823
  %v947 = vmul.f32 %v360, %v843
  %v948 = vmul.f32 %v380, %v863
  %v949 = vmul.f32 %v400, %v883
  %v950 = vmul.f32 %v420, %v903
  %v951 = vmul.f32 %v440, %v923
  %v952 = vmul.f32 %v460, %v943
  %v953 = vmul.f32 %v643, %v480
  %v954 = vmul.f32 %v663, %v500
  %v955 = vmul.f32 %v683, %v520
  %v956 = vmul.f32 %v703, %v540
  %v957 = vmul.f32 %v723, %v560
  %v958 = vmul.f32 %v743, %v580
  %v959 = vmul.f32 %v763, %v600
  %v960 = vmul.f32 %v783, %v620
  %v961 = vadd.f32 %v945, %v953
  %v962 = vadd.f32 %v946, %v954
  %v963 = vadd.f32 %v947, %v955
  %v964 = vadd.f32 %v948, %v956
  %v965 = vadd.f32 %v949, %v957
  %v966 = vadd.f32 %v950, %v958
  %v967 = vadd.f32 %v951, %v959
  %v968 = vadd.f32 %v952, %v960
  %v969 = vand.u32 2147483647, %v961
  %v970 = vand.u32 2147483647, %v962
  %v971 = vand.u32 2147483647, %v963
  %v972 = vand.u32 2147483647, %v964
  %v973 = vand.u32 2147483647, %v965
  %v974 = vand.u32 2147483647, %v966
  %v975 = vand.u32 2147483647, %v967
  %v976 = vand.u32 2147483647, %v968
  %v977 = vadd.f32 %v969, 1e-12
  %v978 = vadd.f32 %v970, 1e-12
  %v979 = vadd.f32 %v971, 1e-12
  %v980 = vadd.f32 %v972, 1e-12
  %v981 = vadd.f32 %v973, 1e-12
  %v982 = vadd.f32 %v974, 1e-12
  %v983 = vadd.f32 %v975, 1e-12
  %v984 = vadd.f32 %v976, 1e-12
  %v985 = vrsqrt.pop %v977
  %v986 = vmul.f32 %v985, %v977
  %v987 = vmul.f32 %v986, %v985
  %v988 = vmul.f32 0.5, %v987
  %v989 = vsub.f32 1.5, %v988
  %v990 = vmul.f32 %v985, %v989
  %vm991 = vweird.f32 %v977
  %vm992 = vweird.f32 %v985
  %vm993 = vmor %vm991, %vm992
  %v994 = vsel %vm993, %v985, %v990
  %v995 = vrsqrt.pop %v978
  %v996 = vmul.f32 %v995, %v978
  %v997 = vmul.f32 %v996, %v995
  %v998 = vmul.f32 0.5, %v997
  %v999 = vsub.f32 1.5, %v998
  %v1000 = vmul.f32 %v995, %v999
  %vm1001 = vweird.f32 %v978
  %vm1002 = vweird.f32 %v995
  %vm1003 = vmor %vm1001, %vm1002
  %v1004 = vsel %vm1003, %v995, %v1000
  %v1005 = vrsqrt.pop %v979
  %v1006 = vmul.f32 %v1005, %v979
  %v1007 = vmul.f32 %v1006, %v1005
  %v1008 = vmul.f32 0.5, %v1007
  %v1009 = vsub.f32 1.5, %v1008
  %v1010 = vmul.f32 %v1005, %v1009
  %vm1011 = vweird.f32 %v979
  %vm1012 = vweird.f32 %v1005
  %vm1013 = vmor %vm1011, %vm1012
  %v1014 = vsel %vm1013, %v1005, %v1010
  %v1015 = vrsqrt.pop %v980
  %v1016 = vmul.f32 %v1015, %v980
  %v1017 = vmul.f32 %v1016, %v1015
  %v1018 = vmul.f32 0.5, %v1017
  %v1019 = vsub.f32 1.5, %v1018
  %v1020 = vmul.f32 %v1015, %v1019
  %vm1021 = vweird.f32 %v980
  %vm1022 = vweird.f32 %v1015
  %vm1023 = vmor %vm1021, %vm1022
  %v1024 = vsel %vm1023, %v1015, %v1020
  %v1025 = vrsqrt.pop %v981
  %v1026 = vmul.f32 %v1025, %v981
  %v1027 = vmul.f32 %v1026, %v1025
  %v1028 = vmul.f32 0.5, %v1027
  %v1029 = vsub.f32 1.5, %v1028
  %v1030 = vmul.f32 %v1025, %v1029
  %vm1031 = vweird.f32 %v981
  %vm1032 = vweird.f32 %v1025
  %vm1033 = vmor %vm1031, %vm1032
  %v1034 = vsel %vm1033, %v1025, %v1030
  %v1035 = vrsqrt.pop %v982
  %v1036 = vmul.f32 %v1035, %v982
  %v1037 = vmul.f32 %v1036, %v1035
  %v1038 = vmul.f32 0.5, %v1037
  %v1039 = vsub.f32 1.5, %v1038
  %v1040 = vmul.f32 %v1035, %v1039
  %vm1041 = vweird.f32 %v982
  %vm1042 = vweird.f32 %v1035
  %vm1043 = vmor %vm1041, %vm1042
  %v1044 = vsel %vm1043, %v1035, %v1040
  %v1045 = vrsqrt.pop %v983
  %v1046 = vmul.f32 %v1045, %v983
  %v1047 = vmul.f32 %v1046, %v1045
  %v1048 = vmul.f32 0.5, %v1047
  %v1049 = vsub.f32 1.5, %v1048
  %v1050 = vmul.f32 %v1045, %v1049
  %vm1051 = vweird.f32 %v983
  %vm1052 = vweird.f32 %v1045
  %vm1053 = vmor %vm1051, %vm1052
  %v1054 = vsel %vm1053, %v1045, %v1050
  %v1055 = vrsqrt.pop %v984
  %v1056 = vmul.f32 %v1055, %v984
  %v1057 = vmul.f32 %v1056, %v1055
  %v1058 = vmul.f32 0.5, %v1057
  %v1059 = vsub.f32 1.5, %v1058
  %v1060 = vmul.f32 %v1055, %v1059
  %vm1061 = vweird.f32 %v984
  %vm1062 = vweird.f32 %v1055
  %vm1063 = vmor %vm1061, %vm1062
  %v1064 = vsel %vm1063, %v1055, %v1060
  %v1065 = vmul.f32 %v961, %v994
  %v1066 = vmul.f32 %v962, %v1004
  %v1067 = vmul.f32 %v963, %v1014
  %v1068 = vmul.f32 %v964, %v1024
  %v1069 = vmul.f32 %v965, %v1034
  %v1070 = vmul.f32 %v966, %v1044
  %v1071 = vmul.f32 %v967, %v1054
  %v1072 = vmul.f32 %v968, %v1064
  %v1073 = vand.u32 2147483647, %v1065
  %v1074 = vand.u32 2147483647, %v1066
  %v1075 = vand.u32 2147483647, %v1067
  %v1076 = vand.u32 2147483647, %v1068
  %v1077 = vand.u32 2147483647, %v1069
  %v1078 = vand.u32 2147483647, %v1070
  %v1079 = vand.u32 2147483647, %v1071
  %v1080 = vand.u32 2147483647, %v1072
  %1081 = vmatpush.msra.mxu0 %v119
  %1082 = vmatpush.msra.mxu0 %v118
  %1083 = vmatpush.msra.mxu0 %v117
  %1084 = vmatpush.msra.mxu0 %v116
  %1085 = vmatpush.msra.mxu0 %v115
  %1086 = vmatpush.msra.mxu0 %v114
  %1087 = vmatpush.msra.mxu0 %v113
  %1088 = vmatpush.msra.mxu0 %v112
  %1089 = vmatpush.msra.mxu0 %v111
  %1090 = vmatpush.msra.mxu0 %v110
  %1091 = vmatpush.msra.mxu0 %v109
  %1092 = vmatpush.msra.mxu0 %v108
  %1093 = vmatpush.msra.mxu0 %v107
  %1094 = vmatpush.msra.mxu0 %v106
  %1095 = vmatpush.msra.mxu0 %v105
  %1096 = vmatpush.msra.mxu0 %v104
  %1097 = vmatmul.f32.gmra.mxu0 %v1073
  %v1098 = vpop.f32.mrf.mxu0
  %v1099 = vadd.f32 1e-07, %v1098
  %1100 = vdwg.mxu0
  %1101 = vmatpush.msra.mxu0 %v135
  %1102 = vmatpush.msra.mxu0 %v134
  %1103 = vmatpush.msra.mxu0 %v133
  %1104 = vmatpush.msra.mxu0 %v132
  %1105 = vmatpush.msra.mxu0 %v131
  %1106 = vmatpush.msra.mxu0 %v130
  %1107 = vmatpush.msra.mxu0 %v129
  %1108 = vmatpush.msra.mxu0 %v128
  %1109 = vmatpush.msra.mxu0 %v127
  %1110 = vmatpush.msra.mxu0 %v126
  %1111 = vmatpush.msra.mxu0 %v125
  %1112 = vmatpush.msra.mxu0 %v124
  %1113 = vmatpush.msra.mxu0 %v123
  %1114 = vmatpush.msra.mxu0 %v122
  %1115 = vmatpush.msra.mxu0 %v121
  %1116 = vmatpush.msra.mxu0 %v120
  %1117 = vmatmul.f32.gmra.mxu0 %v1074
  %v1118 = vpop.f32.mrf.mxu0
  %v1119 = vadd.f32 %v1099, %v1118
  %1120 = vdwg.mxu0
  %1121 = vmatpush.msra.mxu0 %v151
  %1122 = vmatpush.msra.mxu0 %v150
  %1123 = vmatpush.msra.mxu0 %v149
  %1124 = vmatpush.msra.mxu0 %v148
  %1125 = vmatpush.msra.mxu0 %v147
  %1126 = vmatpush.msra.mxu0 %v146
  %1127 = vmatpush.msra.mxu0 %v145
  %1128 = vmatpush.msra.mxu0 %v144
  %1129 = vmatpush.msra.mxu0 %v143
  %1130 = vmatpush.msra.mxu0 %v142
  %1131 = vmatpush.msra.mxu0 %v141
  %1132 = vmatpush.msra.mxu0 %v140
  %1133 = vmatpush.msra.mxu0 %v139
  %1134 = vmatpush.msra.mxu0 %v138
  %1135 = vmatpush.msra.mxu0 %v137
  %1136 = vmatpush.msra.mxu0 %v136
  %1137 = vmatmul.f32.gmra.mxu0 %v1075
  %v1138 = vpop.f32.mrf.mxu0
  %v1139 = vadd.f32 %v1119, %v1138
  %1140 = vdwg.mxu0
  %1141 = vmatpush.msra.mxu0 %v167
  %1142 = vmatpush.msra.mxu0 %v166
  %1143 = vmatpush.msra.mxu0 %v165
  %1144 = vmatpush.msra.mxu0 %v164
  %1145 = vmatpush.msra.mxu0 %v163
  %1146 = vmatpush.msra.mxu0 %v162
  %1147 = vmatpush.msra.mxu0 %v161
  %1148 = vmatpush.msra.mxu0 %v160
  %1149 = vmatpush.msra.mxu0 %v159
  %1150 = vmatpush.msra.mxu0 %v158
  %1151 = vmatpush.msra.mxu0 %v157
  %1152 = vmatpush.msra.mxu0 %v156
  %1153 = vmatpush.msra.mxu0 %v155
  %1154 = vmatpush.msra.mxu0 %v154
  %1155 = vmatpush.msra.mxu0 %v153
  %1156 = vmatpush.msra.mxu0 %v152
  %1157 = vmatmul.f32.gmra.mxu0 %v1076
  %v1158 = vpop.f32.mrf.mxu0
  %v1159 = vadd.f32 %v1139, %v1158
  %1160 = vdwg.mxu0
  %1161 = vmatpush.msra.mxu0 %v183
  %1162 = vmatpush.msra.mxu0 %v182
  %1163 = vmatpush.msra.mxu0 %v181
  %1164 = vmatpush.msra.mxu0 %v180
  %1165 = vmatpush.msra.mxu0 %v179
  %1166 = vmatpush.msra.mxu0 %v178
  %1167 = vmatpush.msra.mxu0 %v177
  %1168 = vmatpush.msra.mxu0 %v176
  %1169 = vmatpush.msra.mxu0 %v175
  %1170 = vmatpush.msra.mxu0 %v174
  %1171 = vmatpush.msra.mxu0 %v173
  %1172 = vmatpush.msra.mxu0 %v172
  %1173 = vmatpush.msra.mxu0 %v171
  %1174 = vmatpush.msra.mxu0 %v170
  %1175 = vmatpush.msra.mxu0 %v169
  %1176 = vmatpush.msra.mxu0 %v168
  %1177 = vmatmul.f32.gmra.mxu0 %v1077
  %v1178 = vpop.f32.mrf.mxu0
  %v1179 = vadd.f32 %v1159, %v1178
  %1180 = vdwg.mxu0
  %1181 = vmatpush.msra.mxu0 %v199
  %1182 = vmatpush.msra.mxu0 %v198
  %1183 = vmatpush.msra.mxu0 %v197
  %1184 = vmatpush.msra.mxu0 %v196
  %1185 = vmatpush.msra.mxu0 %v195
  %1186 = vmatpush.msra.mxu0 %v194
  %1187 = vmatpush.msra.mxu0 %v193
  %1188 = vmatpush.msra.mxu0 %v192
  %1189 = vmatpush.msra.mxu0 %v191
  %1190 = vmatpush.msra.mxu0 %v190
  %1191 = vmatpush.msra.mxu0 %v189
  %1192 = vmatpush.msra.mxu0 %v188
  %1193 = vmatpush.msra.mxu0 %v187
  %1194 = vmatpush.msra.mxu0 %v186
  %1195 = vmatpush.msra.mxu0 %v185
  %1196 = vmatpush.msra.mxu0 %v184
  %1197 = vmatmul.f32.gmra.mxu0 %v1078
  %v1198 = vpop.f32.mrf.mxu0
  %v1199 = vadd.f32 %v1179, %v1198
  %1200 = vdwg.mxu0
  %1201 = vmatpush.msra.mxu0 %v215
  %1202 = vmatpush.msra.mxu0 %v214
  %1203 = vmatpush.msra.mxu0 %v213
  %1204 = vmatpush.msra.mxu0 %v212
  %1205 = vmatpush.msra.mxu0 %v211
  %1206 = vmatpush.msra.mxu0 %v210
  %1207 = vmatpush.msra.mxu0 %v209
  %1208 = vmatpush.msra.mxu0 %v208
  %1209 = vmatpush.msra.mxu0 %v207
  %1210 = vmatpush.msra.mxu0 %v206
  %1211 = vmatpush.msra.mxu0 %v205
  %1212 = vmatpush.msra.mxu0 %v204
  %1213 = vmatpush.msra.mxu0 %v203
  %1214 = vmatpush.msra.mxu0 %v202
  %1215 = vmatpush.msra.mxu0 %v201
  %1216 = vmatpush.msra.mxu0 %v200
  %1217 = vmatmul.f32.gmra.mxu0 %v1079
  %v1218 = vpop.f32.mrf.mxu0
  %v1219 = vadd.f32 %v1199, %v1218
  %1220 = vdwg.mxu0
  %1221 = vmatpush.msra.mxu0 %v231
  %1222 = vmatpush.msra.mxu0 %v230
  %1223 = vmatpush.msra.mxu0 %v229
  %1224 = vmatpush.msra.mxu0 %v228
  %1225 = vmatpush.msra.mxu0 %v227
  %1226 = vmatpush.msra.mxu0 %v226
  %1227 = vmatpush.msra.mxu0 %v225
  %1228 = vmatpush.msra.mxu0 %v224
  %1229 = vmatpush.msra.mxu0 %v223
  %1230 = vmatpush.msra.mxu0 %v222
  %1231 = vmatpush.msra.mxu0 %v221
  %1232 = vmatpush.msra.mxu0 %v220
  %1233 = vmatpush.msra.mxu0 %v219
  %1234 = vmatpush.msra.mxu0 %v218
  %1235 = vmatpush.msra.mxu0 %v217
  %1236 = vmatpush.msra.mxu0 %v216
  %1237 = vmatmul.f32.gmra.mxu0 %v1080
  %v1238 = vpop.f32.mrf.mxu0
  %v1239 = vadd.f32 %v1219, %v1238
  %1240 = vdwg.mxu0
  %v1241 = vrcp.pop %v1239
  %v1243 = vsel %vm236, %v1241, 0
  %1245 = vmatpush.msra.mxu0 0.0
  %1246 = vmatpush.msra.mxu0 0.0
  %1247 = vmatpush.msra.mxu0 0.0
  %1248 = vmatpush.msra.mxu0 0.0
  %1249 = vmatpush.msra.mxu0 0.0
  %1250 = vmatpush.msra.mxu0 0.0
  %1251 = vmatpush.msra.mxu0 0.0
  %1252 = vmatpush.msra.mxu0 0.0
  %1253 = vmatpush.msra.mxu0 0.0
  %1254 = vmatpush.msra.mxu0 0.0
  %1255 = vmatpush.msra.mxu0 0.0
  %1256 = vmatpush.msra.mxu0 0.0
  %1257 = vmatpush.msra.mxu0 %v64
  %1258 = vmatpush.msra.mxu0 %v56
  %1259 = vmatpush.msra.mxu0 %v48
  %1260 = vmatpush.msra.mxu0 %v40
  %1261 = vmatmul.f32.gmra.mxu0 %v1243
  %v1262 = vpop.f32.mrf.mxu0
  %v1263 = vadd.f32 0.0, %v1262
  %1264 = vdwg.mxu0
  %1265 = vmatpush.msra.mxu0 0.0
  %1266 = vmatpush.msra.mxu0 0.0
  %1267 = vmatpush.msra.mxu0 0.0
  %1268 = vmatpush.msra.mxu0 0.0
  %1269 = vmatpush.msra.mxu0 0.0
  %1270 = vmatpush.msra.mxu0 0.0
  %1271 = vmatpush.msra.mxu0 0.0
  %1272 = vmatpush.msra.mxu0 0.0
  %1273 = vmatpush.msra.mxu0 0.0
  %1274 = vmatpush.msra.mxu0 0.0
  %1275 = vmatpush.msra.mxu0 0.0
  %1276 = vmatpush.msra.mxu0 0.0
  %1277 = vmatpush.msra.mxu0 %v65
  %1278 = vmatpush.msra.mxu0 %v57
  %1279 = vmatpush.msra.mxu0 %v49
  %1280 = vmatpush.msra.mxu0 %v41
  %1281 = vmatmul.f32.gmra.mxu0 %v1243
  %v1282 = vpop.f32.mrf.mxu0
  %v1283 = vadd.f32 0.0, %v1282
  %1284 = vdwg.mxu0
  %1285 = vmatpush.msra.mxu0 0.0
  %1286 = vmatpush.msra.mxu0 0.0
  %1287 = vmatpush.msra.mxu0 0.0
  %1288 = vmatpush.msra.mxu0 0.0
  %1289 = vmatpush.msra.mxu0 0.0
  %1290 = vmatpush.msra.mxu0 0.0
  %1291 = vmatpush.msra.mxu0 0.0
  %1292 = vmatpush.msra.mxu0 0.0
  %1293 = vmatpush.msra.mxu0 0.0
  %1294 = vmatpush.msra.mxu0 0.0
  %1295 = vmatpush.msra.mxu0 0.0
  %1296 = vmatpush.msra.mxu0 0.0
  %1297 = vmatpush.msra.mxu0 %v66
  %1298 = vmatpush.msra.mxu0 %v58
  %1299 = vmatpush.msra.mxu0 %v50
  %1300 = vmatpush.msra.mxu0 %v42
  %1301 = vmatmul.f32.gmra.mxu0 %v1243
  %v1302 = vpop.f32.mrf.mxu0
  %v1303 = vadd.f32 0.0, %v1302
  %1304 = vdwg.mxu0
  %1305 = vmatpush.msra.mxu0 0.0
  %1306 = vmatpush.msra.mxu0 0.0
  %1307 = vmatpush.msra.mxu0 0.0
  %1308 = vmatpush.msra.mxu0 0.0
  %1309 = vmatpush.msra.mxu0 0.0
  %1310 = vmatpush.msra.mxu0 0.0
  %1311 = vmatpush.msra.mxu0 0.0
  %1312 = vmatpush.msra.mxu0 0.0
  %1313 = vmatpush.msra.mxu0 0.0
  %1314 = vmatpush.msra.mxu0 0.0
  %1315 = vmatpush.msra.mxu0 0.0
  %1316 = vmatpush.msra.mxu0 0.0
  %1317 = vmatpush.msra.mxu0 %v67
  %1318 = vmatpush.msra.mxu0 %v59
  %1319 = vmatpush.msra.mxu0 %v51
  %1320 = vmatpush.msra.mxu0 %v43
  %1321 = vmatmul.f32.gmra.mxu0 %v1243
  %v1322 = vpop.f32.mrf.mxu0
  %v1323 = vadd.f32 0.0, %v1322
  %1324 = vdwg.mxu0
  %1325 = vmatpush.msra.mxu0 0.0
  %1326 = vmatpush.msra.mxu0 0.0
  %1327 = vmatpush.msra.mxu0 0.0
  %1328 = vmatpush.msra.mxu0 0.0
  %1329 = vmatpush.msra.mxu0 0.0
  %1330 = vmatpush.msra.mxu0 0.0
  %1331 = vmatpush.msra.mxu0 0.0
  %1332 = vmatpush.msra.mxu0 0.0
  %1333 = vmatpush.msra.mxu0 0.0
  %1334 = vmatpush.msra.mxu0 0.0
  %1335 = vmatpush.msra.mxu0 0.0
  %1336 = vmatpush.msra.mxu0 0.0
  %1337 = vmatpush.msra.mxu0 %v68
  %1338 = vmatpush.msra.mxu0 %v60
  %1339 = vmatpush.msra.mxu0 %v52
  %1340 = vmatpush.msra.mxu0 %v44
  %1341 = vmatmul.f32.gmra.mxu0 %v1243
  %v1342 = vpop.f32.mrf.mxu0
  %v1343 = vadd.f32 0.0, %v1342
  %1344 = vdwg.mxu0
  %1345 = vmatpush.msra.mxu0 0.0
  %1346 = vmatpush.msra.mxu0 0.0
  %1347 = vmatpush.msra.mxu0 0.0
  %1348 = vmatpush.msra.mxu0 0.0
  %1349 = vmatpush.msra.mxu0 0.0
  %1350 = vmatpush.msra.mxu0 0.0
  %1351 = vmatpush.msra.mxu0 0.0
  %1352 = vmatpush.msra.mxu0 0.0
  %1353 = vmatpush.msra.mxu0 0.0
  %1354 = vmatpush.msra.mxu0 0.0
  %1355 = vmatpush.msra.mxu0 0.0
  %1356 = vmatpush.msra.mxu0 0.0
  %1357 = vmatpush.msra.mxu0 %v69
  %1358 = vmatpush.msra.mxu0 %v61
  %1359 = vmatpush.msra.mxu0 %v53
  %1360 = vmatpush.msra.mxu0 %v45
  %1361 = vmatmul.f32.gmra.mxu0 %v1243
  %v1362 = vpop.f32.mrf.mxu0
  %v1363 = vadd.f32 0.0, %v1362
  %1364 = vdwg.mxu0
  %1365 = vmatpush.msra.mxu0 0.0
  %1366 = vmatpush.msra.mxu0 0.0
  %1367 = vmatpush.msra.mxu0 0.0
  %1368 = vmatpush.msra.mxu0 0.0
  %1369 = vmatpush.msra.mxu0 0.0
  %1370 = vmatpush.msra.mxu0 0.0
  %1371 = vmatpush.msra.mxu0 0.0
  %1372 = vmatpush.msra.mxu0 0.0
  %1373 = vmatpush.msra.mxu0 0.0
  %1374 = vmatpush.msra.mxu0 0.0
  %1375 = vmatpush.msra.mxu0 0.0
  %1376 = vmatpush.msra.mxu0 0.0
  %1377 = vmatpush.msra.mxu0 %v70
  %1378 = vmatpush.msra.mxu0 %v62
  %1379 = vmatpush.msra.mxu0 %v54
  %1380 = vmatpush.msra.mxu0 %v46
  %1381 = vmatmul.f32.gmra.mxu0 %v1243
  %v1382 = vpop.f32.mrf.mxu0
  %v1383 = vadd.f32 0.0, %v1382
  %1384 = vdwg.mxu0
  %1385 = vmatpush.msra.mxu0 0.0
  %1386 = vmatpush.msra.mxu0 0.0
  %1387 = vmatpush.msra.mxu0 0.0
  %1388 = vmatpush.msra.mxu0 0.0
  %1389 = vmatpush.msra.mxu0 0.0
  %1390 = vmatpush.msra.mxu0 0.0
  %1391 = vmatpush.msra.mxu0 0.0
  %1392 = vmatpush.msra.mxu0 0.0
  %1393 = vmatpush.msra.mxu0 0.0
  %1394 = vmatpush.msra.mxu0 0.0
  %1395 = vmatpush.msra.mxu0 0.0
  %1396 = vmatpush.msra.mxu0 0.0
  %1397 = vmatpush.msra.mxu0 %v71
  %1398 = vmatpush.msra.mxu0 %v63
  %1399 = vmatpush.msra.mxu0 %v55
  %1400 = vmatpush.msra.mxu0 %v47
  %1401 = vmatmul.f32.gmra.mxu0 %v1243
  %v1402 = vpop.f32.mrf.mxu0
  %v1403 = vadd.f32 0.0, %v1402
  %1404 = vdwg.mxu0
  %v1405 = vmul.f32 %v1065, %v1263
  %v1406 = vmul.f32 %v1066, %v1283
  %v1407 = vmul.f32 %v1067, %v1303
  %v1408 = vmul.f32 %v1068, %v1323
  %v1409 = vmul.f32 %v1069, %v1343
  %v1410 = vmul.f32 %v1070, %v1363
  %v1411 = vmul.f32 %v1071, %v1383
  %v1412 = vmul.f32 %v1072, %v1403
  %v1413 = vmul.f32 %v480, %v1405
  %v1414 = vmul.f32 %v500, %v1406
  %v1415 = vmul.f32 %v520, %v1407
  %v1416 = vmul.f32 %v540, %v1408
  %v1417 = vmul.f32 %v560, %v1409
  %v1418 = vmul.f32 %v580, %v1410
  %v1419 = vmul.f32 %v600, %v1411
  %v1420 = vmul.f32 %v620, %v1412
  %1421 = vmatpush.msra.mxu0 %v119
  %1422 = vmatpush.msra.mxu0 %v118
  %1423 = vmatpush.msra.mxu0 %v117
  %1424 = vmatpush.msra.mxu0 %v116
  %1425 = vmatpush.msra.mxu0 %v115
  %1426 = vmatpush.msra.mxu0 %v114
  %1427 = vmatpush.msra.mxu0 %v113
  %1428 = vmatpush.msra.mxu0 %v112
  %1429 = vmatpush.msra.mxu0 %v111
  %1430 = vmatpush.msra.mxu0 %v110
  %1431 = vmatpush.msra.mxu0 %v109
  %1432 = vmatpush.msra.mxu0 %v108
  %1433 = vmatpush.msra.mxu0 %v107
  %1434 = vmatpush.msra.mxu0 %v106
  %1435 = vmatpush.msra.mxu0 %v105
  %1436 = vmatpush.msra.mxu0 %v104
  %1437 = vmatmul.f32.gmra.mxu0 %v1413
  %v1438 = vpop.f32.mrf.mxu0
  %v1439 = vadd.f32 0.0, %v1438
  %1440 = vdwg.mxu0
  %1441 = vmatpush.msra.mxu0 %v135
  %1442 = vmatpush.msra.mxu0 %v134
  %1443 = vmatpush.msra.mxu0 %v133
  %1444 = vmatpush.msra.mxu0 %v132
  %1445 = vmatpush.msra.mxu0 %v131
  %1446 = vmatpush.msra.mxu0 %v130
  %1447 = vmatpush.msra.mxu0 %v129
  %1448 = vmatpush.msra.mxu0 %v128
  %1449 = vmatpush.msra.mxu0 %v127
  %1450 = vmatpush.msra.mxu0 %v126
  %1451 = vmatpush.msra.mxu0 %v125
  %1452 = vmatpush.msra.mxu0 %v124
  %1453 = vmatpush.msra.mxu0 %v123
  %1454 = vmatpush.msra.mxu0 %v122
  %1455 = vmatpush.msra.mxu0 %v121
  %1456 = vmatpush.msra.mxu0 %v120
  %1457 = vmatmul.f32.gmra.mxu0 %v1414
  %v1458 = vpop.f32.mrf.mxu0
  %v1459 = vadd.f32 %v1439, %v1458
  %1460 = vdwg.mxu0
  %1461 = vmatpush.msra.mxu0 %v151
  %1462 = vmatpush.msra.mxu0 %v150
  %1463 = vmatpush.msra.mxu0 %v149
  %1464 = vmatpush.msra.mxu0 %v148
  %1465 = vmatpush.msra.mxu0 %v147
  %1466 = vmatpush.msra.mxu0 %v146
  %1467 = vmatpush.msra.mxu0 %v145
  %1468 = vmatpush.msra.mxu0 %v144
  %1469 = vmatpush.msra.mxu0 %v143
  %1470 = vmatpush.msra.mxu0 %v142
  %1471 = vmatpush.msra.mxu0 %v141
  %1472 = vmatpush.msra.mxu0 %v140
  %1473 = vmatpush.msra.mxu0 %v139
  %1474 = vmatpush.msra.mxu0 %v138
  %1475 = vmatpush.msra.mxu0 %v137
  %1476 = vmatpush.msra.mxu0 %v136
  %1477 = vmatmul.f32.gmra.mxu0 %v1415
  %v1478 = vpop.f32.mrf.mxu0
  %v1479 = vadd.f32 %v1459, %v1478
  %1480 = vdwg.mxu0
  %1481 = vmatpush.msra.mxu0 %v167
  %1482 = vmatpush.msra.mxu0 %v166
  %1483 = vmatpush.msra.mxu0 %v165
  %1484 = vmatpush.msra.mxu0 %v164
  %1485 = vmatpush.msra.mxu0 %v163
  %1486 = vmatpush.msra.mxu0 %v162
  %1487 = vmatpush.msra.mxu0 %v161
  %1488 = vmatpush.msra.mxu0 %v160
  %1489 = vmatpush.msra.mxu0 %v159
  %1490 = vmatpush.msra.mxu0 %v158
  %1491 = vmatpush.msra.mxu0 %v157
  %1492 = vmatpush.msra.mxu0 %v156
  %1493 = vmatpush.msra.mxu0 %v155
  %1494 = vmatpush.msra.mxu0 %v154
  %1495 = vmatpush.msra.mxu0 %v153
  %1496 = vmatpush.msra.mxu0 %v152
  %1497 = vmatmul.f32.gmra.mxu0 %v1416
  %v1498 = vpop.f32.mrf.mxu0
  %v1499 = vadd.f32 %v1479, %v1498
  %1500 = vdwg.mxu0
  %1501 = vmatpush.msra.mxu0 %v183
  %1502 = vmatpush.msra.mxu0 %v182
  %1503 = vmatpush.msra.mxu0 %v181
  %1504 = vmatpush.msra.mxu0 %v180
  %1505 = vmatpush.msra.mxu0 %v179
  %1506 = vmatpush.msra.mxu0 %v178
  %1507 = vmatpush.msra.mxu0 %v177
  %1508 = vmatpush.msra.mxu0 %v176
  %1509 = vmatpush.msra.mxu0 %v175
  %1510 = vmatpush.msra.mxu0 %v174
  %1511 = vmatpush.msra.mxu0 %v173
  %1512 = vmatpush.msra.mxu0 %v172
  %1513 = vmatpush.msra.mxu0 %v171
  %1514 = vmatpush.msra.mxu0 %v170
  %1515 = vmatpush.msra.mxu0 %v169
  %1516 = vmatpush.msra.mxu0 %v168
  %1517 = vmatmul.f32.gmra.mxu0 %v1417
  %v1518 = vpop.f32.mrf.mxu0
  %v1519 = vadd.f32 %v1499, %v1518
  %1520 = vdwg.mxu0
  %1521 = vmatpush.msra.mxu0 %v199
  %1522 = vmatpush.msra.mxu0 %v198
  %1523 = vmatpush.msra.mxu0 %v197
  %1524 = vmatpush.msra.mxu0 %v196
  %1525 = vmatpush.msra.mxu0 %v195
  %1526 = vmatpush.msra.mxu0 %v194
  %1527 = vmatpush.msra.mxu0 %v193
  %1528 = vmatpush.msra.mxu0 %v192
  %1529 = vmatpush.msra.mxu0 %v191
  %1530 = vmatpush.msra.mxu0 %v190
  %1531 = vmatpush.msra.mxu0 %v189
  %1532 = vmatpush.msra.mxu0 %v188
  %1533 = vmatpush.msra.mxu0 %v187
  %1534 = vmatpush.msra.mxu0 %v186
  %1535 = vmatpush.msra.mxu0 %v185
  %1536 = vmatpush.msra.mxu0 %v184
  %1537 = vmatmul.f32.gmra.mxu0 %v1418
  %v1538 = vpop.f32.mrf.mxu0
  %v1539 = vadd.f32 %v1519, %v1538
  %1540 = vdwg.mxu0
  %1541 = vmatpush.msra.mxu0 %v215
  %1542 = vmatpush.msra.mxu0 %v214
  %1543 = vmatpush.msra.mxu0 %v213
  %1544 = vmatpush.msra.mxu0 %v212
  %1545 = vmatpush.msra.mxu0 %v211
  %1546 = vmatpush.msra.mxu0 %v210
  %1547 = vmatpush.msra.mxu0 %v209
  %1548 = vmatpush.msra.mxu0 %v208
  %1549 = vmatpush.msra.mxu0 %v207
  %1550 = vmatpush.msra.mxu0 %v206
  %1551 = vmatpush.msra.mxu0 %v205
  %1552 = vmatpush.msra.mxu0 %v204
  %1553 = vmatpush.msra.mxu0 %v203
  %1554 = vmatpush.msra.mxu0 %v202
  %1555 = vmatpush.msra.mxu0 %v201
  %1556 = vmatpush.msra.mxu0 %v200
  %1557 = vmatmul.f32.gmra.mxu0 %v1419
  %v1558 = vpop.f32.mrf.mxu0
  %v1559 = vadd.f32 %v1539, %v1558
  %1560 = vdwg.mxu0
  %1561 = vmatpush.msra.mxu0 %v231
  %1562 = vmatpush.msra.mxu0 %v230
  %1563 = vmatpush.msra.mxu0 %v229
  %1564 = vmatpush.msra.mxu0 %v228
  %1565 = vmatpush.msra.mxu0 %v227
  %1566 = vmatpush.msra.mxu0 %v226
  %1567 = vmatpush.msra.mxu0 %v225
  %1568 = vmatpush.msra.mxu0 %v224
  %1569 = vmatpush.msra.mxu0 %v223
  %1570 = vmatpush.msra.mxu0 %v222
  %1571 = vmatpush.msra.mxu0 %v221
  %1572 = vmatpush.msra.mxu0 %v220
  %1573 = vmatpush.msra.mxu0 %v219
  %1574 = vmatpush.msra.mxu0 %v218
  %1575 = vmatpush.msra.mxu0 %v217
  %1576 = vmatpush.msra.mxu0 %v216
  %1577 = vmatmul.f32.gmra.mxu0 %v1420
  %v1578 = vpop.f32.mrf.mxu0
  %v1579 = vadd.f32 %v1559, %v1578
  %1580 = vdwg.mxu0
  %v1581 = vpack.c.bf16 %v1579, %v1579
  %v1583 = vperm.slane %v39, 0
  %v1589 = vunpack.c.l.b16 %v35
  %v1590 = vunpack.c.l.b16 %v36
  %v1591 = vunpack.c.l.b16 %v37
  %v1592 = vunpack.c.l.b16 %v38
  %v1593 = vpack.c.b16 %v1590, %v1589
  %v1594 = vpack.c.b16 %v1592, %v1591
  %v1598 = vsel %vm236, %v1581, 0
  %1600 = vmatpush.bf16.msra.mxu0 0
  %1601 = vmatpush.bf16.msra.mxu0 0
  %1602 = vmatpush.bf16.msra.mxu0 0
  %1603 = vmatpush.bf16.msra.mxu0 0
  %1604 = vmatpush.bf16.msra.mxu0 0
  %1605 = vmatpush.bf16.msra.mxu0 0
  %1606 = vmatpush.bf16.msra.mxu0 %v1594
  %1607 = vmatpush.bf16.msra.mxu0 %v1593
  %1608 = vmatmul.bf16.gmra.mxu0 %v1598
  %v1609 = vpop.f32.mrf.mxu0
  %v1610 = vadd.f32 %v1583, %v1609
  %v1611 = vpop.f32.mrf.mxu0
  %1612 = vdwg.mxu0
  %v1614 = vsel %vm236, %v33, 0
  %1616 = vmatpush.msra.mxu0 0.0
  %1617 = vmatpush.msra.mxu0 0.0
  %1618 = vmatpush.msra.mxu0 0.0
  %1619 = vmatpush.msra.mxu0 0.0
  %1620 = vmatpush.msra.mxu0 0.0
  %1621 = vmatpush.msra.mxu0 0.0
  %1622 = vmatpush.msra.mxu0 0.0
  %1623 = vmatpush.msra.mxu0 0.0
  %1624 = vmatpush.msra.mxu0 0.0
  %1625 = vmatpush.msra.mxu0 0.0
  %1626 = vmatpush.msra.mxu0 0.0
  %1627 = vmatpush.msra.mxu0 0.0
  %1628 = vmatpush.msra.mxu0 %v96
  %1629 = vmatpush.msra.mxu0 %v88
  %1630 = vmatpush.msra.mxu0 %v80
  %1631 = vmatpush.msra.mxu0 %v72
  %1632 = vmatmul.f32.gmra.mxu0 %v1614
  %v1633 = vpop.f32.mrf.mxu0
  %v1634 = vadd.f32 0.0, %v1633
  %1635 = vdwg.mxu0
  %1636 = vmatpush.msra.mxu0 0.0
  %1637 = vmatpush.msra.mxu0 0.0
  %1638 = vmatpush.msra.mxu0 0.0
  %1639 = vmatpush.msra.mxu0 0.0
  %1640 = vmatpush.msra.mxu0 0.0
  %1641 = vmatpush.msra.mxu0 0.0
  %1642 = vmatpush.msra.mxu0 0.0
  %1643 = vmatpush.msra.mxu0 0.0
  %1644 = vmatpush.msra.mxu0 0.0
  %1645 = vmatpush.msra.mxu0 0.0
  %1646 = vmatpush.msra.mxu0 0.0
  %1647 = vmatpush.msra.mxu0 0.0
  %1648 = vmatpush.msra.mxu0 %v97
  %1649 = vmatpush.msra.mxu0 %v89
  %1650 = vmatpush.msra.mxu0 %v81
  %1651 = vmatpush.msra.mxu0 %v73
  %1652 = vmatmul.f32.gmra.mxu0 %v1614
  %v1653 = vpop.f32.mrf.mxu0
  %v1654 = vadd.f32 0.0, %v1653
  %1655 = vdwg.mxu0
  %1656 = vmatpush.msra.mxu0 0.0
  %1657 = vmatpush.msra.mxu0 0.0
  %1658 = vmatpush.msra.mxu0 0.0
  %1659 = vmatpush.msra.mxu0 0.0
  %1660 = vmatpush.msra.mxu0 0.0
  %1661 = vmatpush.msra.mxu0 0.0
  %1662 = vmatpush.msra.mxu0 0.0
  %1663 = vmatpush.msra.mxu0 0.0
  %1664 = vmatpush.msra.mxu0 0.0
  %1665 = vmatpush.msra.mxu0 0.0
  %1666 = vmatpush.msra.mxu0 0.0
  %1667 = vmatpush.msra.mxu0 0.0
  %1668 = vmatpush.msra.mxu0 %v98
  %1669 = vmatpush.msra.mxu0 %v90
  %1670 = vmatpush.msra.mxu0 %v82
  %1671 = vmatpush.msra.mxu0 %v74
  %1672 = vmatmul.f32.gmra.mxu0 %v1614
  %v1673 = vpop.f32.mrf.mxu0
  %v1674 = vadd.f32 0.0, %v1673
  %1675 = vdwg.mxu0
  %1676 = vmatpush.msra.mxu0 0.0
  %1677 = vmatpush.msra.mxu0 0.0
  %1678 = vmatpush.msra.mxu0 0.0
  %1679 = vmatpush.msra.mxu0 0.0
  %1680 = vmatpush.msra.mxu0 0.0
  %1681 = vmatpush.msra.mxu0 0.0
  %1682 = vmatpush.msra.mxu0 0.0
  %1683 = vmatpush.msra.mxu0 0.0
  %1684 = vmatpush.msra.mxu0 0.0
  %1685 = vmatpush.msra.mxu0 0.0
  %1686 = vmatpush.msra.mxu0 0.0
  %1687 = vmatpush.msra.mxu0 0.0
  %1688 = vmatpush.msra.mxu0 %v99
  %1689 = vmatpush.msra.mxu0 %v91
  %1690 = vmatpush.msra.mxu0 %v83
  %1691 = vmatpush.msra.mxu0 %v75
  %1692 = vmatmul.f32.gmra.mxu0 %v1614
  %v1693 = vpop.f32.mrf.mxu0
  %v1694 = vadd.f32 0.0, %v1693
  %1695 = vdwg.mxu0
  %1696 = vmatpush.msra.mxu0 0.0
  %1697 = vmatpush.msra.mxu0 0.0
  %1698 = vmatpush.msra.mxu0 0.0
  %1699 = vmatpush.msra.mxu0 0.0
  %1700 = vmatpush.msra.mxu0 0.0
  %1701 = vmatpush.msra.mxu0 0.0
  %1702 = vmatpush.msra.mxu0 0.0
  %1703 = vmatpush.msra.mxu0 0.0
  %1704 = vmatpush.msra.mxu0 0.0
  %1705 = vmatpush.msra.mxu0 0.0
  %1706 = vmatpush.msra.mxu0 0.0
  %1707 = vmatpush.msra.mxu0 0.0
  %1708 = vmatpush.msra.mxu0 %v100
  %1709 = vmatpush.msra.mxu0 %v92
  %1710 = vmatpush.msra.mxu0 %v84
  %1711 = vmatpush.msra.mxu0 %v76
  %1712 = vmatmul.f32.gmra.mxu0 %v1614
  %v1713 = vpop.f32.mrf.mxu0
  %v1714 = vadd.f32 0.0, %v1713
  %1715 = vdwg.mxu0
  %1716 = vmatpush.msra.mxu0 0.0
  %1717 = vmatpush.msra.mxu0 0.0
  %1718 = vmatpush.msra.mxu0 0.0
  %1719 = vmatpush.msra.mxu0 0.0
  %1720 = vmatpush.msra.mxu0 0.0
  %1721 = vmatpush.msra.mxu0 0.0
  %1722 = vmatpush.msra.mxu0 0.0
  %1723 = vmatpush.msra.mxu0 0.0
  %1724 = vmatpush.msra.mxu0 0.0
  %1725 = vmatpush.msra.mxu0 0.0
  %1726 = vmatpush.msra.mxu0 0.0
  %1727 = vmatpush.msra.mxu0 0.0
  %1728 = vmatpush.msra.mxu0 %v101
  %1729 = vmatpush.msra.mxu0 %v93
  %1730 = vmatpush.msra.mxu0 %v85
  %1731 = vmatpush.msra.mxu0 %v77
  %1732 = vmatmul.f32.gmra.mxu0 %v1614
  %v1733 = vpop.f32.mrf.mxu0
  %v1734 = vadd.f32 0.0, %v1733
  %1735 = vdwg.mxu0
  %1736 = vmatpush.msra.mxu0 0.0
  %1737 = vmatpush.msra.mxu0 0.0
  %1738 = vmatpush.msra.mxu0 0.0
  %1739 = vmatpush.msra.mxu0 0.0
  %1740 = vmatpush.msra.mxu0 0.0
  %1741 = vmatpush.msra.mxu0 0.0
  %1742 = vmatpush.msra.mxu0 0.0
  %1743 = vmatpush.msra.mxu0 0.0
  %1744 = vmatpush.msra.mxu0 0.0
  %1745 = vmatpush.msra.mxu0 0.0
  %1746 = vmatpush.msra.mxu0 0.0
  %1747 = vmatpush.msra.mxu0 0.0
  %1748 = vmatpush.msra.mxu0 %v102
  %1749 = vmatpush.msra.mxu0 %v94
  %1750 = vmatpush.msra.mxu0 %v86
  %1751 = vmatpush.msra.mxu0 %v78
  %1752 = vmatmul.f32.gmra.mxu0 %v1614
  %v1753 = vpop.f32.mrf.mxu0
  %v1754 = vadd.f32 0.0, %v1753
  %1755 = vdwg.mxu0
  %1756 = vmatpush.msra.mxu0 0.0
  %1757 = vmatpush.msra.mxu0 0.0
  %1758 = vmatpush.msra.mxu0 0.0
  %1759 = vmatpush.msra.mxu0 0.0
  %1760 = vmatpush.msra.mxu0 0.0
  %1761 = vmatpush.msra.mxu0 0.0
  %1762 = vmatpush.msra.mxu0 0.0
  %1763 = vmatpush.msra.mxu0 0.0
  %1764 = vmatpush.msra.mxu0 0.0
  %1765 = vmatpush.msra.mxu0 0.0
  %1766 = vmatpush.msra.mxu0 0.0
  %1767 = vmatpush.msra.mxu0 0.0
  %1768 = vmatpush.msra.mxu0 %v103
  %1769 = vmatpush.msra.mxu0 %v95
  %1770 = vmatpush.msra.mxu0 %v87
  %1771 = vmatpush.msra.mxu0 %v79
  %1772 = vmatmul.f32.gmra.mxu0 %v1614
  %v1773 = vpop.f32.mrf.mxu0
  %v1774 = vadd.f32 0.0, %v1773
  %1775 = vdwg.mxu0
  %v1776 = vmul.f32 %v1634, %v1405
  %v1777 = vmul.f32 %v1654, %v1406
  %v1778 = vmul.f32 %v1674, %v1407
  %v1779 = vmul.f32 %v1694, %v1408
  %v1780 = vmul.f32 %v1714, %v1409
  %v1781 = vmul.f32 %v1734, %v1410
  %v1782 = vmul.f32 %v1754, %v1411
  %v1783 = vmul.f32 %v1774, %v1412
  %1784 = vmatpush.msra.mxu0 %v119
  %1785 = vmatpush.msra.mxu0 %v118
  %1786 = vmatpush.msra.mxu0 %v117
  %1787 = vmatpush.msra.mxu0 %v116
  %1788 = vmatpush.msra.mxu0 %v115
  %1789 = vmatpush.msra.mxu0 %v114
  %1790 = vmatpush.msra.mxu0 %v113
  %1791 = vmatpush.msra.mxu0 %v112
  %1792 = vmatpush.msra.mxu0 %v111
  %1793 = vmatpush.msra.mxu0 %v110
  %1794 = vmatpush.msra.mxu0 %v109
  %1795 = vmatpush.msra.mxu0 %v108
  %1796 = vmatpush.msra.mxu0 %v107
  %1797 = vmatpush.msra.mxu0 %v106
  %1798 = vmatpush.msra.mxu0 %v105
  %1799 = vmatpush.msra.mxu0 %v104
  %1800 = vmatmul.f32.gmra.mxu0 %v1776
  %v1801 = vpop.f32.mrf.mxu0
  %v1802 = vadd.f32 0.0, %v1801
  %1803 = vdwg.mxu0
  %1804 = vmatpush.msra.mxu0 %v135
  %1805 = vmatpush.msra.mxu0 %v134
  %1806 = vmatpush.msra.mxu0 %v133
  %1807 = vmatpush.msra.mxu0 %v132
  %1808 = vmatpush.msra.mxu0 %v131
  %1809 = vmatpush.msra.mxu0 %v130
  %1810 = vmatpush.msra.mxu0 %v129
  %1811 = vmatpush.msra.mxu0 %v128
  %1812 = vmatpush.msra.mxu0 %v127
  %1813 = vmatpush.msra.mxu0 %v126
  %1814 = vmatpush.msra.mxu0 %v125
  %1815 = vmatpush.msra.mxu0 %v124
  %1816 = vmatpush.msra.mxu0 %v123
  %1817 = vmatpush.msra.mxu0 %v122
  %1818 = vmatpush.msra.mxu0 %v121
  %1819 = vmatpush.msra.mxu0 %v120
  %1820 = vmatmul.f32.gmra.mxu0 %v1777
  %v1821 = vpop.f32.mrf.mxu0
  %v1822 = vadd.f32 %v1802, %v1821
  %1823 = vdwg.mxu0
  %1824 = vmatpush.msra.mxu0 %v151
  %1825 = vmatpush.msra.mxu0 %v150
  %1826 = vmatpush.msra.mxu0 %v149
  %1827 = vmatpush.msra.mxu0 %v148
  %1828 = vmatpush.msra.mxu0 %v147
  %1829 = vmatpush.msra.mxu0 %v146
  %1830 = vmatpush.msra.mxu0 %v145
  %1831 = vmatpush.msra.mxu0 %v144
  %1832 = vmatpush.msra.mxu0 %v143
  %1833 = vmatpush.msra.mxu0 %v142
  %1834 = vmatpush.msra.mxu0 %v141
  %1835 = vmatpush.msra.mxu0 %v140
  %1836 = vmatpush.msra.mxu0 %v139
  %1837 = vmatpush.msra.mxu0 %v138
  %1838 = vmatpush.msra.mxu0 %v137
  %1839 = vmatpush.msra.mxu0 %v136
  %1840 = vmatmul.f32.gmra.mxu0 %v1778
  %v1841 = vpop.f32.mrf.mxu0
  %v1842 = vadd.f32 %v1822, %v1841
  %1843 = vdwg.mxu0
  %1844 = vmatpush.msra.mxu0 %v167
  %1845 = vmatpush.msra.mxu0 %v166
  %1846 = vmatpush.msra.mxu0 %v165
  %1847 = vmatpush.msra.mxu0 %v164
  %1848 = vmatpush.msra.mxu0 %v163
  %1849 = vmatpush.msra.mxu0 %v162
  %1850 = vmatpush.msra.mxu0 %v161
  %1851 = vmatpush.msra.mxu0 %v160
  %1852 = vmatpush.msra.mxu0 %v159
  %1853 = vmatpush.msra.mxu0 %v158
  %1854 = vmatpush.msra.mxu0 %v157
  %1855 = vmatpush.msra.mxu0 %v156
  %1856 = vmatpush.msra.mxu0 %v155
  %1857 = vmatpush.msra.mxu0 %v154
  %1858 = vmatpush.msra.mxu0 %v153
  %1859 = vmatpush.msra.mxu0 %v152
  %1860 = vmatmul.f32.gmra.mxu0 %v1779
  %v1861 = vpop.f32.mrf.mxu0
  %v1862 = vadd.f32 %v1842, %v1861
  %1863 = vdwg.mxu0
  %1864 = vmatpush.msra.mxu0 %v183
  %1865 = vmatpush.msra.mxu0 %v182
  %1866 = vmatpush.msra.mxu0 %v181
  %1867 = vmatpush.msra.mxu0 %v180
  %1868 = vmatpush.msra.mxu0 %v179
  %1869 = vmatpush.msra.mxu0 %v178
  %1870 = vmatpush.msra.mxu0 %v177
  %1871 = vmatpush.msra.mxu0 %v176
  %1872 = vmatpush.msra.mxu0 %v175
  %1873 = vmatpush.msra.mxu0 %v174
  %1874 = vmatpush.msra.mxu0 %v173
  %1875 = vmatpush.msra.mxu0 %v172
  %1876 = vmatpush.msra.mxu0 %v171
  %1877 = vmatpush.msra.mxu0 %v170
  %1878 = vmatpush.msra.mxu0 %v169
  %1879 = vmatpush.msra.mxu0 %v168
  %1880 = vmatmul.f32.gmra.mxu0 %v1780
  %v1881 = vpop.f32.mrf.mxu0
  %v1882 = vadd.f32 %v1862, %v1881
  %1883 = vdwg.mxu0
  %1884 = vmatpush.msra.mxu0 %v199
  %1885 = vmatpush.msra.mxu0 %v198
  %1886 = vmatpush.msra.mxu0 %v197
  %1887 = vmatpush.msra.mxu0 %v196
  %1888 = vmatpush.msra.mxu0 %v195
  %1889 = vmatpush.msra.mxu0 %v194
  %1890 = vmatpush.msra.mxu0 %v193
  %1891 = vmatpush.msra.mxu0 %v192
  %1892 = vmatpush.msra.mxu0 %v191
  %1893 = vmatpush.msra.mxu0 %v190
  %1894 = vmatpush.msra.mxu0 %v189
  %1895 = vmatpush.msra.mxu0 %v188
  %1896 = vmatpush.msra.mxu0 %v187
  %1897 = vmatpush.msra.mxu0 %v186
  %1898 = vmatpush.msra.mxu0 %v185
  %1899 = vmatpush.msra.mxu0 %v184
  %1900 = vmatmul.f32.gmra.mxu0 %v1781
  %v1901 = vpop.f32.mrf.mxu0
  %v1902 = vadd.f32 %v1882, %v1901
  %1903 = vdwg.mxu0
  %1904 = vmatpush.msra.mxu0 %v215
  %1905 = vmatpush.msra.mxu0 %v214
  %1906 = vmatpush.msra.mxu0 %v213
  %1907 = vmatpush.msra.mxu0 %v212
  %1908 = vmatpush.msra.mxu0 %v211
  %1909 = vmatpush.msra.mxu0 %v210
  %1910 = vmatpush.msra.mxu0 %v209
  %1911 = vmatpush.msra.mxu0 %v208
  %1912 = vmatpush.msra.mxu0 %v207
  %1913 = vmatpush.msra.mxu0 %v206
  %1914 = vmatpush.msra.mxu0 %v205
  %1915 = vmatpush.msra.mxu0 %v204
  %1916 = vmatpush.msra.mxu0 %v203
  %1917 = vmatpush.msra.mxu0 %v202
  %1918 = vmatpush.msra.mxu0 %v201
  %1919 = vmatpush.msra.mxu0 %v200
  %1920 = vmatmul.f32.gmra.mxu0 %v1782
  %v1921 = vpop.f32.mrf.mxu0
  %v1922 = vadd.f32 %v1902, %v1921
  %1923 = vdwg.mxu0
  %1924 = vmatpush.msra.mxu0 %v231
  %1925 = vmatpush.msra.mxu0 %v230
  %1926 = vmatpush.msra.mxu0 %v229
  %1927 = vmatpush.msra.mxu0 %v228
  %1928 = vmatpush.msra.mxu0 %v227
  %1929 = vmatpush.msra.mxu0 %v226
  %1930 = vmatpush.msra.mxu0 %v225
  %1931 = vmatpush.msra.mxu0 %v224
  %1932 = vmatpush.msra.mxu0 %v223
  %1933 = vmatpush.msra.mxu0 %v222
  %1934 = vmatpush.msra.mxu0 %v221
  %1935 = vmatpush.msra.mxu0 %v220
  %1936 = vmatpush.msra.mxu0 %v219
  %1937 = vmatpush.msra.mxu0 %v218
  %1938 = vmatpush.msra.mxu0 %v217
  %1939 = vmatpush.msra.mxu0 %v216
  %1940 = vmatmul.f32.gmra.mxu0 %v1783
  %v1941 = vpop.f32.mrf.mxu0
  %v1942 = vadd.f32 %v1922, %v1941
  %1943 = vdwg.mxu0
  %v1944 = vpack.c.bf16 %v1942, %v1942
  %v1946 = vsel %vm236, %v1944, 0
  %1948 = vmatpush.bf16.msra.mxu0 0
  %1949 = vmatpush.bf16.msra.mxu0 0
  %1950 = vmatpush.bf16.msra.mxu0 0
  %1951 = vmatpush.bf16.msra.mxu0 0
  %1952 = vmatpush.bf16.msra.mxu0 0
  %1953 = vmatpush.bf16.msra.mxu0 0
  %1954 = vmatpush.bf16.msra.mxu0 %v1594
  %1955 = vmatpush.bf16.msra.mxu0 %v1593
  %1956 = vmatmul.bf16.gmra.mxu0 %v1946
  %v1957 = vpop.f32.mrf.mxu0
  %v1958 = vadd.f32 %v1583, %v1957
  %v1959 = vpop.f32.mrf.mxu0
  %1960 = vdwg.mxu0
  %1961 = vrot.lane.b32.xlu0 %v33, 96
  %v1962 = vpop.permute.xlu0 %1961
  %v1963 = vsel %vm236, %v1962, 0
  %1965 = vmatpush.msra.mxu0 0.0
  %1966 = vmatpush.msra.mxu0 0.0
  %1967 = vmatpush.msra.mxu0 0.0
  %1968 = vmatpush.msra.mxu0 0.0
  %1969 = vmatpush.msra.mxu0 0.0
  %1970 = vmatpush.msra.mxu0 0.0
  %1971 = vmatpush.msra.mxu0 0.0
  %1972 = vmatpush.msra.mxu0 0.0
  %1973 = vmatpush.msra.mxu0 0.0
  %1974 = vmatpush.msra.mxu0 0.0
  %1975 = vmatpush.msra.mxu0 0.0
  %1976 = vmatpush.msra.mxu0 0.0
  %1977 = vmatpush.msra.mxu0 %v96
  %1978 = vmatpush.msra.mxu0 %v88
  %1979 = vmatpush.msra.mxu0 %v80
  %1980 = vmatpush.msra.mxu0 %v72
  %1981 = vmatmul.f32.gmra.mxu0 %v1963
  %v1982 = vpop.f32.mrf.mxu0
  %v1983 = vadd.f32 0.0, %v1982
  %1984 = vdwg.mxu0
  %1985 = vmatpush.msra.mxu0 0.0
  %1986 = vmatpush.msra.mxu0 0.0
  %1987 = vmatpush.msra.mxu0 0.0
  %1988 = vmatpush.msra.mxu0 0.0
  %1989 = vmatpush.msra.mxu0 0.0
  %1990 = vmatpush.msra.mxu0 0.0
  %1991 = vmatpush.msra.mxu0 0.0
  %1992 = vmatpush.msra.mxu0 0.0
  %1993 = vmatpush.msra.mxu0 0.0
  %1994 = vmatpush.msra.mxu0 0.0
  %1995 = vmatpush.msra.mxu0 0.0
  %1996 = vmatpush.msra.mxu0 0.0
  %1997 = vmatpush.msra.mxu0 %v97
  %1998 = vmatpush.msra.mxu0 %v89
  %1999 = vmatpush.msra.mxu0 %v81
  %2000 = vmatpush.msra.mxu0 %v73
  %2001 = vmatmul.f32.gmra.mxu0 %v1963
  %v2002 = vpop.f32.mrf.mxu0
  %v2003 = vadd.f32 0.0, %v2002
  %2004 = vdwg.mxu0
  %2005 = vmatpush.msra.mxu0 0.0
  %2006 = vmatpush.msra.mxu0 0.0
  %2007 = vmatpush.msra.mxu0 0.0
  %2008 = vmatpush.msra.mxu0 0.0
  %2009 = vmatpush.msra.mxu0 0.0
  %2010 = vmatpush.msra.mxu0 0.0
  %2011 = vmatpush.msra.mxu0 0.0
  %2012 = vmatpush.msra.mxu0 0.0
  %2013 = vmatpush.msra.mxu0 0.0
  %2014 = vmatpush.msra.mxu0 0.0
  %2015 = vmatpush.msra.mxu0 0.0
  %2016 = vmatpush.msra.mxu0 0.0
  %2017 = vmatpush.msra.mxu0 %v98
  %2018 = vmatpush.msra.mxu0 %v90
  %2019 = vmatpush.msra.mxu0 %v82
  %2020 = vmatpush.msra.mxu0 %v74
  %2021 = vmatmul.f32.gmra.mxu0 %v1963
  %v2022 = vpop.f32.mrf.mxu0
  %v2023 = vadd.f32 0.0, %v2022
  %2024 = vdwg.mxu0
  %2025 = vmatpush.msra.mxu0 0.0
  %2026 = vmatpush.msra.mxu0 0.0
  %2027 = vmatpush.msra.mxu0 0.0
  %2028 = vmatpush.msra.mxu0 0.0
  %2029 = vmatpush.msra.mxu0 0.0
  %2030 = vmatpush.msra.mxu0 0.0
  %2031 = vmatpush.msra.mxu0 0.0
  %2032 = vmatpush.msra.mxu0 0.0
  %2033 = vmatpush.msra.mxu0 0.0
  %2034 = vmatpush.msra.mxu0 0.0
  %2035 = vmatpush.msra.mxu0 0.0
  %2036 = vmatpush.msra.mxu0 0.0
  %2037 = vmatpush.msra.mxu0 %v99
  %2038 = vmatpush.msra.mxu0 %v91
  %2039 = vmatpush.msra.mxu0 %v83
  %2040 = vmatpush.msra.mxu0 %v75
  %2041 = vmatmul.f32.gmra.mxu0 %v1963
  %v2042 = vpop.f32.mrf.mxu0
  %v2043 = vadd.f32 0.0, %v2042
  %2044 = vdwg.mxu0
  %2045 = vmatpush.msra.mxu0 0.0
  %2046 = vmatpush.msra.mxu0 0.0
  %2047 = vmatpush.msra.mxu0 0.0
  %2048 = vmatpush.msra.mxu0 0.0
  %2049 = vmatpush.msra.mxu0 0.0
  %2050 = vmatpush.msra.mxu0 0.0
  %2051 = vmatpush.msra.mxu0 0.0
  %2052 = vmatpush.msra.mxu0 0.0
  %2053 = vmatpush.msra.mxu0 0.0
  %2054 = vmatpush.msra.mxu0 0.0
  %2055 = vmatpush.msra.mxu0 0.0
  %2056 = vmatpush.msra.mxu0 0.0
  %2057 = vmatpush.msra.mxu0 %v100
  %2058 = vmatpush.msra.mxu0 %v92
  %2059 = vmatpush.msra.mxu0 %v84
  %2060 = vmatpush.msra.mxu0 %v76
  %2061 = vmatmul.f32.gmra.mxu0 %v1963
  %v2062 = vpop.f32.mrf.mxu0
  %v2063 = vadd.f32 0.0, %v2062
  %2064 = vdwg.mxu0
  %2065 = vmatpush.msra.mxu0 0.0
  %2066 = vmatpush.msra.mxu0 0.0
  %2067 = vmatpush.msra.mxu0 0.0
  %2068 = vmatpush.msra.mxu0 0.0
  %2069 = vmatpush.msra.mxu0 0.0
  %2070 = vmatpush.msra.mxu0 0.0
  %2071 = vmatpush.msra.mxu0 0.0
  %2072 = vmatpush.msra.mxu0 0.0
  %2073 = vmatpush.msra.mxu0 0.0
  %2074 = vmatpush.msra.mxu0 0.0
  %2075 = vmatpush.msra.mxu0 0.0
  %2076 = vmatpush.msra.mxu0 0.0
  %2077 = vmatpush.msra.mxu0 %v101
  %2078 = vmatpush.msra.mxu0 %v93
  %2079 = vmatpush.msra.mxu0 %v85
  %2080 = vmatpush.msra.mxu0 %v77
  %2081 = vmatmul.f32.gmra.mxu0 %v1963
  %v2082 = vpop.f32.mrf.mxu0
  %v2083 = vadd.f32 0.0, %v2082
  %2084 = vdwg.mxu0
  %2085 = vmatpush.msra.mxu0 0.0
  %2086 = vmatpush.msra.mxu0 0.0
  %2087 = vmatpush.msra.mxu0 0.0
  %2088 = vmatpush.msra.mxu0 0.0
  %2089 = vmatpush.msra.mxu0 0.0
  %2090 = vmatpush.msra.mxu0 0.0
  %2091 = vmatpush.msra.mxu0 0.0
  %2092 = vmatpush.msra.mxu0 0.0
  %2093 = vmatpush.msra.mxu0 0.0
  %2094 = vmatpush.msra.mxu0 0.0
  %2095 = vmatpush.msra.mxu0 0.0
  %2096 = vmatpush.msra.mxu0 0.0
  %2097 = vmatpush.msra.mxu0 %v102
  %2098 = vmatpush.msra.mxu0 %v94
  %2099 = vmatpush.msra.mxu0 %v86
  %2100 = vmatpush.msra.mxu0 %v78
  %2101 = vmatmul.f32.gmra.mxu0 %v1963
  %v2102 = vpop.f32.mrf.mxu0
  %v2103 = vadd.f32 0.0, %v2102
  %2104 = vdwg.mxu0
  %2105 = vmatpush.msra.mxu0 0.0
  %2106 = vmatpush.msra.mxu0 0.0
  %2107 = vmatpush.msra.mxu0 0.0
  %2108 = vmatpush.msra.mxu0 0.0
  %2109 = vmatpush.msra.mxu0 0.0
  %2110 = vmatpush.msra.mxu0 0.0
  %2111 = vmatpush.msra.mxu0 0.0
  %2112 = vmatpush.msra.mxu0 0.0
  %2113 = vmatpush.msra.mxu0 0.0
  %2114 = vmatpush.msra.mxu0 0.0
  %2115 = vmatpush.msra.mxu0 0.0
  %2116 = vmatpush.msra.mxu0 0.0
  %2117 = vmatpush.msra.mxu0 %v103
  %2118 = vmatpush.msra.mxu0 %v95
  %2119 = vmatpush.msra.mxu0 %v87
  %2120 = vmatpush.msra.mxu0 %v79
  %2121 = vmatmul.f32.gmra.mxu0 %v1963
  %v2122 = vpop.f32.mrf.mxu0
  %v2123 = vadd.f32 0.0, %v2122
  %2124 = vdwg.mxu0
  %v2125 = vmul.f32 %v1983, %v1405
  %v2126 = vmul.f32 %v2003, %v1406
  %v2127 = vmul.f32 %v2023, %v1407
  %v2128 = vmul.f32 %v2043, %v1408
  %v2129 = vmul.f32 %v2063, %v1409
  %v2130 = vmul.f32 %v2083, %v1410
  %v2131 = vmul.f32 %v2103, %v1411
  %v2132 = vmul.f32 %v2123, %v1412
  %2133 = vmatpush.msra.mxu0 %v119
  %2134 = vmatpush.msra.mxu0 %v118
  %2135 = vmatpush.msra.mxu0 %v117
  %2136 = vmatpush.msra.mxu0 %v116
  %2137 = vmatpush.msra.mxu0 %v115
  %2138 = vmatpush.msra.mxu0 %v114
  %2139 = vmatpush.msra.mxu0 %v113
  %2140 = vmatpush.msra.mxu0 %v112
  %2141 = vmatpush.msra.mxu0 %v111
  %2142 = vmatpush.msra.mxu0 %v110
  %2143 = vmatpush.msra.mxu0 %v109
  %2144 = vmatpush.msra.mxu0 %v108
  %2145 = vmatpush.msra.mxu0 %v107
  %2146 = vmatpush.msra.mxu0 %v106
  %2147 = vmatpush.msra.mxu0 %v105
  %2148 = vmatpush.msra.mxu0 %v104
  %2149 = vmatmul.f32.gmra.mxu0 %v2125
  %v2150 = vpop.f32.mrf.mxu0
  %v2151 = vadd.f32 0.0, %v2150
  %2152 = vdwg.mxu0
  %2153 = vmatpush.msra.mxu0 %v135
  %2154 = vmatpush.msra.mxu0 %v134
  %2155 = vmatpush.msra.mxu0 %v133
  %2156 = vmatpush.msra.mxu0 %v132
  %2157 = vmatpush.msra.mxu0 %v131
  %2158 = vmatpush.msra.mxu0 %v130
  %2159 = vmatpush.msra.mxu0 %v129
  %2160 = vmatpush.msra.mxu0 %v128
  %2161 = vmatpush.msra.mxu0 %v127
  %2162 = vmatpush.msra.mxu0 %v126
  %2163 = vmatpush.msra.mxu0 %v125
  %2164 = vmatpush.msra.mxu0 %v124
  %2165 = vmatpush.msra.mxu0 %v123
  %2166 = vmatpush.msra.mxu0 %v122
  %2167 = vmatpush.msra.mxu0 %v121
  %2168 = vmatpush.msra.mxu0 %v120
  %2169 = vmatmul.f32.gmra.mxu0 %v2126
  %v2170 = vpop.f32.mrf.mxu0
  %v2171 = vadd.f32 %v2151, %v2170
  %2172 = vdwg.mxu0
  %2173 = vmatpush.msra.mxu0 %v151
  %2174 = vmatpush.msra.mxu0 %v150
  %2175 = vmatpush.msra.mxu0 %v149
  %2176 = vmatpush.msra.mxu0 %v148
  %2177 = vmatpush.msra.mxu0 %v147
  %2178 = vmatpush.msra.mxu0 %v146
  %2179 = vmatpush.msra.mxu0 %v145
  %2180 = vmatpush.msra.mxu0 %v144
  %2181 = vmatpush.msra.mxu0 %v143
  %2182 = vmatpush.msra.mxu0 %v142
  %2183 = vmatpush.msra.mxu0 %v141
  %2184 = vmatpush.msra.mxu0 %v140
  %2185 = vmatpush.msra.mxu0 %v139
  %2186 = vmatpush.msra.mxu0 %v138
  %2187 = vmatpush.msra.mxu0 %v137
  %2188 = vmatpush.msra.mxu0 %v136
  %2189 = vmatmul.f32.gmra.mxu0 %v2127
  %v2190 = vpop.f32.mrf.mxu0
  %v2191 = vadd.f32 %v2171, %v2190
  %2192 = vdwg.mxu0
  %2193 = vmatpush.msra.mxu0 %v167
  %2194 = vmatpush.msra.mxu0 %v166
  %2195 = vmatpush.msra.mxu0 %v165
  %2196 = vmatpush.msra.mxu0 %v164
  %2197 = vmatpush.msra.mxu0 %v163
  %2198 = vmatpush.msra.mxu0 %v162
  %2199 = vmatpush.msra.mxu0 %v161
  %2200 = vmatpush.msra.mxu0 %v160
  %2201 = vmatpush.msra.mxu0 %v159
  %2202 = vmatpush.msra.mxu0 %v158
  %2203 = vmatpush.msra.mxu0 %v157
  %2204 = vmatpush.msra.mxu0 %v156
  %2205 = vmatpush.msra.mxu0 %v155
  %2206 = vmatpush.msra.mxu0 %v154
  %2207 = vmatpush.msra.mxu0 %v153
  %2208 = vmatpush.msra.mxu0 %v152
  %2209 = vmatmul.f32.gmra.mxu0 %v2128
  %v2210 = vpop.f32.mrf.mxu0
  %v2211 = vadd.f32 %v2191, %v2210
  %2212 = vdwg.mxu0
  %2213 = vmatpush.msra.mxu0 %v183
  %2214 = vmatpush.msra.mxu0 %v182
  %2215 = vmatpush.msra.mxu0 %v181
  %2216 = vmatpush.msra.mxu0 %v180
  %2217 = vmatpush.msra.mxu0 %v179
  %2218 = vmatpush.msra.mxu0 %v178
  %2219 = vmatpush.msra.mxu0 %v177
  %2220 = vmatpush.msra.mxu0 %v176
  %2221 = vmatpush.msra.mxu0 %v175
  %2222 = vmatpush.msra.mxu0 %v174
  %2223 = vmatpush.msra.mxu0 %v173
  %2224 = vmatpush.msra.mxu0 %v172
  %2225 = vmatpush.msra.mxu0 %v171
  %2226 = vmatpush.msra.mxu0 %v170
  %2227 = vmatpush.msra.mxu0 %v169
  %2228 = vmatpush.msra.mxu0 %v168
  %2229 = vmatmul.f32.gmra.mxu0 %v2129
  %v2230 = vpop.f32.mrf.mxu0
  %v2231 = vadd.f32 %v2211, %v2230
  %2232 = vdwg.mxu0
  %2233 = vmatpush.msra.mxu0 %v199
  %2234 = vmatpush.msra.mxu0 %v198
  %2235 = vmatpush.msra.mxu0 %v197
  %2236 = vmatpush.msra.mxu0 %v196
  %2237 = vmatpush.msra.mxu0 %v195
  %2238 = vmatpush.msra.mxu0 %v194
  %2239 = vmatpush.msra.mxu0 %v193
  %2240 = vmatpush.msra.mxu0 %v192
  %2241 = vmatpush.msra.mxu0 %v191
  %2242 = vmatpush.msra.mxu0 %v190
  %2243 = vmatpush.msra.mxu0 %v189
  %2244 = vmatpush.msra.mxu0 %v188
  %2245 = vmatpush.msra.mxu0 %v187
  %2246 = vmatpush.msra.mxu0 %v186
  %2247 = vmatpush.msra.mxu0 %v185
  %2248 = vmatpush.msra.mxu0 %v184
  %2249 = vmatmul.f32.gmra.mxu0 %v2130
  %v2250 = vpop.f32.mrf.mxu0
  %v2251 = vadd.f32 %v2231, %v2250
  %2252 = vdwg.mxu0
  %2253 = vmatpush.msra.mxu0 %v215
  %2254 = vmatpush.msra.mxu0 %v214
  %2255 = vmatpush.msra.mxu0 %v213
  %2256 = vmatpush.msra.mxu0 %v212
  %2257 = vmatpush.msra.mxu0 %v211
  %2258 = vmatpush.msra.mxu0 %v210
  %2259 = vmatpush.msra.mxu0 %v209
  %2260 = vmatpush.msra.mxu0 %v208
  %2261 = vmatpush.msra.mxu0 %v207
  %2262 = vmatpush.msra.mxu0 %v206
  %2263 = vmatpush.msra.mxu0 %v205
  %2264 = vmatpush.msra.mxu0 %v204
  %2265 = vmatpush.msra.mxu0 %v203
  %2266 = vmatpush.msra.mxu0 %v202
  %2267 = vmatpush.msra.mxu0 %v201
  %2268 = vmatpush.msra.mxu0 %v200
  %2269 = vmatmul.f32.gmra.mxu0 %v2131
  %v2270 = vpop.f32.mrf.mxu0
  %v2271 = vadd.f32 %v2251, %v2270
  %2272 = vdwg.mxu0
  %2273 = vmatpush.msra.mxu0 %v231
  %2274 = vmatpush.msra.mxu0 %v230
  %2275 = vmatpush.msra.mxu0 %v229
  %2276 = vmatpush.msra.mxu0 %v228
  %2277 = vmatpush.msra.mxu0 %v227
  %2278 = vmatpush.msra.mxu0 %v226
  %2279 = vmatpush.msra.mxu0 %v225
  %2280 = vmatpush.msra.mxu0 %v224
  %2281 = vmatpush.msra.mxu0 %v223
  %2282 = vmatpush.msra.mxu0 %v222
  %2283 = vmatpush.msra.mxu0 %v221
  %2284 = vmatpush.msra.mxu0 %v220
  %2285 = vmatpush.msra.mxu0 %v219
  %2286 = vmatpush.msra.mxu0 %v218
  %2287 = vmatpush.msra.mxu0 %v217
  %2288 = vmatpush.msra.mxu0 %v216
  %2289 = vmatmul.f32.gmra.mxu0 %v2132
  %v2290 = vpop.f32.mrf.mxu0
  %v2291 = vadd.f32 %v2271, %v2290
  %2292 = vdwg.mxu0
  %v2293 = vpack.c.bf16 %v2291, %v2291
  %v2295 = vsel %vm236, %v2293, 0
  %2297 = vmatpush.bf16.msra.mxu0 0
  %2298 = vmatpush.bf16.msra.mxu0 0
  %2299 = vmatpush.bf16.msra.mxu0 0
  %2300 = vmatpush.bf16.msra.mxu0 0
  %2301 = vmatpush.bf16.msra.mxu0 0
  %2302 = vmatpush.bf16.msra.mxu0 0
  %2303 = vmatpush.bf16.msra.mxu0 %v1594
  %2304 = vmatpush.bf16.msra.mxu0 %v1593
  %2305 = vmatmul.bf16.gmra.mxu0 %v2295
  %v2306 = vpop.f32.mrf.mxu0
  %v2307 = vadd.f32 %v1583, %v2306
  %v2308 = vpop.f32.mrf.mxu0
  %2309 = vdwg.mxu0
  %2310 = vrot.lane.b32.xlu0 %v33, 64
  %v2311 = vpop.permute.xlu0 %2310
  %v2312 = vsel %vm236, %v2311, 0
  %2314 = vmatpush.msra.mxu0 0.0
  %2315 = vmatpush.msra.mxu0 0.0
  %2316 = vmatpush.msra.mxu0 0.0
  %2317 = vmatpush.msra.mxu0 0.0
  %2318 = vmatpush.msra.mxu0 0.0
  %2319 = vmatpush.msra.mxu0 0.0
  %2320 = vmatpush.msra.mxu0 0.0
  %2321 = vmatpush.msra.mxu0 0.0
  %2322 = vmatpush.msra.mxu0 0.0
  %2323 = vmatpush.msra.mxu0 0.0
  %2324 = vmatpush.msra.mxu0 0.0
  %2325 = vmatpush.msra.mxu0 0.0
  %2326 = vmatpush.msra.mxu0 %v96
  %2327 = vmatpush.msra.mxu0 %v88
  %2328 = vmatpush.msra.mxu0 %v80
  %2329 = vmatpush.msra.mxu0 %v72
  %2330 = vmatmul.f32.gmra.mxu0 %v2312
  %v2331 = vpop.f32.mrf.mxu0
  %v2332 = vadd.f32 0.0, %v2331
  %2333 = vdwg.mxu0
  %2334 = vmatpush.msra.mxu0 0.0
  %2335 = vmatpush.msra.mxu0 0.0
  %2336 = vmatpush.msra.mxu0 0.0
  %2337 = vmatpush.msra.mxu0 0.0
  %2338 = vmatpush.msra.mxu0 0.0
  %2339 = vmatpush.msra.mxu0 0.0
  %2340 = vmatpush.msra.mxu0 0.0
  %2341 = vmatpush.msra.mxu0 0.0
  %2342 = vmatpush.msra.mxu0 0.0
  %2343 = vmatpush.msra.mxu0 0.0
  %2344 = vmatpush.msra.mxu0 0.0
  %2345 = vmatpush.msra.mxu0 0.0
  %2346 = vmatpush.msra.mxu0 %v97
  %2347 = vmatpush.msra.mxu0 %v89
  %2348 = vmatpush.msra.mxu0 %v81
  %2349 = vmatpush.msra.mxu0 %v73
  %2350 = vmatmul.f32.gmra.mxu0 %v2312
  %v2351 = vpop.f32.mrf.mxu0
  %v2352 = vadd.f32 0.0, %v2351
  %2353 = vdwg.mxu0
  %2354 = vmatpush.msra.mxu0 0.0
  %2355 = vmatpush.msra.mxu0 0.0
  %2356 = vmatpush.msra.mxu0 0.0
  %2357 = vmatpush.msra.mxu0 0.0
  %2358 = vmatpush.msra.mxu0 0.0
  %2359 = vmatpush.msra.mxu0 0.0
  %2360 = vmatpush.msra.mxu0 0.0
  %2361 = vmatpush.msra.mxu0 0.0
  %2362 = vmatpush.msra.mxu0 0.0
  %2363 = vmatpush.msra.mxu0 0.0
  %2364 = vmatpush.msra.mxu0 0.0
  %2365 = vmatpush.msra.mxu0 0.0
  %2366 = vmatpush.msra.mxu0 %v98
  %2367 = vmatpush.msra.mxu0 %v90
  %2368 = vmatpush.msra.mxu0 %v82
  %2369 = vmatpush.msra.mxu0 %v74
  %2370 = vmatmul.f32.gmra.mxu0 %v2312
  %v2371 = vpop.f32.mrf.mxu0
  %v2372 = vadd.f32 0.0, %v2371
  %2373 = vdwg.mxu0
  %2374 = vmatpush.msra.mxu0 0.0
  %2375 = vmatpush.msra.mxu0 0.0
  %2376 = vmatpush.msra.mxu0 0.0
  %2377 = vmatpush.msra.mxu0 0.0
  %2378 = vmatpush.msra.mxu0 0.0
  %2379 = vmatpush.msra.mxu0 0.0
  %2380 = vmatpush.msra.mxu0 0.0
  %2381 = vmatpush.msra.mxu0 0.0
  %2382 = vmatpush.msra.mxu0 0.0
  %2383 = vmatpush.msra.mxu0 0.0
  %2384 = vmatpush.msra.mxu0 0.0
  %2385 = vmatpush.msra.mxu0 0.0
  %2386 = vmatpush.msra.mxu0 %v99
  %2387 = vmatpush.msra.mxu0 %v91
  %2388 = vmatpush.msra.mxu0 %v83
  %2389 = vmatpush.msra.mxu0 %v75
  %2390 = vmatmul.f32.gmra.mxu0 %v2312
  %v2391 = vpop.f32.mrf.mxu0
  %v2392 = vadd.f32 0.0, %v2391
  %2393 = vdwg.mxu0
  %2394 = vmatpush.msra.mxu0 0.0
  %2395 = vmatpush.msra.mxu0 0.0
  %2396 = vmatpush.msra.mxu0 0.0
  %2397 = vmatpush.msra.mxu0 0.0
  %2398 = vmatpush.msra.mxu0 0.0
  %2399 = vmatpush.msra.mxu0 0.0
  %2400 = vmatpush.msra.mxu0 0.0
  %2401 = vmatpush.msra.mxu0 0.0
  %2402 = vmatpush.msra.mxu0 0.0
  %2403 = vmatpush.msra.mxu0 0.0
  %2404 = vmatpush.msra.mxu0 0.0
  %2405 = vmatpush.msra.mxu0 0.0
  %2406 = vmatpush.msra.mxu0 %v100
  %2407 = vmatpush.msra.mxu0 %v92
  %2408 = vmatpush.msra.mxu0 %v84
  %2409 = vmatpush.msra.mxu0 %v76
  %2410 = vmatmul.f32.gmra.mxu0 %v2312
  %v2411 = vpop.f32.mrf.mxu0
  %v2412 = vadd.f32 0.0, %v2411
  %2413 = vdwg.mxu0
  %2414 = vmatpush.msra.mxu0 0.0
  %2415 = vmatpush.msra.mxu0 0.0
  %2416 = vmatpush.msra.mxu0 0.0
  %2417 = vmatpush.msra.mxu0 0.0
  %2418 = vmatpush.msra.mxu0 0.0
  %2419 = vmatpush.msra.mxu0 0.0
  %2420 = vmatpush.msra.mxu0 0.0
  %2421 = vmatpush.msra.mxu0 0.0
  %2422 = vmatpush.msra.mxu0 0.0
  %2423 = vmatpush.msra.mxu0 0.0
  %2424 = vmatpush.msra.mxu0 0.0
  %2425 = vmatpush.msra.mxu0 0.0
  %2426 = vmatpush.msra.mxu0 %v101
  %2427 = vmatpush.msra.mxu0 %v93
  %2428 = vmatpush.msra.mxu0 %v85
  %2429 = vmatpush.msra.mxu0 %v77
  %2430 = vmatmul.f32.gmra.mxu0 %v2312
  %v2431 = vpop.f32.mrf.mxu0
  %v2432 = vadd.f32 0.0, %v2431
  %2433 = vdwg.mxu0
  %2434 = vmatpush.msra.mxu0 0.0
  %2435 = vmatpush.msra.mxu0 0.0
  %2436 = vmatpush.msra.mxu0 0.0
  %2437 = vmatpush.msra.mxu0 0.0
  %2438 = vmatpush.msra.mxu0 0.0
  %2439 = vmatpush.msra.mxu0 0.0
  %2440 = vmatpush.msra.mxu0 0.0
  %2441 = vmatpush.msra.mxu0 0.0
  %2442 = vmatpush.msra.mxu0 0.0
  %2443 = vmatpush.msra.mxu0 0.0
  %2444 = vmatpush.msra.mxu0 0.0
  %2445 = vmatpush.msra.mxu0 0.0
  %2446 = vmatpush.msra.mxu0 %v102
  %2447 = vmatpush.msra.mxu0 %v94
  %2448 = vmatpush.msra.mxu0 %v86
  %2449 = vmatpush.msra.mxu0 %v78
  %2450 = vmatmul.f32.gmra.mxu0 %v2312
  %v2451 = vpop.f32.mrf.mxu0
  %v2452 = vadd.f32 0.0, %v2451
  %2453 = vdwg.mxu0
  %2454 = vmatpush.msra.mxu0 0.0
  %2455 = vmatpush.msra.mxu0 0.0
  %2456 = vmatpush.msra.mxu0 0.0
  %2457 = vmatpush.msra.mxu0 0.0
  %2458 = vmatpush.msra.mxu0 0.0
  %2459 = vmatpush.msra.mxu0 0.0
  %2460 = vmatpush.msra.mxu0 0.0
  %2461 = vmatpush.msra.mxu0 0.0
  %2462 = vmatpush.msra.mxu0 0.0
  %2463 = vmatpush.msra.mxu0 0.0
  %2464 = vmatpush.msra.mxu0 0.0
  %2465 = vmatpush.msra.mxu0 0.0
  %2466 = vmatpush.msra.mxu0 %v103
  %2467 = vmatpush.msra.mxu0 %v95
  %2468 = vmatpush.msra.mxu0 %v87
  %2469 = vmatpush.msra.mxu0 %v79
  %2470 = vmatmul.f32.gmra.mxu0 %v2312
  %v2471 = vpop.f32.mrf.mxu0
  %v2472 = vadd.f32 0.0, %v2471
  %2473 = vdwg.mxu0
  %v2474 = vmul.f32 %v2332, %v1405
  %v2475 = vmul.f32 %v2352, %v1406
  %v2476 = vmul.f32 %v2372, %v1407
  %v2477 = vmul.f32 %v2392, %v1408
  %v2478 = vmul.f32 %v2412, %v1409
  %v2479 = vmul.f32 %v2432, %v1410
  %v2480 = vmul.f32 %v2452, %v1411
  %v2481 = vmul.f32 %v2472, %v1412
  %2482 = vmatpush.msra.mxu0 %v119
  %2483 = vmatpush.msra.mxu0 %v118
  %2484 = vmatpush.msra.mxu0 %v117
  %2485 = vmatpush.msra.mxu0 %v116
  %2486 = vmatpush.msra.mxu0 %v115
  %2487 = vmatpush.msra.mxu0 %v114
  %2488 = vmatpush.msra.mxu0 %v113
  %2489 = vmatpush.msra.mxu0 %v112
  %2490 = vmatpush.msra.mxu0 %v111
  %2491 = vmatpush.msra.mxu0 %v110
  %2492 = vmatpush.msra.mxu0 %v109
  %2493 = vmatpush.msra.mxu0 %v108
  %2494 = vmatpush.msra.mxu0 %v107
  %2495 = vmatpush.msra.mxu0 %v106
  %2496 = vmatpush.msra.mxu0 %v105
  %2497 = vmatpush.msra.mxu0 %v104
  %2498 = vmatmul.f32.gmra.mxu0 %v2474
  %v2499 = vpop.f32.mrf.mxu0
  %v2500 = vadd.f32 0.0, %v2499
  %2501 = vdwg.mxu0
  %2502 = vmatpush.msra.mxu0 %v135
  %2503 = vmatpush.msra.mxu0 %v134
  %2504 = vmatpush.msra.mxu0 %v133
  %2505 = vmatpush.msra.mxu0 %v132
  %2506 = vmatpush.msra.mxu0 %v131
  %2507 = vmatpush.msra.mxu0 %v130
  %2508 = vmatpush.msra.mxu0 %v129
  %2509 = vmatpush.msra.mxu0 %v128
  %2510 = vmatpush.msra.mxu0 %v127
  %2511 = vmatpush.msra.mxu0 %v126
  %2512 = vmatpush.msra.mxu0 %v125
  %2513 = vmatpush.msra.mxu0 %v124
  %2514 = vmatpush.msra.mxu0 %v123
  %2515 = vmatpush.msra.mxu0 %v122
  %2516 = vmatpush.msra.mxu0 %v121
  %2517 = vmatpush.msra.mxu0 %v120
  %2518 = vmatmul.f32.gmra.mxu0 %v2475
  %v2519 = vpop.f32.mrf.mxu0
  %v2520 = vadd.f32 %v2500, %v2519
  %2521 = vdwg.mxu0
  %2522 = vmatpush.msra.mxu0 %v151
  %2523 = vmatpush.msra.mxu0 %v150
  %2524 = vmatpush.msra.mxu0 %v149
  %2525 = vmatpush.msra.mxu0 %v148
  %2526 = vmatpush.msra.mxu0 %v147
  %2527 = vmatpush.msra.mxu0 %v146
  %2528 = vmatpush.msra.mxu0 %v145
  %2529 = vmatpush.msra.mxu0 %v144
  %2530 = vmatpush.msra.mxu0 %v143
  %2531 = vmatpush.msra.mxu0 %v142
  %2532 = vmatpush.msra.mxu0 %v141
  %2533 = vmatpush.msra.mxu0 %v140
  %2534 = vmatpush.msra.mxu0 %v139
  %2535 = vmatpush.msra.mxu0 %v138
  %2536 = vmatpush.msra.mxu0 %v137
  %2537 = vmatpush.msra.mxu0 %v136
  %2538 = vmatmul.f32.gmra.mxu0 %v2476
  %v2539 = vpop.f32.mrf.mxu0
  %v2540 = vadd.f32 %v2520, %v2539
  %2541 = vdwg.mxu0
  %2542 = vmatpush.msra.mxu0 %v167
  %2543 = vmatpush.msra.mxu0 %v166
  %2544 = vmatpush.msra.mxu0 %v165
  %2545 = vmatpush.msra.mxu0 %v164
  %2546 = vmatpush.msra.mxu0 %v163
  %2547 = vmatpush.msra.mxu0 %v162
  %2548 = vmatpush.msra.mxu0 %v161
  %2549 = vmatpush.msra.mxu0 %v160
  %2550 = vmatpush.msra.mxu0 %v159
  %2551 = vmatpush.msra.mxu0 %v158
  %2552 = vmatpush.msra.mxu0 %v157
  %2553 = vmatpush.msra.mxu0 %v156
  %2554 = vmatpush.msra.mxu0 %v155
  %2555 = vmatpush.msra.mxu0 %v154
  %2556 = vmatpush.msra.mxu0 %v153
  %2557 = vmatpush.msra.mxu0 %v152
  %2558 = vmatmul.f32.gmra.mxu0 %v2477
  %v2559 = vpop.f32.mrf.mxu0
  %v2560 = vadd.f32 %v2540, %v2559
  %2561 = vdwg.mxu0
  %2562 = vmatpush.msra.mxu0 %v183
  %2563 = vmatpush.msra.mxu0 %v182
  %2564 = vmatpush.msra.mxu0 %v181
  %2565 = vmatpush.msra.mxu0 %v180
  %2566 = vmatpush.msra.mxu0 %v179
  %2567 = vmatpush.msra.mxu0 %v178
  %2568 = vmatpush.msra.mxu0 %v177
  %2569 = vmatpush.msra.mxu0 %v176
  %2570 = vmatpush.msra.mxu0 %v175
  %2571 = vmatpush.msra.mxu0 %v174
  %2572 = vmatpush.msra.mxu0 %v173
  %2573 = vmatpush.msra.mxu0 %v172
  %2574 = vmatpush.msra.mxu0 %v171
  %2575 = vmatpush.msra.mxu0 %v170
  %2576 = vmatpush.msra.mxu0 %v169
  %2577 = vmatpush.msra.mxu0 %v168
  %2578 = vmatmul.f32.gmra.mxu0 %v2478
  %v2579 = vpop.f32.mrf.mxu0
  %v2580 = vadd.f32 %v2560, %v2579
  %2581 = vdwg.mxu0
  %2582 = vmatpush.msra.mxu0 %v199
  %2583 = vmatpush.msra.mxu0 %v198
  %2584 = vmatpush.msra.mxu0 %v197
  %2585 = vmatpush.msra.mxu0 %v196
  %2586 = vmatpush.msra.mxu0 %v195
  %2587 = vmatpush.msra.mxu0 %v194
  %2588 = vmatpush.msra.mxu0 %v193
  %2589 = vmatpush.msra.mxu0 %v192
  %2590 = vmatpush.msra.mxu0 %v191
  %2591 = vmatpush.msra.mxu0 %v190
  %2592 = vmatpush.msra.mxu0 %v189
  %2593 = vmatpush.msra.mxu0 %v188
  %2594 = vmatpush.msra.mxu0 %v187
  %2595 = vmatpush.msra.mxu0 %v186
  %2596 = vmatpush.msra.mxu0 %v185
  %2597 = vmatpush.msra.mxu0 %v184
  %2598 = vmatmul.f32.gmra.mxu0 %v2479
  %v2599 = vpop.f32.mrf.mxu0
  %v2600 = vadd.f32 %v2580, %v2599
  %2601 = vdwg.mxu0
  %2602 = vmatpush.msra.mxu0 %v215
  %2603 = vmatpush.msra.mxu0 %v214
  %2604 = vmatpush.msra.mxu0 %v213
  %2605 = vmatpush.msra.mxu0 %v212
  %2606 = vmatpush.msra.mxu0 %v211
  %2607 = vmatpush.msra.mxu0 %v210
  %2608 = vmatpush.msra.mxu0 %v209
  %2609 = vmatpush.msra.mxu0 %v208
  %2610 = vmatpush.msra.mxu0 %v207
  %2611 = vmatpush.msra.mxu0 %v206
  %2612 = vmatpush.msra.mxu0 %v205
  %2613 = vmatpush.msra.mxu0 %v204
  %2614 = vmatpush.msra.mxu0 %v203
  %2615 = vmatpush.msra.mxu0 %v202
  %2616 = vmatpush.msra.mxu0 %v201
  %2617 = vmatpush.msra.mxu0 %v200
  %2618 = vmatmul.f32.gmra.mxu0 %v2480
  %v2619 = vpop.f32.mrf.mxu0
  %v2620 = vadd.f32 %v2600, %v2619
  %2621 = vdwg.mxu0
  %2622 = vmatpush.msra.mxu0 %v231
  %2623 = vmatpush.msra.mxu0 %v230
  %2624 = vmatpush.msra.mxu0 %v229
  %2625 = vmatpush.msra.mxu0 %v228
  %2626 = vmatpush.msra.mxu0 %v227
  %2627 = vmatpush.msra.mxu0 %v226
  %2628 = vmatpush.msra.mxu0 %v225
  %2629 = vmatpush.msra.mxu0 %v224
  %2630 = vmatpush.msra.mxu0 %v223
  %2631 = vmatpush.msra.mxu0 %v222
  %2632 = vmatpush.msra.mxu0 %v221
  %2633 = vmatpush.msra.mxu0 %v220
  %2634 = vmatpush.msra.mxu0 %v219
  %2635 = vmatpush.msra.mxu0 %v218
  %2636 = vmatpush.msra.mxu0 %v217
  %2637 = vmatpush.msra.mxu0 %v216
  %2638 = vmatmul.f32.gmra.mxu0 %v2481
  %v2639 = vpop.f32.mrf.mxu0
  %v2640 = vadd.f32 %v2620, %v2639
  %2641 = vdwg.mxu0
  %v2642 = vpack.c.bf16 %v2640, %v2640
  %v2644 = vsel %vm236, %v2642, 0
  %2646 = vmatpush.bf16.msra.mxu0 0
  %2647 = vmatpush.bf16.msra.mxu0 0
  %2648 = vmatpush.bf16.msra.mxu0 0
  %2649 = vmatpush.bf16.msra.mxu0 0
  %2650 = vmatpush.bf16.msra.mxu0 0
  %2651 = vmatpush.bf16.msra.mxu0 0
  %2652 = vmatpush.bf16.msra.mxu0 %v1594
  %2653 = vmatpush.bf16.msra.mxu0 %v1593
  %2654 = vmatmul.bf16.gmra.mxu0 %v2644
  %v2655 = vpop.f32.mrf.mxu0
  %v2656 = vadd.f32 %v1583, %v2655
  %v2657 = vpop.f32.mrf.mxu0
  %2658 = vdwg.mxu0
  %2660 = vrot.lane.b32.xlu0 %v1958, 64
  %v2661 = vpop.permute.xlu0 %2660
  %2664 = vrot.lane.b32.xlu0 %v2656, 64
  %v2665 = vpop.permute.xlu0 %2664
  %vm2667 = vcmask 523264
  %v2668 = vsel %vm2667, %v1610, %v2661
  %v2669 = vsel %vm2667, %v2307, %v2665
  %2670 = vst [vmem:[%s8] sm:$0xff] %v2668
  %2671 = vst [vmem:[%s8 + $0x8] sm:$0xff] %v2669
  %v2672 = vlaneseq
  %v2673 = vshrl.u32 %v2672, 7
  %s2674 = smul.u32 0, 8
  %v2675 = vstv %s2674
  %v2676 = vadd.s32 %v2673, %v2675
  %vm2677 = vcmp.lt.s32.totalorder %v2676, 2
  %v2678 = vsel %vm2677, 1, 0
  %v2679 = vcvt.s32.f32 %v2678
  %v2680 = vmul.f32 %v2668, %v2679
  %v2681 = vmul.f32 %v2669, %v2679
  %v2682 = vrot.slane %v2680, 4
  %v2683 = vadd.f32 %v2680, %v2682
  %v2684 = vrot.slane %v2683, 2
  %v2685 = vadd.f32 %v2683, %v2684
  %v2686 = vrot.slane %v2685, 1
  %v2687 = vadd.f32 %v2685, %v2686
  %v2688 = vrot.slane %v2681, 4
  %v2689 = vadd.f32 %v2681, %v2688
  %v2690 = vrot.slane %v2689, 2
  %v2691 = vadd.f32 %v2689, %v2690
  %v2692 = vrot.slane %v2691, 1
  %v2693 = vadd.f32 %v2691, %v2692
  %v2694 = vmul.f32 %v2680, %v2680
  %v2695 = vmul.f32 %v2681, %v2681
  %v2696 = vrot.slane %v2694, 4
  %v2697 = vadd.f32 %v2694, %v2696
  %v2698 = vrot.slane %v2697, 2
  %v2699 = vadd.f32 %v2697, %v2698
  %v2700 = vrot.slane %v2699, 1
  %v2701 = vadd.f32 %v2699, %v2700
  %v2702 = vrot.slane %v2695, 4
  %v2703 = vadd.f32 %v2695, %v2702
  %v2704 = vrot.slane %v2703, 2
  %v2705 = vadd.f32 %v2703, %v2704
  %v2706 = vrot.slane %v2705, 1
  %v2707 = vadd.f32 %v2705, %v2706
  %vm2708 = vcmask 1040384
  %v2709 = vsel %vm2708, %v2687, %v2701
  %v2710 = vsel %vm2708, %v2693, %v2707
  %v2713 = vrot.slane %v2710, 6
  %vm2714 = vcmask 1041408
  %v2715 = vsel %vm2714, %v2709, %v2713
  %2717 = vst [vmem:[%s9] sm:$0xf] %v2715
  // Predicated region
  $region34: #{afgn_forward.3} parent=0 // pred_check
    _
  $region35: #{afgn_forward.3} parent=0 // pred_check_branch
    %2719 = sbr.rel (0) target = $region37
  $region36: #{afgn_forward.3} parent=0 // pred_region
    _
  $region37: #{afgn_forward.3} parent=0 // pred_fallthru
    _
  // Predicated region
  $region38: #{afgn_forward.3} parent=0 // pred_check
    _
  $region39: #{afgn_forward.3} parent=0 // pred_check_branch
    %2721 = sbr.rel (0) target = $region41
  $region40: #{afgn_forward.3} parent=0 // pred_region
    _
  $region41: #{afgn_forward.3} parent=0 // pred_fallthru
    _
  // Predicated region
  $region42: #{afgn_forward.3} parent=0 // pred_check
    _
  $region43: #{afgn_forward.3} parent=0 // pred_check_branch
    %2723 = sbr.rel (0) target = $region45
  $region44: #{afgn_forward.3} parent=0 // pred_region
    _
  $region45: #{afgn_forward.3} parent=0 // pred_fallthru
    _
  // Predicated region
  $region46: #{afgn_forward.3} parent=0 // pred_check
    _
  $region47: #{afgn_forward.3} parent=0 // pred_check_branch
    %2725 = sbr.rel (0) target = $region49
  $region48: #{afgn_forward.3} parent=0 // pred_region
    _
  $region49: #{afgn_forward.3} parent=0 // pred_fallthru
    _

</llo_original>
